<compile_context>
chip_gen: v6e
topology: v6e:2x2x1
jax: 0.10.0
libtpu: 0.0.40
codegen_flags: <defaults>
</compile_context>

<pallas_src>
import numpy as np
import jax
import jax.numpy as jnp
from jax import lax
from jax.experimental import pallas as pl
from jax.experimental.pallas import tpu as pltpu

# ---------------- configuration (small synthetic shapes, consistent with the module) ----
M = 16            # config['Segmentation']['m']
INPUT_DIM = 4     # use_coords = True -> 4 input channels
NUM_CLASSES = 20  # config['DATA']['classes_seg']
N_POINTS = 64
N_VOX = 32
K_OFFSETS = 27    # 3x3x3 submanifold kernel offsets
LANE = 128        # lane-dense channel padding (last dim multiple of 128)
GATH_ROWS = K_OFFSETS * N_VOX   # 864 rows, k-major (multiple of 8)
PTS_ROWS = 128                  # points padded to a full lane tile (contraction dim)
VOX_ROWS = 128                  # voxel rows padded for the p2v one-hot matmul
EPS_OUT_BN = 1e-4               # norm_fn = BatchNorm1d(eps=0.0001)
EPS_EMB_BN = 1e-5               # default BatchNorm1d eps inside conv_base.Conv1d


# ---------------- fused Pallas kernel ----------------------------------------------------
def _fused_unet_kernel(
    t_ref, pts_ref, w_in_ref, g_out_ref, b_out_ref, p2v_ref,
    w_emb_ref, b_emb_ref, g_emb_ref, be_emb_ref, w_lin_ref, b_lin_ref,   # VMEM inputs
    logits_ref, feat_ref,                                                # VMEM outputs
    gath_ref, voxp_ref):                                                 # VMEM scratch
    f32, bf16 = jnp.float32, jnp.bfloat16

    # 1) point_voxelization (mean) fused with the SubMConv3d rulebook gather:
    #    T_stack row 32*k + v holds 1/cnt weights of the points falling into voxel
    #    nbr[v, k] (all-zero row for inactive neighbours), so ONE MXU matmul produces
    #    gath[32*k + v, :] = mean point-features of the k-th neighbour of voxel v.
    gath_ref[...] = jnp.dot(t_ref[...], pts_ref[...], preferred_element_type=f32)

    # 2) input_conv: SubMConv3d(input_dim, m, k=3, bias=False) -- 27 per-offset
    #    [32,128]x[128,128] bf16 MXU dots accumulated in registers (4 vregs), one store.
    conv = jnp.zeros((N_VOX, LANE), f32)
    for k in range(K_OFFSETS):
        conv = conv + jnp.dot(
            gath_ref[pl.ds(k * N_VOX, N_VOX), :].astype(bf16),
            w_in_ref[k], preferred_element_type=f32)

    # TODO(synk): UBlock/ResidualBlock/VGGBlock definitions are not in the provided module;
    # backbone_net (m -> m, shape preserving) is treated as identity.

    # 3) output_layer: BatchNorm1d(m, eps=1e-4) with training-mode batch stats + ReLU,
    #    gamma*rsqrt(var+eps) folded into a single per-channel scale/shift.
    mu = jnp.mean(conv, axis=0, keepdims=True)
    var = jnp.mean((conv - mu) * (conv - mu), axis=0, keepdims=True)
    scale = g_out_ref[...] * lax.rsqrt(var + EPS_OUT_BN)
    shift = b_out_ref[...] - mu * scale
    voxf = jnp.maximum(conv * scale + shift, 0.0)                        # [N_VOX, LANE]

    # 4) voxel -> point gather: x.features[p2v_map] as a one-hot MXU matmul (exact).
    voxp_ref[...] = jnp.zeros_like(voxp_ref)
    voxp_ref[pl.ds(0, N_VOX), :] = voxf
    x = jnp.dot(p2v_ref[...], voxp_ref[...], preferred_element_type=f32)  # [N_POINTS, LANE]

    # 5) shape_embedding: Conv1d(m, m, k=1) + BatchNorm1d(eps=1e-5) + LeakyReLU(0.2)
    e = jnp.dot(x.astype(bf16), w_emb_ref[...], preferred_element_type=f32) + b_emb_ref[...]
    mu = jnp.mean(e, axis=0, keepdims=True)
    var = jnp.mean((e - mu) * (e - mu), axis=0, keepdims=True)
    scale = g_emb_ref[...] * lax.rsqrt(var + EPS_EMB_BN)
    shift = be_emb_ref[...] - mu * scale
    e = e * scale + shift
    feat = jnp.where(e > 0.0, e, 0.2 * e)
    feat_ref[...] = feat

    # 6) residual + Linear(m, classes)
    z = feat + x
    logits_ref[...] = jnp.dot(z.astype(bf16), w_lin_ref[...],
                              preferred_element_type=f32) + b_lin_ref[...]


# ---------------- host-side glue ----------------------------------------------------------
def _spec(shape):
    zero = (0,) * len(shape)
    return pl.BlockSpec(shape, lambda i, *_: zero)


def _pad_rowvec(v):
    out = jnp.zeros((1, LANE), jnp.float32)
    return out.at[:, : v.shape[-1]].set(v.reshape(1, -1))


def _pad_mat_bf16(w):
    out = jnp.zeros((LANE, LANE), jnp.float32)
    out = out.at[: w.shape[0], : w.shape[1]].set(w)
    return out.astype(jnp.bfloat16)


def _build_gather_operators(v2p, p2v, nbr):
    """Fold mean voxelization, the SubMConv3d rulebook gather and the p2v gather into
    dense operator matrices so the kernel runs them on the MXU instead of scalar loops."""
    # mean-scatter S[u, p] = 1/cnt[u] if point p falls in voxel u; all-zero sentinel row.
    onehot = (v2p[None, :] == jnp.arange(N_VOX, dtype=jnp.int32)[:, None]).astype(jnp.float32)
    cnt = jnp.maximum(onehot.sum(axis=1, keepdims=True), 1.0)
    s_mean = jnp.concatenate([onehot / cnt, jnp.zeros((1, N_POINTS), jnp.float32)], axis=0)
    nbr_s = jnp.where(nbr < 0, N_VOX, nbr).astype(jnp.int32)             # [N_VOX, 27]
    t = s_mean[nbr_s.T.reshape(-1)]                                      # [27*N_VOX, N_POINTS]
    t_stack = jnp.zeros((GATH_ROWS, PTS_ROWS), jnp.float32).at[:, :N_POINTS].set(t)
    # p2v one-hot gather matrix, lane-padded to the voxel-row padding.
    p_onehot = (p2v[:, None] == jnp.arange(N_VOX, dtype=jnp.int32)[None, :]).astype(jnp.float32)
    p_pad = jnp.zeros((N_POINTS, VOX_ROWS), jnp.float32).at[:, :N_VOX].set(p_onehot)
    return t_stack, p_pad


def unet_forward(data_dict, params):
    seg = data_dict["seg_features"].astype(jnp.float32)
    v2p = data_dict["v2p_map"].astype(jnp.int32)
    p2v = data_dict["p2v_map"].astype(jnp.int32)
    nbr = data_dict["nbr_idx"]

    t_stack, p_pad = _build_gather_operators(v2p, p2v, nbr)

    # point features lane-padded (channels on lanes)
    pts = jnp.zeros((PTS_ROWS, LANE), jnp.float32).at[:N_POINTS, :INPUT_DIM].set(seg)

    # per-offset conv weights, lane-padded, bf16 MXU operands
    w_in = jnp.zeros((K_OFFSETS, LANE, LANE), jnp.float32)
    w_in = w_in.at[:, :INPUT_DIM, :M].set(params["w_in"]).astype(jnp.bfloat16)

    g_out = _pad_rowvec(params["gamma_out"]); b_out = _pad_rowvec(params["beta_out"])
    w_emb = _pad_mat_bf16(params["w_emb_t"]); b_emb = _pad_rowvec(params["b_emb"])
    g_emb = _pad_rowvec(params["gamma_emb"]); be_emb = _pad_rowvec(params["beta_emb"])
    w_lin = _pad_mat_bf16(params["w_lin_t"]); b_lin = _pad_rowvec(params["b_lin"])

    inputs = (t_stack, pts, w_in, g_out, b_out, p_pad,
              w_emb, b_emb, g_emb, be_emb, w_lin, b_lin)

    logits_pad, feat_pad = pl.pallas_call(
        _fused_unet_kernel,
        grid_spec=pltpu.PrefetchScalarGridSpec(
            num_scalar_prefetch=0,
            grid=(1,),
            in_specs=[_spec(x.shape) for x in inputs],
            out_specs=[_spec((N_POINTS, LANE)), _spec((N_POINTS, LANE))],
            scratch_shapes=[
                pltpu.VMEM((GATH_ROWS, LANE), jnp.float32),   # gathered neighbour means
                pltpu.VMEM((VOX_ROWS, LANE), jnp.float32),    # padded BN'd voxel features
            ]),
        out_shape=(jax.ShapeDtypeStruct((N_POINTS, LANE), jnp.float32),
                   jax.ShapeDtypeStruct((N_POINTS, LANE), jnp.float32)),
        compiler_params=pltpu.CompilerParams(
            dimension_semantics=("arbitrary",),
            vmem_limit_bytes=32 * 1024 * 1024),
    )(*inputs)

    return logits_pad[:, :NUM_CLASSES], feat_pad[:, :M]


def build_rulebook(coords):
    """Submanifold-conv rulebook: index of voxel at loc+offset for each active voxel (or -1)."""
    loc2idx = {tuple(int(v) for v in c): i for i, c in enumerate(coords)}
    offsets = [(dz, dy, dx) for dz in (-1, 0, 1) for dy in (-1, 0, 1) for dx in (-1, 0, 1)]
    nbr = np.full((len(coords), K_OFFSETS), -1, dtype=np.int32)
    for i, c in enumerate(coords):
        for k, off in enumerate(offsets):
            key = (int(c[0]) + off[0], int(c[1]) + off[1], int(c[2]) + off[2])
            if key in loc2idx:
                nbr[i, k] = loc2idx[key]
    return jnp.asarray(nbr)


# ---------------- pure-JAX reference (mirrors the in-kernel bf16 operand rounding) --------
def _r(x):
    return x.astype(jnp.bfloat16).astype(jnp.float32)


def unet_reference(data_dict, params):
    seg = data_dict["seg_features"]
    v2p = data_dict["v2p_map"]
    p2v = data_dict["p2v_map"]
    nbr = data_dict["nbr_idx"]

    onehot = (v2p[None, :] == jnp.arange(N_VOX, dtype=jnp.int32)[:, None]).astype(jnp.float32)
    cnt = jnp.maximum(onehot.sum(axis=1, keepdims=True), 1.0)
    vox = (onehot @ seg) / cnt                                          # [Nvox, Cin]
    vox_pad = jnp.concatenate([vox, jnp.zeros((1, INPUT_DIM), jnp.float32)], axis=0)
    nbr_s = jnp.where(nbr < 0, N_VOX, nbr)
    gath = vox_pad[nbr_s]                                               # [Nvox, 27, Cin]
    y = jnp.einsum("vki,kio->vo", _r(gath), _r(params["w_in"]))         # [Nvox, M]
    mu = y.mean(axis=0, keepdims=True)
    var = ((y - mu) ** 2).mean(axis=0, keepdims=True)
    y = (y - mu) * lax.rsqrt(var + EPS_OUT_BN) * params["gamma_out"] + params["beta_out"]
    y = jnp.maximum(y, 0.0)
    x = y[p2v]                                                          # [N, M]
    e = _r(x) @ _r(params["w_emb_t"]) + params["b_emb"]
    mu = e.mean(axis=0, keepdims=True)
    var = ((e - mu) ** 2).mean(axis=0, keepdims=True)
    e = (e - mu) * lax.rsqrt(var + EPS_EMB_BN) * params["gamma_emb"] + params["beta_emb"]
    feat = jnp.where(e > 0.0, e, 0.2 * e)
    logits = _r(feat + x) @ _r(params["w_lin_t"]) + params["b_lin"]
    return logits, feat


if __name__ == "__main__":
    key = jax.random.PRNGKey(0)
    ks = jax.random.split(key, 10)

    # ---- synthetic data_dict ------------------------------------------------------------
    seg_features = jax.random.normal(ks[0], (N_POINTS, INPUT_DIM), dtype=jnp.float32)
    v2p_map = jnp.arange(N_POINTS, dtype=jnp.int32) % N_VOX   # point -> voxel assignment
    p2v_map = v2p_map                                         # point -> voxel gather map
    coords = np.array([(i % 4, (i // 4) % 4, i // 16) for i in range(N_VOX)], dtype=np.int32)
    nbr_idx = build_rulebook(coords)                          # rulebook for SubMConv3d
    data_dict = {"seg_features": seg_features, "v2p_map": v2p_map,
                 "p2v_map": p2v_map, "nbr_idx": nbr_idx}

    # ---- deterministic synthetic parameters ----------------------------------------------
    params = {
        "w_in": 0.1 * jax.random.normal(ks[1], (K_OFFSETS, INPUT_DIM, M), dtype=jnp.float32),
        "gamma_out": 1.0 + 0.1 * jax.random.normal(ks[2], (1, M), dtype=jnp.float32),
        "beta_out": 0.1 * jax.random.normal(ks[3], (1, M), dtype=jnp.float32),
        "w_emb_t": 0.1 * jax.random.normal(ks[4], (M, M), dtype=jnp.float32),
        "b_emb": 0.1 * jax.random.normal(ks[5], (1, M), dtype=jnp.float32),
        "gamma_emb": 1.0 + 0.1 * jax.random.normal(ks[6], (1, M), dtype=jnp.float32),
        "beta_emb": 0.1 * jax.random.normal(ks[7], (1, M), dtype=jnp.float32),
        "w_lin_t": 0.1 * jax.random.normal(ks[8], (M, NUM_CLASSES), dtype=jnp.float32),
        "b_lin": 0.1 * jax.random.normal(ks[9], (1, NUM_CLASSES), dtype=jnp.float32),
    }

    logits, feat = unet_forward(data_dict, params)
    jax.block_until_ready((logits, feat))

    assert logits.shape == (N_POINTS, NUM_CLASSES) and feat.shape == (N_POINTS, M)
    assert bool(jnp.all(jnp.isfinite(logits))) and bool(jnp.all(jnp.isfinite(feat)))

    ref_logits, ref_feat = unet_reference(data_dict, params)
    np.testing.assert_allclose(np.asarray(logits), np.asarray(ref_logits), rtol=2e-2, atol=2e-2)
    np.testing.assert_allclose(np.asarray(feat), np.asarray(ref_feat), rtol=2e-2, atol=2e-2)

    print("KERNEL_OK")
</pallas_src>

<mosaic_0001>
module attributes {stable_mosaic.version = 11 : i64} {
  func.func @_fused_unet_kernel(%arg0: i32, %arg1: memref<864x128xf32, #tpu.memory_space<vmem>>, %arg2: memref<128x128xf32, #tpu.memory_space<vmem>>, %arg3: memref<27x128x128xbf16, #tpu.memory_space<vmem>>, %arg4: memref<1x128xf32, #tpu.memory_space<vmem>>, %arg5: memref<1x128xf32, #tpu.memory_space<vmem>>, %arg6: memref<64x128xf32, #tpu.memory_space<vmem>>, %arg7: memref<128x128xbf16, #tpu.memory_space<vmem>>, %arg8: memref<1x128xf32, #tpu.memory_space<vmem>>, %arg9: memref<1x128xf32, #tpu.memory_space<vmem>>, %arg10: memref<1x128xf32, #tpu.memory_space<vmem>>, %arg11: memref<128x128xbf16, #tpu.memory_space<vmem>>, %arg12: memref<1x128xf32, #tpu.memory_space<vmem>>, %arg13: memref<64x128xf32, #tpu.memory_space<vmem>>, %arg14: memref<64x128xf32, #tpu.memory_space<vmem>>, %arg15: memref<864x128xf32, #tpu.memory_space<vmem>>, %arg16: memref<128x128xf32, #tpu.memory_space<vmem>>) attributes {dimension_semantics = [#tpu.dimension_semantics<arbitrary>], iteration_bounds = array<i64: 1>, scalar_prefetch = 0 : i64, scratch_operands = 2 : i64, tpu.core_type = #tpu.core_type<tc>, window_params = [{pipeline_mode = #tpu.pipeline_mode<synchronous>, transform_indices = @transform_0, window_bounds = array<i64: 864, 128>}, {pipeline_mode = #tpu.pipeline_mode<synchronous>, transform_indices = @transform_1, window_bounds = array<i64: 128, 128>}, {pipeline_mode = #tpu.pipeline_mode<synchronous>, transform_indices = @transform_2, window_bounds = array<i64: 27, 128, 128>}, {pipeline_mode = #tpu.pipeline_mode<synchronous>, transform_indices = @transform_3, window_bounds = array<i64: 1, 128>}, {pipeline_mode = #tpu.pipeline_mode<synchronous>, transform_indices = @transform_4, window_bounds = array<i64: 1, 128>}, {pipeline_mode = #tpu.pipeline_mode<synchronous>, transform_indices = @transform_5, window_bounds = array<i64: 64, 128>}, {pipeline_mode = #tpu.pipeline_mode<synchronous>, transform_indices = @transform_6, window_bounds = array<i64: 128, 128>}, {pipeline_mode = #tpu.pipeline_mode<synchronous>, transform_indices = @transform_7, window_bounds = array<i64: 1, 128>}, {pipeline_mode = #tpu.pipeline_mode<synchronous>, transform_indices = @transform_8, window_bounds = array<i64: 1, 128>}, {pipeline_mode = #tpu.pipeline_mode<synchronous>, transform_indices = @transform_9, window_bounds = array<i64: 1, 128>}, {pipeline_mode = #tpu.pipeline_mode<synchronous>, transform_indices = @transform_10, window_bounds = array<i64: 128, 128>}, {pipeline_mode = #tpu.pipeline_mode<synchronous>, transform_indices = @transform_11, window_bounds = array<i64: 1, 128>}, {pipeline_mode = #tpu.pipeline_mode<synchronous>, transform_indices = @transform_12, window_bounds = array<i64: 64, 128>}, {pipeline_mode = #tpu.pipeline_mode<synchronous>, transform_indices = @transform_13, window_bounds = array<i64: 64, 128>}]} {
    %c0 = arith.constant 0 : index
    %c0_0 = arith.constant 0 : index
    %0 = vector.load %arg1[%c0, %c0_0] : memref<864x128xf32, #tpu.memory_space<vmem>>, vector<864x128xf32>
    %c0_1 = arith.constant 0 : index
    %c0_2 = arith.constant 0 : index
    %1 = vector.load %arg2[%c0_1, %c0_2] : memref<128x128xf32, #tpu.memory_space<vmem>>, vector<128x128xf32>
    %cst = arith.constant dense<0.000000e+00> : vector<864x128xf32>
    %2 = tpu.matmul %0, %1, %cst {dimension_numbers = #tpu.dot_dimension_numbers<[1], [0], [0], [1], [0, 0, 1, 1], [], []>} : vector<864x128xf32>, vector<128x128xf32>, vector<864x128xf32> -> vector<864x128xf32>
    %c0_3 = arith.constant 0 : index
    %c0_4 = arith.constant 0 : index
    %3 = vector.load %arg15[%c0_3, %c0_4] : memref<864x128xf32, #tpu.memory_space<vmem>>, vector<864x128xf32>
    tpu.vector_store %arg15[%c0_3, %c0_4], %2 {strides = array<i32>} : memref<864x128xf32, #tpu.memory_space<vmem>>, vector<864x128xf32>,
    %cst_5 = arith.constant 0.000000e+00 : f32
    %4 = vector.broadcast %cst_5 : f32 to vector<32x128xf32>
    %c0_6 = arith.constant 0 : index
    %c0_7 = arith.constant 0 : index
    %5 = vector.load %arg15[%c0_6, %c0_7] : memref<864x128xf32, #tpu.memory_space<vmem>>, vector<32x128xf32>
    %6 = arith.truncf %5 : vector<32x128xf32> to vector<32x128xbf16>
    %c0_8 = arith.constant 0 : index
    %c0_9 = arith.constant 0 : index
    %c0_10 = arith.constant 0 : index
    %7 = vector.load %arg3[%c0_8, %c0_9, %c0_10] : memref<27x128x128xbf16, #tpu.memory_space<vmem>>, vector<1x128x128xbf16>
    %8 = vector.shape_cast %7 : vector<1x128x128xbf16> to vector<128x128xbf16>
    %cst_11 = arith.constant dense<0.000000e+00> : vector<32x128xf32>
    %9 = tpu.matmul %6, %8, %cst_11 {dimension_numbers = #tpu.dot_dimension_numbers<[1], [0], [0], [1], [0, 0, 1, 1], [], []>} : vector<32x128xbf16>, vector<128x128xbf16>, vector<32x128xf32> -> vector<32x128xf32>
    %10 = arith.addf %4, %9 : vector<32x128xf32>
    %c32 = arith.constant 32 : index
    %c0_12 = arith.constant 0 : index
    %11 = vector.load %arg15[%c32, %c0_12] : memref<864x128xf32, #tpu.memory_space<vmem>>, vector<32x128xf32>
    %12 = arith.truncf %11 : vector<32x128xf32> to vector<32x128xbf16>
    %c1 = arith.constant 1 : index
    %c0_13 = arith.constant 0 : index
    %c0_14 = arith.constant 0 : index
    %13 = vector.load %arg3[%c1, %c0_13, %c0_14] : memref<27x128x128xbf16, #tpu.memory_space<vmem>>, vector<1x128x128xbf16>
    %14 = vector.shape_cast %13 : vector<1x128x128xbf16> to vector<128x128xbf16>
    %cst_15 = arith.constant dense<0.000000e+00> : vector<32x128xf32>
    %15 = tpu.matmul %12, %14, %cst_15 {dimension_numbers = #tpu.dot_dimension_numbers<[1], [0], [0], [1], [0, 0, 1, 1], [], []>} : vector<32x128xbf16>, vector<128x128xbf16>, vector<32x128xf32> -> vector<32x128xf32>
    %16 = arith.addf %10, %15 : vector<32x128xf32>
    %c64 = arith.constant 64 : index
    %c0_16 = arith.constant 0 : index
    %17 = vector.load %arg15[%c64, %c0_16] : memref<864x128xf32, #tpu.memory_space<vmem>>, vector<32x128xf32>
    %18 = arith.truncf %17 : vector<32x128xf32> to vector<32x128xbf16>
    %c2 = arith.constant 2 : index
    %c0_17 = arith.constant 0 : index
    %c0_18 = arith.constant 0 : index
    %19 = vector.load %arg3[%c2, %c0_17, %c0_18] : memref<27x128x128xbf16, #tpu.memory_space<vmem>>, vector<1x128x128xbf16>
    %20 = vector.shape_cast %19 : vector<1x128x128xbf16> to vector<128x128xbf16>
    %cst_19 = arith.constant dense<0.000000e+00> : vector<32x128xf32>
    %21 = tpu.matmul %18, %20, %cst_19 {dimension_numbers = #tpu.dot_dimension_numbers<[1], [0], [0], [1], [0, 0, 1, 1], [], []>} : vector<32x128xbf16>, vector<128x128xbf16>, vector<32x128xf32> -> vector<32x128xf32>
    %22 = arith.addf %16, %21 : vector<32x128xf32>
    %c96 = arith.constant 96 : index
    %c0_20 = arith.constant 0 : index
    %23 = vector.load %arg15[%c96, %c0_20] : memref<864x128xf32, #tpu.memory_space<vmem>>, vector<32x128xf32>
    %24 = arith.truncf %23 : vector<32x128xf32> to vector<32x128xbf16>
    %c3 = arith.constant 3 : index
    %c0_21 = arith.constant 0 : index
    %c0_22 = arith.constant 0 : index
    %25 = vector.load %arg3[%c3, %c0_21, %c0_22] : memref<27x128x128xbf16, #tpu.memory_space<vmem>>, vector<1x128x128xbf16>
    %26 = vector.shape_cast %25 : vector<1x128x128xbf16> to vector<128x128xbf16>
    %cst_23 = arith.constant dense<0.000000e+00> : vector<32x128xf32>
    %27 = tpu.matmul %24, %26, %cst_23 {dimension_numbers = #tpu.dot_dimension_numbers<[1], [0], [0], [1], [0, 0, 1, 1], [], []>} : vector<32x128xbf16>, vector<128x128xbf16>, vector<32x128xf32> -> vector<32x128xf32>
    %28 = arith.addf %22, %27 : vector<32x128xf32>
    %c128 = arith.constant 128 : index
    %c0_24 = arith.constant 0 : index
    %29 = vector.load %arg15[%c128, %c0_24] : memref<864x128xf32, #tpu.memory_space<vmem>>, vector<32x128xf32>
    %30 = arith.truncf %29 : vector<32x128xf32> to vector<32x128xbf16>
    %c4 = arith.constant 4 : index
    %c0_25 = arith.constant 0 : index
    %c0_26 = arith.constant 0 : index
    %31 = vector.load %arg3[%c4, %c0_25, %c0_26] : memref<27x128x128xbf16, #tpu.memory_space<vmem>>, vector<1x128x128xbf16>
    %32 = vector.shape_cast %31 : vector<1x128x128xbf16> to vector<128x128xbf16>
    %cst_27 = arith.constant dense<0.000000e+00> : vector<32x128xf32>
    %33 = tpu.matmul %30, %32, %cst_27 {dimension_numbers = #tpu.dot_dimension_numbers<[1], [0], [0], [1], [0, 0, 1, 1], [], []>} : vector<32x128xbf16>, vector<128x128xbf16>, vector<32x128xf32> -> vector<32x128xf32>
    %34 = arith.addf %28, %33 : vector<32x128xf32>
    %c160 = arith.constant 160 : index
    %c0_28 = arith.constant 0 : index
    %35 = vector.load %arg15[%c160, %c0_28] : memref<864x128xf32, #tpu.memory_space<vmem>>, vector<32x128xf32>
    %36 = arith.truncf %35 : vector<32x128xf32> to vector<32x128xbf16>
    %c5 = arith.constant 5 : index
    %c0_29 = arith.constant 0 : index
    %c0_30 = arith.constant 0 : index
    %37 = vector.load %arg3[%c5, %c0_29, %c0_30] : memref<27x128x128xbf16, #tpu.memory_space<vmem>>, vector<1x128x128xbf16>
    %38 = vector.shape_cast %37 : vector<1x128x128xbf16> to vector<128x128xbf16>
    %cst_31 = arith.constant dense<0.000000e+00> : vector<32x128xf32>
    %39 = tpu.matmul %36, %38, %cst_31 {dimension_numbers = #tpu.dot_dimension_numbers<[1], [0], [0], [1], [0, 0, 1, 1], [], []>} : vector<32x128xbf16>, vector<128x128xbf16>, vector<32x128xf32> -> vector<32x128xf32>
    %40 = arith.addf %34, %39 : vector<32x128xf32>
    %c192 = arith.constant 192 : index
    %c0_32 = arith.constant 0 : index
    %41 = vector.load %arg15[%c192, %c0_32] : memref<864x128xf32, #tpu.memory_space<vmem>>, vector<32x128xf32>
    %42 = arith.truncf %41 : vector<32x128xf32> to vector<32x128xbf16>
    %c6 = arith.constant 6 : index
    %c0_33 = arith.constant 0 : index
    %c0_34 = arith.constant 0 : index
    %43 = vector.load %arg3[%c6, %c0_33, %c0_34] : memref<27x128x128xbf16, #tpu.memory_space<vmem>>, vector<1x128x128xbf16>
    %44 = vector.shape_cast %43 : vector<1x128x128xbf16> to vector<128x128xbf16>
    %cst_35 = arith.constant dense<0.000000e+00> : vector<32x128xf32>
    %45 = tpu.matmul %42, %44, %cst_35 {dimension_numbers = #tpu.dot_dimension_numbers<[1], [0], [0], [1], [0, 0, 1, 1], [], []>} : vector<32x128xbf16>, vector<128x128xbf16>, vector<32x128xf32> -> vector<32x128xf32>
    %46 = arith.addf %40, %45 : vector<32x128xf32>
    %c224 = arith.constant 224 : index
    %c0_36 = arith.constant 0 : index
    %47 = vector.load %arg15[%c224, %c0_36] : memref<864x128xf32, #tpu.memory_space<vmem>>, vector<32x128xf32>
    %48 = arith.truncf %47 : vector<32x128xf32> to vector<32x128xbf16>
    %c7 = arith.constant 7 : index
    %c0_37 = arith.constant 0 : index
    %c0_38 = arith.constant 0 : index
    %49 = vector.load %arg3[%c7, %c0_37, %c0_38] : memref<27x128x128xbf16, #tpu.memory_space<vmem>>, vector<1x128x128xbf16>
    %50 = vector.shape_cast %49 : vector<1x128x128xbf16> to vector<128x128xbf16>
    %cst_39 = arith.constant dense<0.000000e+00> : vector<32x128xf32>
    %51 = tpu.matmul %48, %50, %cst_39 {dimension_numbers = #tpu.dot_dimension_numbers<[1], [0], [0], [1], [0, 0, 1, 1], [], []>} : vector<32x128xbf16>, vector<128x128xbf16>, vector<32x128xf32> -> vector<32x128xf32>
    %52 = arith.addf %46, %51 : vector<32x128xf32>
    %c256 = arith.constant 256 : index
    %c0_40 = arith.constant 0 : index
    %53 = vector.load %arg15[%c256, %c0_40] : memref<864x128xf32, #tpu.memory_space<vmem>>, vector<32x128xf32>
    %54 = arith.truncf %53 : vector<32x128xf32> to vector<32x128xbf16>
    %c8 = arith.constant 8 : index
    %c0_41 = arith.constant 0 : index
    %c0_42 = arith.constant 0 : index
    %55 = vector.load %arg3[%c8, %c0_41, %c0_42] : memref<27x128x128xbf16, #tpu.memory_space<vmem>>, vector<1x128x128xbf16>
    %56 = vector.shape_cast %55 : vector<1x128x128xbf16> to vector<128x128xbf16>
    %cst_43 = arith.constant dense<0.000000e+00> : vector<32x128xf32>
    %57 = tpu.matmul %54, %56, %cst_43 {dimension_numbers = #tpu.dot_dimension_numbers<[1], [0], [0], [1], [0, 0, 1, 1], [], []>} : vector<32x128xbf16>, vector<128x128xbf16>, vector<32x128xf32> -> vector<32x128xf32>
    %58 = arith.addf %52, %57 : vector<32x128xf32>
    %c288 = arith.constant 288 : index
    %c0_44 = arith.constant 0 : index
    %59 = vector.load %arg15[%c288, %c0_44] : memref<864x128xf32, #tpu.memory_space<vmem>>, vector<32x128xf32>
    %60 = arith.truncf %59 : vector<32x128xf32> to vector<32x128xbf16>
    %c9 = arith.constant 9 : index
    %c0_45 = arith.constant 0 : index
    %c0_46 = arith.constant 0 : index
    %61 = vector.load %arg3[%c9, %c0_45, %c0_46] : memref<27x128x128xbf16, #tpu.memory_space<vmem>>, vector<1x128x128xbf16>
    %62 = vector.shape_cast %61 : vector<1x128x128xbf16> to vector<128x128xbf16>
    %cst_47 = arith.constant dense<0.000000e+00> : vector<32x128xf32>
    %63 = tpu.matmul %60, %62, %cst_47 {dimension_numbers = #tpu.dot_dimension_numbers<[1], [0], [0], [1], [0, 0, 1, 1], [], []>} : vector<32x128xbf16>, vector<128x128xbf16>, vector<32x128xf32> -> vector<32x128xf32>
    %64 = arith.addf %58, %63 : vector<32x128xf32>
    %c320 = arith.constant 320 : index
    %c0_48 = arith.constant 0 : index
    %65 = vector.load %arg15[%c320, %c0_48] : memref<864x128xf32, #tpu.memory_space<vmem>>, vector<32x128xf32>
    %66 = arith.truncf %65 : vector<32x128xf32> to vector<32x128xbf16>
    %c10 = arith.constant 10 : index
    %c0_49 = arith.constant 0 : index
    %c0_50 = arith.constant 0 : index
    %67 = vector.load %arg3[%c10, %c0_49, %c0_50] : memref<27x128x128xbf16, #tpu.memory_space<vmem>>, vector<1x128x128xbf16>
    %68 = vector.shape_cast %67 : vector<1x128x128xbf16> to vector<128x128xbf16>
    %cst_51 = arith.constant dense<0.000000e+00> : vector<32x128xf32>
    %69 = tpu.matmul %66, %68, %cst_51 {dimension_numbers = #tpu.dot_dimension_numbers<[1], [0], [0], [1], [0, 0, 1, 1], [], []>} : vector<32x128xbf16>, vector<128x128xbf16>, vector<32x128xf32> -> vector<32x128xf32>
    %70 = arith.addf %64, %69 : vector<32x128xf32>
    %c352 = arith.constant 352 : index
    %c0_52 = arith.constant 0 : index
    %71 = vector.load %arg15[%c352, %c0_52] : memref<864x128xf32, #tpu.memory_space<vmem>>, vector<32x128xf32>
    %72 = arith.truncf %71 : vector<32x128xf32> to vector<32x128xbf16>
    %c11 = arith.constant 11 : index
    %c0_53 = arith.constant 0 : index
    %c0_54 = arith.constant 0 : index
    %73 = vector.load %arg3[%c11, %c0_53, %c0_54] : memref<27x128x128xbf16, #tpu.memory_space<vmem>>, vector<1x128x128xbf16>
    %74 = vector.shape_cast %73 : vector<1x128x128xbf16> to vector<128x128xbf16>
    %cst_55 = arith.constant dense<0.000000e+00> : vector<32x128xf32>
    %75 = tpu.matmul %72, %74, %cst_55 {dimension_numbers = #tpu.dot_dimension_numbers<[1], [0], [0], [1], [0, 0, 1, 1], [], []>} : vector<32x128xbf16>, vector<128x128xbf16>, vector<32x128xf32> -> vector<32x128xf32>
    %76 = arith.addf %70, %75 : vector<32x128xf32>
    %c384 = arith.constant 384 : index
    %c0_56 = arith.constant 0 : index
    %77 = vector.load %arg15[%c384, %c0_56] : memref<864x128xf32, #tpu.memory_space<vmem>>, vector<32x128xf32>
    %78 = arith.truncf %77 : vector<32x128xf32> to vector<32x128xbf16>
    %c12 = arith.constant 12 : index
    %c0_57 = arith.constant 0 : index
    %c0_58 = arith.constant 0 : index
    %79 = vector.load %arg3[%c12, %c0_57, %c0_58] : memref<27x128x128xbf16, #tpu.memory_space<vmem>>, vector<1x128x128xbf16>
    %80 = vector.shape_cast %79 : vector<1x128x128xbf16> to vector<128x128xbf16>
    %cst_59 = arith.constant dense<0.000000e+00> : vector<32x128xf32>
    %81 = tpu.matmul %78, %80, %cst_59 {dimension_numbers = #tpu.dot_dimension_numbers<[1], [0], [0], [1], [0, 0, 1, 1], [], []>} : vector<32x128xbf16>, vector<128x128xbf16>, vector<32x128xf32> -> vector<32x128xf32>
    %82 = arith.addf %76, %81 : vector<32x128xf32>
    %c416 = arith.constant 416 : index
    %c0_60 = arith.constant 0 : index
    %83 = vector.load %arg15[%c416, %c0_60] : memref<864x128xf32, #tpu.memory_space<vmem>>, vector<32x128xf32>
    %84 = arith.truncf %83 : vector<32x128xf32> to vector<32x128xbf16>
    %c13 = arith.constant 13 : index
    %c0_61 = arith.constant 0 : index
    %c0_62 = arith.constant 0 : index
    %85 = vector.load %arg3[%c13, %c0_61, %c0_62] : memref<27x128x128xbf16, #tpu.memory_space<vmem>>, vector<1x128x128xbf16>
    %86 = vector.shape_cast %85 : vector<1x128x128xbf16> to vector<128x128xbf16>
    %cst_63 = arith.constant dense<0.000000e+00> : vector<32x128xf32>
    %87 = tpu.matmul %84, %86, %cst_63 {dimension_numbers = #tpu.dot_dimension_numbers<[1], [0], [0], [1], [0, 0, 1, 1], [], []>} : vector<32x128xbf16>, vector<128x128xbf16>, vector<32x128xf32> -> vector<32x128xf32>
    %88 = arith.addf %82, %87 : vector<32x128xf32>
    %c448 = arith.constant 448 : index
    %c0_64 = arith.constant 0 : index
    %89 = vector.load %arg15[%c448, %c0_64] : memref<864x128xf32, #tpu.memory_space<vmem>>, vector<32x128xf32>
    %90 = arith.truncf %89 : vector<32x128xf32> to vector<32x128xbf16>
    %c14 = arith.constant 14 : index
    %c0_65 = arith.constant 0 : index
    %c0_66 = arith.constant 0 : index
    %91 = vector.load %arg3[%c14, %c0_65, %c0_66] : memref<27x128x128xbf16, #tpu.memory_space<vmem>>, vector<1x128x128xbf16>
    %92 = vector.shape_cast %91 : vector<1x128x128xbf16> to vector<128x128xbf16>
    %cst_67 = arith.constant dense<0.000000e+00> : vector<32x128xf32>
    %93 = tpu.matmul %90, %92, %cst_67 {dimension_numbers = #tpu.dot_dimension_numbers<[1], [0], [0], [1], [0, 0, 1, 1], [], []>} : vector<32x128xbf16>, vector<128x128xbf16>, vector<32x128xf32> -> vector<32x128xf32>
    %94 = arith.addf %88, %93 : vector<32x128xf32>
    %c480 = arith.constant 480 : index
    %c0_68 = arith.constant 0 : index
    %95 = vector.load %arg15[%c480, %c0_68] : memref<864x128xf32, #tpu.memory_space<vmem>>, vector<32x128xf32>
    %96 = arith.truncf %95 : vector<32x128xf32> to vector<32x128xbf16>
    %c15 = arith.constant 15 : index
    %c0_69 = arith.constant 0 : index
    %c0_70 = arith.constant 0 : index
    %97 = vector.load %arg3[%c15, %c0_69, %c0_70] : memref<27x128x128xbf16, #tpu.memory_space<vmem>>, vector<1x128x128xbf16>
    %98 = vector.shape_cast %97 : vector<1x128x128xbf16> to vector<128x128xbf16>
    %cst_71 = arith.constant dense<0.000000e+00> : vector<32x128xf32>
    %99 = tpu.matmul %96, %98, %cst_71 {dimension_numbers = #tpu.dot_dimension_numbers<[1], [0], [0], [1], [0, 0, 1, 1], [], []>} : vector<32x128xbf16>, vector<128x128xbf16>, vector<32x128xf32> -> vector<32x128xf32>
    %100 = arith.addf %94, %99 : vector<32x128xf32>
    %c512 = arith.constant 512 : index
    %c0_72 = arith.constant 0 : index
    %101 = vector.load %arg15[%c512, %c0_72] : memref<864x128xf32, #tpu.memory_space<vmem>>, vector<32x128xf32>
    %102 = arith.truncf %101 : vector<32x128xf32> to vector<32x128xbf16>
    %c16 = arith.constant 16 : index
    %c0_73 = arith.constant 0 : index
    %c0_74 = arith.constant 0 : index
    %103 = vector.load %arg3[%c16, %c0_73, %c0_74] : memref<27x128x128xbf16, #tpu.memory_space<vmem>>, vector<1x128x128xbf16>
    %104 = vector.shape_cast %103 : vector<1x128x128xbf16> to vector<128x128xbf16>
    %cst_75 = arith.constant dense<0.000000e+00> : vector<32x128xf32>
    %105 = tpu.matmul %102, %104, %cst_75 {dimension_numbers = #tpu.dot_dimension_numbers<[1], [0], [0], [1], [0, 0, 1, 1], [], []>} : vector<32x128xbf16>, vector<128x128xbf16>, vector<32x128xf32> -> vector<32x128xf32>
    %106 = arith.addf %100, %105 : vector<32x128xf32>
    %c544 = arith.constant 544 : index
    %c0_76 = arith.constant 0 : index
    %107 = vector.load %arg15[%c544, %c0_76] : memref<864x128xf32, #tpu.memory_space<vmem>>, vector<32x128xf32>
    %108 = arith.truncf %107 : vector<32x128xf32> to vector<32x128xbf16>
    %c17 = arith.constant 17 : index
    %c0_77 = arith.constant 0 : index
    %c0_78 = arith.constant 0 : index
    %109 = vector.load %arg3[%c17, %c0_77, %c0_78] : memref<27x128x128xbf16, #tpu.memory_space<vmem>>, vector<1x128x128xbf16>
    %110 = vector.shape_cast %109 : vector<1x128x128xbf16> to vector<128x128xbf16>
    %cst_79 = arith.constant dense<0.000000e+00> : vector<32x128xf32>
    %111 = tpu.matmul %108, %110, %cst_79 {dimension_numbers = #tpu.dot_dimension_numbers<[1], [0], [0], [1], [0, 0, 1, 1], [], []>} : vector<32x128xbf16>, vector<128x128xbf16>, vector<32x128xf32> -> vector<32x128xf32>
    %112 = arith.addf %106, %111 : vector<32x128xf32>
    %c576 = arith.constant 576 : index
    %c0_80 = arith.constant 0 : index
    %113 = vector.load %arg15[%c576, %c0_80] : memref<864x128xf32, #tpu.memory_space<vmem>>, vector<32x128xf32>
    %114 = arith.truncf %113 : vector<32x128xf32> to vector<32x128xbf16>
    %c18 = arith.constant 18 : index
    %c0_81 = arith.constant 0 : index
    %c0_82 = arith.constant 0 : index
    %115 = vector.load %arg3[%c18, %c0_81, %c0_82] : memref<27x128x128xbf16, #tpu.memory_space<vmem>>, vector<1x128x128xbf16>
    %116 = vector.shape_cast %115 : vector<1x128x128xbf16> to vector<128x128xbf16>
    %cst_83 = arith.constant dense<0.000000e+00> : vector<32x128xf32>
    %117 = tpu.matmul %114, %116, %cst_83 {dimension_numbers = #tpu.dot_dimension_numbers<[1], [0], [0], [1], [0, 0, 1, 1], [], []>} : vector<32x128xbf16>, vector<128x128xbf16>, vector<32x128xf32> -> vector<32x128xf32>
    %118 = arith.addf %112, %117 : vector<32x128xf32>
    %c608 = arith.constant 608 : index
    %c0_84 = arith.constant 0 : index
    %119 = vector.load %arg15[%c608, %c0_84] : memref<864x128xf32, #tpu.memory_space<vmem>>, vector<32x128xf32>
    %120 = arith.truncf %119 : vector<32x128xf32> to vector<32x128xbf16>
    %c19 = arith.constant 19 : index
    %c0_85 = arith.constant 0 : index
    %c0_86 = arith.constant 0 : index
    %121 = vector.load %arg3[%c19, %c0_85, %c0_86] : memref<27x128x128xbf16, #tpu.memory_space<vmem>>, vector<1x128x128xbf16>
    %122 = vector.shape_cast %121 : vector<1x128x128xbf16> to vector<128x128xbf16>
    %cst_87 = arith.constant dense<0.000000e+00> : vector<32x128xf32>
    %123 = tpu.matmul %120, %122, %cst_87 {dimension_numbers = #tpu.dot_dimension_numbers<[1], [0], [0], [1], [0, 0, 1, 1], [], []>} : vector<32x128xbf16>, vector<128x128xbf16>, vector<32x128xf32> -> vector<32x128xf32>
    %124 = arith.addf %118, %123 : vector<32x128xf32>
    %c640 = arith.constant 640 : index
    %c0_88 = arith.constant 0 : index
    %125 = vector.load %arg15[%c640, %c0_88] : memref<864x128xf32, #tpu.memory_space<vmem>>, vector<32x128xf32>
    %126 = arith.truncf %125 : vector<32x128xf32> to vector<32x128xbf16>
    %c20 = arith.constant 20 : index
    %c0_89 = arith.constant 0 : index
    %c0_90 = arith.constant 0 : index
    %127 = vector.load %arg3[%c20, %c0_89, %c0_90] : memref<27x128x128xbf16, #tpu.memory_space<vmem>>, vector<1x128x128xbf16>
    %128 = vector.shape_cast %127 : vector<1x128x128xbf16> to vector<128x128xbf16>
    %cst_91 = arith.constant dense<0.000000e+00> : vector<32x128xf32>
    %129 = tpu.matmul %126, %128, %cst_91 {dimension_numbers = #tpu.dot_dimension_numbers<[1], [0], [0], [1], [0, 0, 1, 1], [], []>} : vector<32x128xbf16>, vector<128x128xbf16>, vector<32x128xf32> -> vector<32x128xf32>
    %130 = arith.addf %124, %129 : vector<32x128xf32>
    %c672 = arith.constant 672 : index
    %c0_92 = arith.constant 0 : index
    %131 = vector.load %arg15[%c672, %c0_92] : memref<864x128xf32, #tpu.memory_space<vmem>>, vector<32x128xf32>
    %132 = arith.truncf %131 : vector<32x128xf32> to vector<32x128xbf16>
    %c21 = arith.constant 21 : index
    %c0_93 = arith.constant 0 : index
    %c0_94 = arith.constant 0 : index
    %133 = vector.load %arg3[%c21, %c0_93, %c0_94] : memref<27x128x128xbf16, #tpu.memory_space<vmem>>, vector<1x128x128xbf16>
    %134 = vector.shape_cast %133 : vector<1x128x128xbf16> to vector<128x128xbf16>
    %cst_95 = arith.constant dense<0.000000e+00> : vector<32x128xf32>
    %135 = tpu.matmul %132, %134, %cst_95 {dimension_numbers = #tpu.dot_dimension_numbers<[1], [0], [0], [1], [0, 0, 1, 1], [], []>} : vector<32x128xbf16>, vector<128x128xbf16>, vector<32x128xf32> -> vector<32x128xf32>
    %136 = arith.addf %130, %135 : vector<32x128xf32>
    %c704 = arith.constant 704 : index
    %c0_96 = arith.constant 0 : index
    %137 = vector.load %arg15[%c704, %c0_96] : memref<864x128xf32, #tpu.memory_space<vmem>>, vector<32x128xf32>
    %138 = arith.truncf %137 : vector<32x128xf32> to vector<32x128xbf16>
    %c22 = arith.constant 22 : index
    %c0_97 = arith.constant 0 : index
    %c0_98 = arith.constant 0 : index
    %139 = vector.load %arg3[%c22, %c0_97, %c0_98] : memref<27x128x128xbf16, #tpu.memory_space<vmem>>, vector<1x128x128xbf16>
    %140 = vector.shape_cast %139 : vector<1x128x128xbf16> to vector<128x128xbf16>
    %cst_99 = arith.constant dense<0.000000e+00> : vector<32x128xf32>
    %141 = tpu.matmul %138, %140, %cst_99 {dimension_numbers = #tpu.dot_dimension_numbers<[1], [0], [0], [1], [0, 0, 1, 1], [], []>} : vector<32x128xbf16>, vector<128x128xbf16>, vector<32x128xf32> -> vector<32x128xf32>
    %142 = arith.addf %136, %141 : vector<32x128xf32>
    %c736 = arith.constant 736 : index
    %c0_100 = arith.constant 0 : index
    %143 = vector.load %arg15[%c736, %c0_100] : memref<864x128xf32, #tpu.memory_space<vmem>>, vector<32x128xf32>
    %144 = arith.truncf %143 : vector<32x128xf32> to vector<32x128xbf16>
    %c23 = arith.constant 23 : index
    %c0_101 = arith.constant 0 : index
    %c0_102 = arith.constant 0 : index
    %145 = vector.load %arg3[%c23, %c0_101, %c0_102] : memref<27x128x128xbf16, #tpu.memory_space<vmem>>, vector<1x128x128xbf16>
    %146 = vector.shape_cast %145 : vector<1x128x128xbf16> to vector<128x128xbf16>
    %cst_103 = arith.constant dense<0.000000e+00> : vector<32x128xf32>
    %147 = tpu.matmul %144, %146, %cst_103 {dimension_numbers = #tpu.dot_dimension_numbers<[1], [0], [0], [1], [0, 0, 1, 1], [], []>} : vector<32x128xbf16>, vector<128x128xbf16>, vector<32x128xf32> -> vector<32x128xf32>
    %148 = arith.addf %142, %147 : vector<32x128xf32>
    %c768 = arith.constant 768 : index
    %c0_104 = arith.constant 0 : index
    %149 = vector.load %arg15[%c768, %c0_104] : memref<864x128xf32, #tpu.memory_space<vmem>>, vector<32x128xf32>
    %150 = arith.truncf %149 : vector<32x128xf32> to vector<32x128xbf16>
    %c24 = arith.constant 24 : index
    %c0_105 = arith.constant 0 : index
    %c0_106 = arith.constant 0 : index
    %151 = vector.load %arg3[%c24, %c0_105, %c0_106] : memref<27x128x128xbf16, #tpu.memory_space<vmem>>, vector<1x128x128xbf16>
    %152 = vector.shape_cast %151 : vector<1x128x128xbf16> to vector<128x128xbf16>
    %cst_107 = arith.constant dense<0.000000e+00> : vector<32x128xf32>
    %153 = tpu.matmul %150, %152, %cst_107 {dimension_numbers = #tpu.dot_dimension_numbers<[1], [0], [0], [1], [0, 0, 1, 1], [], []>} : vector<32x128xbf16>, vector<128x128xbf16>, vector<32x128xf32> -> vector<32x128xf32>
    %154 = arith.addf %148, %153 : vector<32x128xf32>
    %c800 = arith.constant 800 : index
    %c0_108 = arith.constant 0 : index
    %155 = vector.load %arg15[%c800, %c0_108] : memref<864x128xf32, #tpu.memory_space<vmem>>, vector<32x128xf32>
    %156 = arith.truncf %155 : vector<32x128xf32> to vector<32x128xbf16>
    %c25 = arith.constant 25 : index
    %c0_109 = arith.constant 0 : index
    %c0_110 = arith.constant 0 : index
    %157 = vector.load %arg3[%c25, %c0_109, %c0_110] : memref<27x128x128xbf16, #tpu.memory_space<vmem>>, vector<1x128x128xbf16>
    %158 = vector.shape_cast %157 : vector<1x128x128xbf16> to vector<128x128xbf16>
    %cst_111 = arith.constant dense<0.000000e+00> : vector<32x128xf32>
    %159 = tpu.matmul %156, %158, %cst_111 {dimension_numbers = #tpu.dot_dimension_numbers<[1], [0], [0], [1], [0, 0, 1, 1], [], []>} : vector<32x128xbf16>, vector<128x128xbf16>, vector<32x128xf32> -> vector<32x128xf32>
    %160 = arith.addf %154, %159 : vector<32x128xf32>
    %c832 = arith.constant 832 : index
    %c0_112 = arith.constant 0 : index
    %161 = vector.load %arg15[%c832, %c0_112] : memref<864x128xf32, #tpu.memory_space<vmem>>, vector<32x128xf32>
    %162 = arith.truncf %161 : vector<32x128xf32> to vector<32x128xbf16>
    %c26 = arith.constant 26 : index
    %c0_113 = arith.constant 0 : index
    %c0_114 = arith.constant 0 : index
    %163 = vector.load %arg3[%c26, %c0_113, %c0_114] : memref<27x128x128xbf16, #tpu.memory_space<vmem>>, vector<1x128x128xbf16>
    %164 = vector.shape_cast %163 : vector<1x128x128xbf16> to vector<128x128xbf16>
    %cst_115 = arith.constant dense<0.000000e+00> : vector<32x128xf32>
    %165 = tpu.matmul %162, %164, %cst_115 {dimension_numbers = #tpu.dot_dimension_numbers<[1], [0], [0], [1], [0, 0, 1, 1], [], []>} : vector<32x128xbf16>, vector<128x128xbf16>, vector<32x128xf32> -> vector<32x128xf32>
    %166 = arith.addf %160, %165 : vector<32x128xf32>
    %cst_116 = arith.constant dense<0.000000e+00> : vector<128xf32>
    %167 = vector.multi_reduction <add>, %166, %cst_116 [0] : vector<32x128xf32> to vector<128xf32>
    %168 = vector.shape_cast %167 : vector<128xf32> to vector<1x128xf32>
    %cst_117 = arith.constant 3.200000e+01 : f32
    %169 = vector.broadcast %cst_117 : f32 to vector<1x128xf32>
    %170 = arith.divf %168, %169 : vector<1x128xf32>
    %171 = vector.broadcast %170 : vector<1x128xf32> to vector<32x128xf32>
    %172 = arith.subf %166, %171 : vector<32x128xf32>
    %173 = vector.broadcast %170 : vector<1x128xf32> to vector<32x128xf32>
    %174 = arith.subf %166, %173 : vector<32x128xf32>
    %175 = arith.mulf %172, %174 : vector<32x128xf32>
    %cst_118 = arith.constant dense<0.000000e+00> : vector<128xf32>
    %176 = vector.multi_reduction <add>, %175, %cst_118 [0] : vector<32x128xf32> to vector<128xf32>
    %177 = vector.shape_cast %176 : vector<128xf32> to vector<1x128xf32>
    %cst_119 = arith.constant 3.200000e+01 : f32
    %178 = vector.broadcast %cst_119 : f32 to vector<1x128xf32>
    %179 = arith.divf %177, %178 : vector<1x128xf32>
    %c0_120 = arith.constant 0 : index
    %c0_121 = arith.constant 0 : index
    %180 = vector.load %arg4[%c0_120, %c0_121] : memref<1x128xf32, #tpu.memory_space<vmem>>, vector<1x128xf32>
    %cst_122 = arith.constant 9.99999974E-5 : f32
    %181 = vector.broadcast %cst_122 : f32 to vector<1x128xf32>
    %182 = arith.addf %179, %181 : vector<1x128xf32>
    %183 = math.rsqrt %182 : vector<1x128xf32>
    %184 = arith.mulf %180, %183 : vector<1x128xf32>
    %c0_123 = arith.constant 0 : index
    %c0_124 = arith.constant 0 : index
    %185 = vector.load %arg5[%c0_123, %c0_124] : memref<1x128xf32, #tpu.memory_space<vmem>>, vector<1x128xf32>
    %186 = arith.mulf %170, %184 : vector<1x128xf32>
    %187 = arith.subf %185, %186 : vector<1x128xf32>
    %188 = vector.broadcast %184 : vector<1x128xf32> to vector<32x128xf32>
    %189 = arith.mulf %166, %188 : vector<32x128xf32>
    %190 = vector.broadcast %187 : vector<1x128xf32> to vector<32x128xf32>
    %191 = arith.addf %189, %190 : vector<32x128xf32>
    %cst_125 = arith.constant 0.000000e+00 : f32
    %192 = vector.broadcast %cst_125 : f32 to vector<32x128xf32>
    %193 = arith.maximumf %191, %192 : vector<32x128xf32>
    %cst_126 = arith.constant 0.000000e+00 : f32
    %194 = vector.broadcast %cst_126 : f32 to vector<128x128xf32>
    %c0_127 = arith.constant 0 : index
    %c0_128 = arith.constant 0 : index
    %195 = vector.load %arg16[%c0_127, %c0_128] : memref<128x128xf32, #tpu.memory_space<vmem>>, vector<128x128xf32>
    tpu.vector_store %arg16[%c0_127, %c0_128], %194 {strides = array<i32>} : memref<128x128xf32, #tpu.memory_space<vmem>>, vector<128x128xf32>,
    %c0_129 = arith.constant 0 : index
    %c0_130 = arith.constant 0 : index
    %196 = vector.load %arg16[%c0_129, %c0_130] : memref<128x128xf32, #tpu.memory_space<vmem>>, vector<32x128xf32>
    tpu.vector_store %arg16[%c0_129, %c0_130], %193 {strides = array<i32>} : memref<128x128xf32, #tpu.memory_space<vmem>>, vector<32x128xf32>,
    %c0_131 = arith.constant 0 : index
    %c0_132 = arith.constant 0 : index
    %197 = vector.load %arg6[%c0_131, %c0_132] : memref<64x128xf32, #tpu.memory_space<vmem>>, vector<64x128xf32>
    %c0_133 = arith.constant 0 : index
    %c0_134 = arith.constant 0 : index
    %198 = vector.load %arg16[%c0_133, %c0_134] : memref<128x128xf32, #tpu.memory_space<vmem>>, vector<128x128xf32>
    %cst_135 = arith.constant dense<0.000000e+00> : vector<64x128xf32>
    %199 = tpu.matmul %197, %198, %cst_135 {dimension_numbers = #tpu.dot_dimension_numbers<[1], [0], [0], [1], [0, 0, 1, 1], [], []>} : vector<64x128xf32>, vector<128x128xf32>, vector<64x128xf32> -> vector<64x128xf32>
    %200 = arith.truncf %199 : vector<64x128xf32> to vector<64x128xbf16>
    %c0_136 = arith.constant 0 : index
    %c0_137 = arith.constant 0 : index
    %201 = vector.load %arg7[%c0_136, %c0_137] : memref<128x128xbf16, #tpu.memory_space<vmem>>, vector<128x128xbf16>
    %cst_138 = arith.constant dense<0.000000e+00> : vector<64x128xf32>
    %202 = tpu.matmul %200, %201, %cst_138 {dimension_numbers = #tpu.dot_dimension_numbers<[1], [0], [0], [1], [0, 0, 1, 1], [], []>} : vector<64x128xbf16>, vector<128x128xbf16>, vector<64x128xf32> -> vector<64x128xf32>
    %c0_139 = arith.constant 0 : index
    %c0_140 = arith.constant 0 : index
    %203 = vector.load %arg8[%c0_139, %c0_140] : memref<1x128xf32, #tpu.memory_space<vmem>>, vector<1x128xf32>
    %204 = vector.broadcast %203 : vector<1x128xf32> to vector<64x128xf32>
    %205 = arith.addf %202, %204 : vector<64x128xf32>
    %cst_141 = arith.constant dense<0.000000e+00> : vector<128xf32>
    %206 = vector.multi_reduction <add>, %205, %cst_141 [0] : vector<64x128xf32> to vector<128xf32>
    %207 = vector.shape_cast %206 : vector<128xf32> to vector<1x128xf32>
    %cst_142 = arith.constant 6.400000e+01 : f32
    %208 = vector.broadcast %cst_142 : f32 to vector<1x128xf32>
    %209 = arith.divf %207, %208 : vector<1x128xf32>
    %210 = vector.broadcast %209 : vector<1x128xf32> to vector<64x128xf32>
    %211 = arith.subf %205, %210 : vector<64x128xf32>
    %212 = vector.broadcast %209 : vector<1x128xf32> to vector<64x128xf32>
    %213 = arith.subf %205, %212 : vector<64x128xf32>
    %214 = arith.mulf %211, %213 : vector<64x128xf32>
    %cst_143 = arith.constant dense<0.000000e+00> : vector<128xf32>
    %215 = vector.multi_reduction <add>, %214, %cst_143 [0] : vector<64x128xf32> to vector<128xf32>
    %216 = vector.shape_cast %215 : vector<128xf32> to vector<1x128xf32>
    %cst_144 = arith.constant 6.400000e+01 : f32
    %217 = vector.broadcast %cst_144 : f32 to vector<1x128xf32>
    %218 = arith.divf %216, %217 : vector<1x128xf32>
    %c0_145 = arith.constant 0 : index
    %c0_146 = arith.constant 0 : index
    %219 = vector.load %arg9[%c0_145, %c0_146] : memref<1x128xf32, #tpu.memory_space<vmem>>, vector<1x128xf32>
    %cst_147 = arith.constant 9.99999974E-6 : f32
    %220 = vector.broadcast %cst_147 : f32 to vector<1x128xf32>
    %221 = arith.addf %218, %220 : vector<1x128xf32>
    %222 = math.rsqrt %221 : vector<1x128xf32>
    %223 = arith.mulf %219, %222 : vector<1x128xf32>
    %c0_148 = arith.constant 0 : index
    %c0_149 = arith.constant 0 : index
    %224 = vector.load %arg10[%c0_148, %c0_149] : memref<1x128xf32, #tpu.memory_space<vmem>>, vector<1x128xf32>
    %225 = arith.mulf %209, %223 : vector<1x128xf32>
    %226 = arith.subf %224, %225 : vector<1x128xf32>
    %227 = vector.broadcast %223 : vector<1x128xf32> to vector<64x128xf32>
    %228 = arith.mulf %205, %227 : vector<64x128xf32>
    %229 = vector.broadcast %226 : vector<1x128xf32> to vector<64x128xf32>
    %230 = arith.addf %228, %229 : vector<64x128xf32>
    %cst_150 = arith.constant 0.000000e+00 : f32
    %231 = vector.broadcast %cst_150 : f32 to vector<64x128xf32>
    %232 = arith.cmpf ogt, %230, %231 : vector<64x128xf32>
    %cst_151 = arith.constant 2.000000e-01 : f32
    %233 = vector.broadcast %cst_151 : f32 to vector<64x128xf32>
    %234 = arith.mulf %233, %230 : vector<64x128xf32>
    %235 = arith.select %232, %230, %234 : vector<64x128xi1>, vector<64x128xf32>
    %c0_152 = arith.constant 0 : index
    %c0_153 = arith.constant 0 : index
    %236 = vector.load %arg14[%c0_152, %c0_153] : memref<64x128xf32, #tpu.memory_space<vmem>>, vector<64x128xf32>
    tpu.vector_store %arg14[%c0_152, %c0_153], %235 {strides = array<i32>} : memref<64x128xf32, #tpu.memory_space<vmem>>, vector<64x128xf32>,
    %237 = arith.addf %235, %199 : vector<64x128xf32>
    %238 = arith.truncf %237 : vector<64x128xf32> to vector<64x128xbf16>
    %c0_154 = arith.constant 0 : index
    %c0_155 = arith.constant 0 : index
    %239 = vector.load %arg11[%c0_154, %c0_155] : memref<128x128xbf16, #tpu.memory_space<vmem>>, vector<128x128xbf16>
    %cst_156 = arith.constant dense<0.000000e+00> : vector<64x128xf32>
    %240 = tpu.matmul %238, %239, %cst_156 {dimension_numbers = #tpu.dot_dimension_numbers<[1], [0], [0], [1], [0, 0, 1, 1], [], []>} : vector<64x128xbf16>, vector<128x128xbf16>, vector<64x128xf32> -> vector<64x128xf32>
    %c0_157 = arith.constant 0 : index
    %c0_158 = arith.constant 0 : index
    %241 = vector.load %arg12[%c0_157, %c0_158] : memref<1x128xf32, #tpu.memory_space<vmem>>, vector<1x128xf32>
    %242 = vector.broadcast %241 : vector<1x128xf32> to vector<64x128xf32>
    %243 = arith.addf %240, %242 : vector<64x128xf32>
    %c0_159 = arith.constant 0 : index
    %c0_160 = arith.constant 0 : index
    %244 = vector.load %arg13[%c0_159, %c0_160] : memref<64x128xf32, #tpu.memory_space<vmem>>, vector<64x128xf32>
    tpu.vector_store %arg13[%c0_159, %c0_160], %243 {strides = array<i32>} : memref<64x128xf32, #tpu.memory_space<vmem>>, vector<64x128xf32>,
    return
  }
  func.func @transform_0(%arg0: i32) -> (i32, i32) {
    %c0_i32 = arith.constant 0 : i32
    %c0_i32_0 = arith.constant 0 : i32
    %c0_i32_1 = arith.constant 0 : i32
    return %c0_i32, %c0_i32_0 : i32, i32
  }
  func.func @transform_1(%arg0: i32) -> (i32, i32) {
    %c0_i32 = arith.constant 0 : i32
    %c0_i32_0 = arith.constant 0 : i32
    %c0_i32_1 = arith.constant 0 : i32
    return %c0_i32, %c0_i32_0 : i32, i32
  }
  func.func @transform_2(%arg0: i32) -> (i32, i32, i32) {
    %c0_i32 = arith.constant 0 : i32
    %c0_i32_0 = arith.constant 0 : i32
    %c0_i32_1 = arith.constant 0 : i32
    %c0_i32_2 = arith.constant 0 : i32
    return %c0_i32, %c0_i32_0, %c0_i32_1 : i32, i32, i32
  }
  func.func @transform_3(%arg0: i32) -> (i32, i32) {
    %c0_i32 = arith.constant 0 : i32
    %c0_i32_0 = arith.constant 0 : i32
    %c0_i32_1 = arith.constant 0 : i32
    return %c0_i32, %c0_i32_0 : i32, i32
  }
  func.func @transform_4(%arg0: i32) -> (i32, i32) {
    %c0_i32 = arith.constant 0 : i32
    %c0_i32_0 = arith.constant 0 : i32
    %c0_i32_1 = arith.constant 0 : i32
    return %c0_i32, %c0_i32_0 : i32, i32
  }
  func.func @transform_5(%arg0: i32) -> (i32, i32) {
    %c0_i32 = arith.constant 0 : i32
    %c0_i32_0 = arith.constant 0 : i32
    %c0_i32_1 = arith.constant 0 : i32
    return %c0_i32, %c0_i32_0 : i32, i32
  }
  func.func @transform_6(%arg0: i32) -> (i32, i32) {
    %c0_i32 = arith.constant 0 : i32
    %c0_i32_0 = arith.constant 0 : i32
    %c0_i32_1 = arith.constant 0 : i32
    return %c0_i32, %c0_i32_0 : i32, i32
  }
  func.func @transform_7(%arg0: i32) -> (i32, i32) {
    %c0_i32 = arith.constant 0 : i32
    %c0_i32_0 = arith.constant 0 : i32
    %c0_i32_1 = arith.constant 0 : i32
    return %c0_i32, %c0_i32_0 : i32, i32
  }
  func.func @transform_8(%arg0: i32) -> (i32, i32) {
    %c0_i32 = arith.constant 0 : i32
    %c0_i32_0 = arith.constant 0 : i32
    %c0_i32_1 = arith.constant 0 : i32
    return %c0_i32, %c0_i32_0 : i32, i32
  }
  func.func @transform_9(%arg0: i32) -> (i32, i32) {
    %c0_i32 = arith.constant 0 : i32
    %c0_i32_0 = arith.constant 0 : i32
    %c0_i32_1 = arith.constant 0 : i32
    return %c0_i32, %c0_i32_0 : i32, i32
  }
  func.func @transform_10(%arg0: i32) -> (i32, i32) {
    %c0_i32 = arith.constant 0 : i32
    %c0_i32_0 = arith.constant 0 : i32
    %c0_i32_1 = arith.constant 0 : i32
    return %c0_i32, %c0_i32_0 : i32, i32
  }
  func.func @transform_11(%arg0: i32) -> (i32, i32) {
    %c0_i32 = arith.constant 0 : i32
    %c0_i32_0 = arith.constant 0 : i32
    %c0_i32_1 = arith.constant 0 : i32
    return %c0_i32, %c0_i32_0 : i32, i32
  }
  func.func @transform_12(%arg0: i32) -> (i32, i32) {
    %c0_i32 = arith.constant 0 : i32
    %c0_i32_0 = arith.constant 0 : i32
    %c0_i32_1 = arith.constant 0 : i32
    return %c0_i32, %c0_i32_0 : i32, i32
  }
  func.func @transform_13(%arg0: i32) -> (i32, i32) {
    %c0_i32 = arith.constant 0 : i32
    %c0_i32_0 = arith.constant 0 : i32
    %c0_i32_1 = arith.constant 0 : i32
    return %c0_i32, %c0_i32_0 : i32, i32
  }
}

</mosaic_0001>

<llo_original>
// kernel: tpu_custom_call.1
$region0: #{tpu_custom_call.1}
  #allocation0 [shape = 'u32[]', space=smem, size = 0x4, offset = 0x4, fixed_abs, tag = 'smem constant byte address 0x4 - core index']
  #allocation1 [shape = 'u32[144,128]{1,0:T(1,128)}', space=vmem, size = 0x12000, scoped, tag = 'internal scratch']
  #allocation2 [shape = 'f32[864,128]{1,0:T(8,128)}', space=vmem, size = 0x6c000, scoped, tag = 'scratch operand']
  #allocation3 [shape = 'f32[128,128]{1,0:T(8,128)}', space=vmem, size = 0x10000, scoped, tag = 'scratch operand']
  %s0 = inlined_call_operand.hbm [shape: f32[864,128], index: 0, kind: input, shape index: {}]
  %s1 = inlined_call_operand.hbm [shape: f32[128,128], index: 1, kind: input, shape index: {}]
  %s2 = inlined_call_operand.hbm [shape: bf16[27,128,128], index: 2, kind: input, shape index: {}]
  %s3 = inlined_call_operand.vmem [shape: f32[1,128], index: 3, kind: input, shape index: {}]
  %s4 = inlined_call_operand.vmem [shape: f32[1,128], index: 4, kind: input, shape index: {}]
  %s5 = inlined_call_operand.hbm [shape: f32[64,128], index: 5, kind: input, shape index: {}]
  %s6 = inlined_call_operand.hbm [shape: bf16[128,128], index: 6, kind: input, shape index: {}]
  %s7 = inlined_call_operand.vmem [shape: f32[1,128], index: 7, kind: input, shape index: {}]
  %s8 = inlined_call_operand.vmem [shape: f32[1,128], index: 8, kind: input, shape index: {}]
  %s9 = inlined_call_operand.vmem [shape: f32[1,128], index: 9, kind: input, shape index: {}]
  %s10 = inlined_call_operand.hbm [shape: bf16[128,128], index: 10, kind: input, shape index: {}]
  %s11 = inlined_call_operand.vmem [shape: f32[1,128], index: 11, kind: input, shape index: {}]
  %s12 = inlined_call_operand.hbm [shape: f32[64,128], index: 12, kind: output, shape index: {0}]
  %s13 = inlined_call_operand.hbm [shape: f32[64,128], index: 13, kind: output, shape index: {1}]
  %14 = xla_tuple %s12, %s13
  %s15 = sld [smem:[#allocation0]]
  $region90: #{tpu_custom_call.1} parent=0
    _
  %s17 = ssub.s32 1, %s15
  %s18 = scalar_select 0, %s17, %s15
  $region1: #{tpu_custom_call.1} parent=0
    #allocation4 [shape = 'u8[442368]{0}', space=vmem, size = 0x6c000, scoped, tag = 'input window, operand 0, single buffered']
    #allocation5 [shape = 's32[1]{0}', space=sflag, size = 0x4, scoped, tag = 'scoped memory for tpu_custom_call.1']
    #allocation6 [shape = 's32[1]{0}', space=sflag, size = 0x4, scoped, tag = 'scoped memory for tpu_custom_call.1']
    #allocation7 [shape = 'u8[65536]{0}', space=vmem, size = 0x10000, scoped, tag = 'input window, operand 1, single buffered']
    #allocation8 [shape = 's32[1]{0}', space=sflag, size = 0x4, scoped, tag = 'scoped memory for tpu_custom_call.1']
    #allocation9 [shape = 'u8[884736]{0}', space=vmem, size = 0xd8000, scoped, tag = 'input window, operand 2, single buffered']
    #allocation10 [shape = 'u8[32768]{0}', space=vmem, size = 0x8000, scoped, tag = 'input window, operand 5, single buffered']
    #allocation11 [shape = 's32[1]{0}', space=sflag, size = 0x4, scoped, tag = 'scoped memory for tpu_custom_call.1']
    #allocation12 [shape = 'u8[32768]{0}', space=vmem, size = 0x8000, scoped, tag = 'input window, operand 6, single buffered']
    #allocation13 [shape = 'u8[32768]{0}', space=vmem, size = 0x8000, scoped, tag = 'input window, operand 10, single buffered']
    #allocation14 [shape = 's32[1]{0}', space=sflag, size = 0x4, scoped, tag = 'scoped memory for tpu_custom_call.1']
    #allocation15 [shape = 'u8[32768]{0}', space=vmem, size = 0x8000, scoped, tag = 'output window, operand 0, single buffered']
    #allocation16 [shape = 'u8[32768]{0}', space=vmem, size = 0x8000, scoped, tag = 'output window, operand 1, single buffered']
    #allocation17 [shape = 's32[1]{0}', space=sflag, size = 0x4, scoped, tag = 'scoped memory for tpu_custom_call.1']
    %19 = vsyncpa [#allocation5], 0
    %20 = vsyncpa [#allocation8], 0
    %21 = vsyncpa [#allocation11], 0
    %22 = vsyncpa [#allocation14], 0
    %23 = vsyncpa [#allocation6], 0
    %24 = vsyncpa [#allocation17], 0
    // Predicated region
    $region2: #{tpu_custom_call.1} parent=1 // pred_check
      _
    $region3: #{tpu_custom_call.1} parent=1 // pred_check_branch
      %26 = sbr.rel (0) target = $region5
    $region4: #{tpu_custom_call.1} parent=1 // pred_region
      %s28 = ssub.s32 13824, 13824
      %29 = vsyncadd [#allocation5], %s28
      %s30 = sshll.u32 [#allocation4], 4
      %s31 = int_to_ptr.vmem [resolvable:$true] %s30
      %36 = dma.hbm_to_vmem [thread:$0]  %s0, 13824, %s31, [#allocation5], 128, 128, 8
    $region5: #{tpu_custom_call.1} parent=1 // pred_fallthru
      _
    // Predicated region
    $region6: #{tpu_custom_call.1} parent=1 // pred_check
      _
    $region7: #{tpu_custom_call.1} parent=1 // pred_check_branch
      %38 = sbr.rel (0) target = $region9
    $region8: #{tpu_custom_call.1} parent=1 // pred_region
      %s40 = ssub.s32 2048, 2048
      %41 = vsyncadd [#allocation8], %s40
      %s42 = sshll.u32 [#allocation7], 4
      %s43 = int_to_ptr.vmem [resolvable:$true] %s42
      %48 = dma.hbm_to_vmem [thread:$0]  %s1, 2048, %s43, [#allocation8], 128, 128, 8
    $region9: #{tpu_custom_call.1} parent=1 // pred_fallthru
      _
    // Predicated region
    $region10: #{tpu_custom_call.1} parent=1 // pred_check
      _
    $region11: #{tpu_custom_call.1} parent=1 // pred_check_branch
      %50 = sbr.rel (0) target = $region13
    $region12: #{tpu_custom_call.1} parent=1 // pred_region
      %s52 = ssub.s32 27648, 27648
      %53 = vsyncadd [#allocation8], %s52
      %s54 = sshll.u32 [#allocation9], 4
      %s55 = int_to_ptr.vmem [resolvable:$true] %s54
      %60 = dma.hbm_to_vmem [thread:$0]  %s2, 27648, %s55, [#allocation8], 64, 64, 4
    $region13: #{tpu_custom_call.1} parent=1 // pred_fallthru
      _
    // Predicated region
    $region14: #{tpu_custom_call.1} parent=1 // pred_check
      _
    $region15: #{tpu_custom_call.1} parent=1 // pred_check_branch
      %62 = sbr.rel (0) target = $region17
    $region16: #{tpu_custom_call.1} parent=1 // pred_region
      _
    $region17: #{tpu_custom_call.1} parent=1 // pred_fallthru
      _
    // Predicated region
    $region18: #{tpu_custom_call.1} parent=1 // pred_check
      _
    $region19: #{tpu_custom_call.1} parent=1 // pred_check_branch
      %64 = sbr.rel (0) target = $region21
    $region20: #{tpu_custom_call.1} parent=1 // pred_region
      _
    $region21: #{tpu_custom_call.1} parent=1 // pred_fallthru
      _
    // Predicated region
    $region22: #{tpu_custom_call.1} parent=1 // pred_check
      _
    $region23: #{tpu_custom_call.1} parent=1 // pred_check_branch
      %66 = sbr.rel (0) target = $region25
    $region24: #{tpu_custom_call.1} parent=1 // pred_region
      %s68 = ssub.s32 1024, 1024
      %69 = vsyncadd [#allocation11], %s68
      %s70 = sshll.u32 [#allocation10], 4
      %s71 = int_to_ptr.vmem [resolvable:$true] %s70
      %76 = dma.hbm_to_vmem [thread:$0]  %s5, 1024, %s71, [#allocation11], 128, 128, 8
    $region25: #{tpu_custom_call.1} parent=1 // pred_fallthru
      _
    // Predicated region
    $region26: #{tpu_custom_call.1} parent=1 // pred_check
      _
    $region27: #{tpu_custom_call.1} parent=1 // pred_check_branch
      %78 = sbr.rel (0) target = $region29
    $region28: #{tpu_custom_call.1} parent=1 // pred_region
      %s80 = ssub.s32 1024, 1024
      %81 = vsyncadd [#allocation11], %s80
      %s82 = sshll.u32 [#allocation12], 4
      %s83 = int_to_ptr.vmem [resolvable:$true] %s82
      %88 = dma.hbm_to_vmem [thread:$0]  %s6, 1024, %s83, [#allocation11], 64, 64, 4
    $region29: #{tpu_custom_call.1} parent=1 // pred_fallthru
      _
    // Predicated region
    $region30: #{tpu_custom_call.1} parent=1 // pred_check
      _
    $region31: #{tpu_custom_call.1} parent=1 // pred_check_branch
      %90 = sbr.rel (0) target = $region33
    $region32: #{tpu_custom_call.1} parent=1 // pred_region
      _
    $region33: #{tpu_custom_call.1} parent=1 // pred_fallthru
      _
    // Predicated region
    $region34: #{tpu_custom_call.1} parent=1 // pred_check
      _
    $region35: #{tpu_custom_call.1} parent=1 // pred_check_branch
      %92 = sbr.rel (0) target = $region37
    $region36: #{tpu_custom_call.1} parent=1 // pred_region
      _
    $region37: #{tpu_custom_call.1} parent=1 // pred_fallthru
      _
    // Predicated region
    $region38: #{tpu_custom_call.1} parent=1 // pred_check
      _
    $region39: #{tpu_custom_call.1} parent=1 // pred_check_branch
      %94 = sbr.rel (0) target = $region41
    $region40: #{tpu_custom_call.1} parent=1 // pred_region
      _
    $region41: #{tpu_custom_call.1} parent=1 // pred_fallthru
      _
    // Predicated region
    $region42: #{tpu_custom_call.1} parent=1 // pred_check
      _
    $region43: #{tpu_custom_call.1} parent=1 // pred_check_branch
      %96 = sbr.rel (0) target = $region45
    $region44: #{tpu_custom_call.1} parent=1 // pred_region
      %s98 = ssub.s32 1024, 1024
      %99 = vsyncadd [#allocation14], %s98
      %s100 = sshll.u32 [#allocation13], 4
      %s101 = int_to_ptr.vmem [resolvable:$true] %s100
      %106 = dma.hbm_to_vmem [thread:$0]  %s10, 1024, %s101, [#allocation14], 64, 64, 4
    $region45: #{tpu_custom_call.1} parent=1 // pred_fallthru
      _
    // Predicated region
    $region46: #{tpu_custom_call.1} parent=1 // pred_check
      _
    $region47: #{tpu_custom_call.1} parent=1 // pred_check_branch
      %108 = sbr.rel (0) target = $region49
    $region48: #{tpu_custom_call.1} parent=1 // pred_region
      _
    $region49: #{tpu_custom_call.1} parent=1 // pred_fallthru
      _
    // Predicated region
    $region50: #{tpu_custom_call.1} parent=1 // pred_check
      _
    $region51: #{tpu_custom_call.1} parent=1 // pred_check_branch
      %110 = sbr.rel (0) target = $region53
    $region52: #{tpu_custom_call.1} parent=1 // pred_region
      %111 = dma.done [#allocation5], 13824
    $region53: #{tpu_custom_call.1} parent=1 // pred_fallthru
      _
    // Predicated region
    $region54: #{tpu_custom_call.1} parent=1 // pred_check
      _
    $region55: #{tpu_custom_call.1} parent=1 // pred_check_branch
      %113 = sbr.rel (0) target = $region57
    $region56: #{tpu_custom_call.1} parent=1 // pred_region
      %114 = dma.done [#allocation8], 2048
    $region57: #{tpu_custom_call.1} parent=1 // pred_fallthru
      _
    // Predicated region
    $region58: #{tpu_custom_call.1} parent=1 // pred_check
      _
    $region59: #{tpu_custom_call.1} parent=1 // pred_check_branch
      %116 = sbr.rel (0) target = $region61
    $region60: #{tpu_custom_call.1} parent=1 // pred_region
      %117 = dma.done [#allocation8], 27648
    $region61: #{tpu_custom_call.1} parent=1 // pred_fallthru
      _
    // Predicated region
    $region62: #{tpu_custom_call.1} parent=1 // pred_check
      _
    $region63: #{tpu_custom_call.1} parent=1 // pred_check_branch
      %119 = sbr.rel (0) target = $region65
    $region64: #{tpu_custom_call.1} parent=1 // pred_region
      %120 = dma.done [#allocation11], 1024
    $region65: #{tpu_custom_call.1} parent=1 // pred_fallthru
      _
    // Predicated region
    $region66: #{tpu_custom_call.1} parent=1 // pred_check
      _
    $region67: #{tpu_custom_call.1} parent=1 // pred_check_branch
      %122 = sbr.rel (0) target = $region69
    $region68: #{tpu_custom_call.1} parent=1 // pred_region
      %123 = dma.done [#allocation11], 1024
    $region69: #{tpu_custom_call.1} parent=1 // pred_fallthru
      _
    // Predicated region
    $region70: #{tpu_custom_call.1} parent=1 // pred_check
      _
    $region71: #{tpu_custom_call.1} parent=1 // pred_check_branch
      %125 = sbr.rel (0) target = $region73
    $region72: #{tpu_custom_call.1} parent=1 // pred_region
      %126 = dma.done [#allocation14], 1024
    $region73: #{tpu_custom_call.1} parent=1 // pred_fallthru
      _
    %v128 = vld [vmem:[#allocation4] sm:$0xff]
    %v129 = vld [vmem:[#allocation4 + $0x8] sm:$0xff]
    %v130 = vld [vmem:[#allocation4 + $0x10] sm:$0xff]
    %v131 = vld [vmem:[#allocation4 + $0x18] sm:$0xff]
    %v132 = vld [vmem:[#allocation4 + $0x20] sm:$0xff]
    %v133 = vld [vmem:[#allocation4 + $0x28] sm:$0xff]
    %v134 = vld [vmem:[#allocation4 + $0x30] sm:$0xff]
    %v135 = vld [vmem:[#allocation4 + $0x38] sm:$0xff]
    %v136 = vld [vmem:[#allocation4 + $0x40] sm:$0xff]
    %v137 = vld [vmem:[#allocation4 + $0x48] sm:$0xff]
    %v138 = vld [vmem:[#allocation4 + $0x50] sm:$0xff]
    %v139 = vld [vmem:[#allocation4 + $0x58] sm:$0xff]
    %v140 = vld [vmem:[#allocation4 + $0x60] sm:$0xff]
    %v141 = vld [vmem:[#allocation4 + $0x68] sm:$0xff]
    %v142 = vld [vmem:[#allocation4 + $0x70] sm:$0xff]
    %v143 = vld [vmem:[#allocation4 + $0x78] sm:$0xff]
    %v144 = vld [vmem:[#allocation4 + $0x80] sm:$0xff]
    %v145 = vld [vmem:[#allocation4 + $0x88] sm:$0xff]
    %v146 = vld [vmem:[#allocation4 + $0x90] sm:$0xff]
    %v147 = vld [vmem:[#allocation4 + $0x98] sm:$0xff]
    %v148 = vld [vmem:[#allocation4 + $0xa0] sm:$0xff]
    %v149 = vld [vmem:[#allocation4 + $0xa8] sm:$0xff]
    %v150 = vld [vmem:[#allocation4 + $0xb0] sm:$0xff]
    %v151 = vld [vmem:[#allocation4 + $0xb8] sm:$0xff]
    %v152 = vld [vmem:[#allocation4 + $0xc0] sm:$0xff]
    %v153 = vld [vmem:[#allocation4 + $0xc8] sm:$0xff]
    %v154 = vld [vmem:[#allocation4 + $0xd0] sm:$0xff]
    %v155 = vld [vmem:[#allocation4 + $0xd8] sm:$0xff]
    %v156 = vld [vmem:[#allocation4 + $0xe0] sm:$0xff]
    %v157 = vld [vmem:[#allocation4 + $0xe8] sm:$0xff]
    %v158 = vld [vmem:[#allocation4 + $0xf0] sm:$0xff]
    %v159 = vld [vmem:[#allocation4 + $0xf8] sm:$0xff]
    %v160 = vld [vmem:[#allocation4 + $0x100] sm:$0xff]
    %v161 = vld [vmem:[#allocation4 + $0x108] sm:$0xff]
    %v162 = vld [vmem:[#allocation4 + $0x110] sm:$0xff]
    %v163 = vld [vmem:[#allocation4 + $0x118] sm:$0xff]
    %v164 = vld [vmem:[#allocation4 + $0x120] sm:$0xff]
    %v165 = vld [vmem:[#allocation4 + $0x128] sm:$0xff]
    %v166 = vld [vmem:[#allocation4 + $0x130] sm:$0xff]
    %v167 = vld [vmem:[#allocation4 + $0x138] sm:$0xff]
    %v168 = vld [vmem:[#allocation4 + $0x140] sm:$0xff]
    %v169 = vld [vmem:[#allocation4 + $0x148] sm:$0xff]
    %v170 = vld [vmem:[#allocation4 + $0x150] sm:$0xff]
    %v171 = vld [vmem:[#allocation4 + $0x158] sm:$0xff]
    %v172 = vld [vmem:[#allocation4 + $0x160] sm:$0xff]
    %v173 = vld [vmem:[#allocation4 + $0x168] sm:$0xff]
    %v174 = vld [vmem:[#allocation4 + $0x170] sm:$0xff]
    %v175 = vld [vmem:[#allocation4 + $0x178] sm:$0xff]
    %v176 = vld [vmem:[#allocation4 + $0x180] sm:$0xff]
    %v177 = vld [vmem:[#allocation4 + $0x188] sm:$0xff]
    %v178 = vld [vmem:[#allocation4 + $0x190] sm:$0xff]
    %v179 = vld [vmem:[#allocation4 + $0x198] sm:$0xff]
    %v180 = vld [vmem:[#allocation4 + $0x1a0] sm:$0xff]
    %v181 = vld [vmem:[#allocation4 + $0x1a8] sm:$0xff]
    %v182 = vld [vmem:[#allocation4 + $0x1b0] sm:$0xff]
    %v183 = vld [vmem:[#allocation4 + $0x1b8] sm:$0xff]
    %v184 = vld [vmem:[#allocation4 + $0x1c0] sm:$0xff]
    %v185 = vld [vmem:[#allocation4 + $0x1c8] sm:$0xff]
    %v186 = vld [vmem:[#allocation4 + $0x1d0] sm:$0xff]
    %v187 = vld [vmem:[#allocation4 + $0x1d8] sm:$0xff]
    %v188 = vld [vmem:[#allocation4 + $0x1e0] sm:$0xff]
    %v189 = vld [vmem:[#allocation4 + $0x1e8] sm:$0xff]
    %v190 = vld [vmem:[#allocation4 + $0x1f0] sm:$0xff]
    %v191 = vld [vmem:[#allocation4 + $0x1f8] sm:$0xff]
    %v192 = vld [vmem:[#allocation4 + $0x200] sm:$0xff]
    %v193 = vld [vmem:[#allocation4 + $0x208] sm:$0xff]
    %v194 = vld [vmem:[#allocation4 + $0x210] sm:$0xff]
    %v195 = vld [vmem:[#allocation4 + $0x218] sm:$0xff]
    %v196 = vld [vmem:[#allocation4 + $0x220] sm:$0xff]
    %v197 = vld [vmem:[#allocation4 + $0x228] sm:$0xff]
    %v198 = vld [vmem:[#allocation4 + $0x230] sm:$0xff]
    %v199 = vld [vmem:[#allocation4 + $0x238] sm:$0xff]
    %v200 = vld [vmem:[#allocation4 + $0x240] sm:$0xff]
    %v201 = vld [vmem:[#allocation4 + $0x248] sm:$0xff]
    %v202 = vld [vmem:[#allocation4 + $0x250] sm:$0xff]
    %v203 = vld [vmem:[#allocation4 + $0x258] sm:$0xff]
    %v204 = vld [vmem:[#allocation4 + $0x260] sm:$0xff]
    %v205 = vld [vmem:[#allocation4 + $0x268] sm:$0xff]
    %v206 = vld [vmem:[#allocation4 + $0x270] sm:$0xff]
    %v207 = vld [vmem:[#allocation4 + $0x278] sm:$0xff]
    %v208 = vld [vmem:[#allocation4 + $0x280] sm:$0xff]
    %v209 = vld [vmem:[#allocation4 + $0x288] sm:$0xff]
    %v210 = vld [vmem:[#allocation4 + $0x290] sm:$0xff]
    %v211 = vld [vmem:[#allocation4 + $0x298] sm:$0xff]
    %v212 = vld [vmem:[#allocation4 + $0x2a0] sm:$0xff]
    %v213 = vld [vmem:[#allocation4 + $0x2a8] sm:$0xff]
    %v214 = vld [vmem:[#allocation4 + $0x2b0] sm:$0xff]
    %v215 = vld [vmem:[#allocation4 + $0x2b8] sm:$0xff]
    %v216 = vld [vmem:[#allocation4 + $0x2c0] sm:$0xff]
    %v217 = vld [vmem:[#allocation4 + $0x2c8] sm:$0xff]
    %v218 = vld [vmem:[#allocation4 + $0x2d0] sm:$0xff]
    %v219 = vld [vmem:[#allocation4 + $0x2d8] sm:$0xff]
    %v220 = vld [vmem:[#allocation4 + $0x2e0] sm:$0xff]
    %v221 = vld [vmem:[#allocation4 + $0x2e8] sm:$0xff]
    %v222 = vld [vmem:[#allocation4 + $0x2f0] sm:$0xff]
    %v223 = vld [vmem:[#allocation4 + $0x2f8] sm:$0xff]
    %v224 = vld [vmem:[#allocation4 + $0x300] sm:$0xff]
    %v225 = vld [vmem:[#allocation4 + $0x308] sm:$0xff]
    %v226 = vld [vmem:[#allocation4 + $0x310] sm:$0xff]
    %v227 = vld [vmem:[#allocation4 + $0x318] sm:$0xff]
    %v228 = vld [vmem:[#allocation4 + $0x320] sm:$0xff]
    %v229 = vld [vmem:[#allocation4 + $0x328] sm:$0xff]
    %v230 = vld [vmem:[#allocation4 + $0x330] sm:$0xff]
    %v231 = vld [vmem:[#allocation4 + $0x338] sm:$0xff]
    %v232 = vld [vmem:[#allocation4 + $0x340] sm:$0xff]
    %v233 = vld [vmem:[#allocation4 + $0x348] sm:$0xff]
    %v234 = vld [vmem:[#allocation4 + $0x350] sm:$0xff]
    %v235 = vld [vmem:[#allocation4 + $0x358] sm:$0xff]
    %v236 = vld [vmem:[#allocation7] sm:$0xff]
    %v237 = vld [vmem:[#allocation7 + $0x8] sm:$0xff]
    %v238 = vld [vmem:[#allocation7 + $0x10] sm:$0xff]
    %v239 = vld [vmem:[#allocation7 + $0x18] sm:$0xff]
    %v240 = vld [vmem:[#allocation7 + $0x20] sm:$0xff]
    %v241 = vld [vmem:[#allocation7 + $0x28] sm:$0xff]
    %v242 = vld [vmem:[#allocation7 + $0x30] sm:$0xff]
    %v243 = vld [vmem:[#allocation7 + $0x38] sm:$0xff]
    %v244 = vld [vmem:[#allocation7 + $0x40] sm:$0xff]
    %v245 = vld [vmem:[#allocation7 + $0x48] sm:$0xff]
    %v246 = vld [vmem:[#allocation7 + $0x50] sm:$0xff]
    %v247 = vld [vmem:[#allocation7 + $0x58] sm:$0xff]
    %v248 = vld [vmem:[#allocation7 + $0x60] sm:$0xff]
    %v249 = vld [vmem:[#allocation7 + $0x68] sm:$0xff]
    %v250 = vld [vmem:[#allocation7 + $0x70] sm:$0xff]
    %v251 = vld [vmem:[#allocation7 + $0x78] sm:$0xff]
    %252 = vmatprep.subr.mxu0 0.0
    %253 = vmatpush1.msra.mxu0 %v251
    %254 = vmatprep.subr.mxu0 0.0
    %255 = vmatpush1.msra.mxu0 %v250
    %256 = vmatprep.subr.mxu0 0.0
    %257 = vmatpush1.msra.mxu0 %v249
    %258 = vmatprep.subr.mxu0 0.0
    %259 = vmatpush1.msra.mxu0 %v248
    %260 = vmatprep.subr.mxu0 0.0
    %261 = vmatpush1.msra.mxu0 %v247
    %262 = vmatprep.subr.mxu0 0.0
    %263 = vmatpush1.msra.mxu0 %v246
    %264 = vmatprep.subr.mxu0 0.0
    %265 = vmatpush1.msra.mxu0 %v245
    %266 = vmatprep.subr.mxu0 0.0
    %267 = vmatpush1.msra.mxu0 %v244
    %268 = vmatprep.subr.mxu0 0.0
    %269 = vmatpush1.msra.mxu0 %v243
    %270 = vmatprep.subr.mxu0 0.0
    %271 = vmatpush1.msra.mxu0 %v242
    %272 = vmatprep.subr.mxu0 0.0
    %273 = vmatpush1.msra.mxu0 %v241
    %274 = vmatprep.subr.mxu0 0.0
    %275 = vmatpush1.msra.mxu0 %v240
    %276 = vmatprep.subr.mxu0 0.0
    %277 = vmatpush1.msra.mxu0 %v239
    %278 = vmatprep.subr.mxu0 0.0
    %279 = vmatpush1.msra.mxu0 %v238
    %280 = vmatprep.subr.mxu0 0.0
    %281 = vmatpush1.msra.mxu0 %v237
    %282 = vmatprep.subr.mxu0 0.0
    %283 = vmatpush1.msra.mxu0 %v236
    %284 = vmatprep.subr.mxu0 0.0
    %285 = vmatpush2.msra.mxu0 0.0
    %286 = vmatprep.subr.mxu0 0.0
    %287 = vmatpush2.msra.mxu0 0.0
    %288 = vmatprep.subr.mxu0 0.0
    %289 = vmatpush2.msra.mxu0 0.0
    %290 = vmatprep.subr.mxu0 0.0
    %291 = vmatpush2.msra.mxu0 0.0
    %292 = vmatprep.subr.mxu0 0.0
    %293 = vmatpush2.msra.mxu0 0.0
    %294 = vmatprep.subr.mxu0 0.0
    %295 = vmatpush2.msra.mxu0 0.0
    %296 = vmatprep.subr.mxu0 0.0
    %297 = vmatpush2.msra.mxu0 0.0
    %298 = vmatprep.subr.mxu0 0.0
    %299 = vmatpush2.msra.mxu0 0.0
    %300 = vmatprep.subr.mxu0 0.0
    %301 = vmatpush2.msra.mxu0 0.0
    %302 = vmatprep.subr.mxu0 0.0
    %303 = vmatpush2.msra.mxu0 0.0
    %304 = vmatprep.subr.mxu0 0.0
    %305 = vmatpush2.msra.mxu0 0.0
    %306 = vmatprep.subr.mxu0 0.0
    %307 = vmatpush2.msra.mxu0 0.0
    %308 = vmatprep.subr.mxu0 0.0
    %309 = vmatpush2.msra.mxu0 0.0
    %310 = vmatprep.subr.mxu0 0.0
    %311 = vmatpush2.msra.mxu0 0.0
    %312 = vmatprep.subr.mxu0 0.0
    %313 = vmatpush2.msra.mxu0 0.0
    %314 = vmatprep.subr.mxu0 0.0
    %315 = vmatpush2.msra.mxu0 0.0
    %316 = vmatprep.mubr.f32.mxu0 0.0
    %317 = vmatmul.mubr.f32.gmra.mxu0 %v128
    %v318 = vpop.f32.mrf.mxu0
    %v319 = vadd.f32 0.0, %v318
    %v320 = vpop.f32.mrf.mxu0
    %321 = vmatprep.mubr.f32.mxu0 0.0
    %322 = vmatmul.mubr.f32.gmra.mxu0 %v129
    %v323 = vpop.f32.mrf.mxu0
    %v324 = vadd.f32 0.0, %v323
    %v325 = vpop.f32.mrf.mxu0
    %326 = vmatprep.mubr.f32.mxu0 0.0
    %327 = vmatmul.mubr.f32.gmra.mxu0 %v130
    %v328 = vpop.f32.mrf.mxu0
    %v329 = vadd.f32 0.0, %v328
    %v330 = vpop.f32.mrf.mxu0
    %331 = vmatprep.mubr.f32.mxu0 0.0
    %332 = vmatmul.mubr.f32.gmra.mxu0 %v131
    %v333 = vpop.f32.mrf.mxu0
    %v334 = vadd.f32 0.0, %v333
    %v335 = vpop.f32.mrf.mxu0
    %336 = vmatprep.mubr.f32.mxu0 0.0
    %337 = vmatmul.mubr.f32.gmra.mxu0 %v132
    %v338 = vpop.f32.mrf.mxu0
    %v339 = vadd.f32 0.0, %v338
    %v340 = vpop.f32.mrf.mxu0
    %341 = vmatprep.mubr.f32.mxu0 0.0
    %342 = vmatmul.mubr.f32.gmra.mxu0 %v133
    %v343 = vpop.f32.mrf.mxu0
    %v344 = vadd.f32 0.0, %v343
    %v345 = vpop.f32.mrf.mxu0
    %346 = vmatprep.mubr.f32.mxu0 0.0
    %347 = vmatmul.mubr.f32.gmra.mxu0 %v134
    %v348 = vpop.f32.mrf.mxu0
    %v349 = vadd.f32 0.0, %v348
    %v350 = vpop.f32.mrf.mxu0
    %351 = vmatprep.mubr.f32.mxu0 0.0
    %352 = vmatmul.mubr.f32.gmra.mxu0 %v135
    %v353 = vpop.f32.mrf.mxu0
    %v354 = vadd.f32 0.0, %v353
    %v355 = vpop.f32.mrf.mxu0
    %356 = vmatprep.mubr.f32.mxu0 0.0
    %357 = vmatmul.mubr.f32.gmra.mxu0 %v136
    %v358 = vpop.f32.mrf.mxu0
    %v359 = vadd.f32 0.0, %v358
    %v360 = vpop.f32.mrf.mxu0
    %361 = vmatprep.mubr.f32.mxu0 0.0
    %362 = vmatmul.mubr.f32.gmra.mxu0 %v137
    %v363 = vpop.f32.mrf.mxu0
    %v364 = vadd.f32 0.0, %v363
    %v365 = vpop.f32.mrf.mxu0
    %366 = vmatprep.mubr.f32.mxu0 0.0
    %367 = vmatmul.mubr.f32.gmra.mxu0 %v138
    %v368 = vpop.f32.mrf.mxu0
    %v369 = vadd.f32 0.0, %v368
    %v370 = vpop.f32.mrf.mxu0
    %371 = vmatprep.mubr.f32.mxu0 0.0
    %372 = vmatmul.mubr.f32.gmra.mxu0 %v139
    %v373 = vpop.f32.mrf.mxu0
    %v374 = vadd.f32 0.0, %v373
    %v375 = vpop.f32.mrf.mxu0
    %376 = vmatprep.mubr.f32.mxu0 0.0
    %377 = vmatmul.mubr.f32.gmra.mxu0 %v140
    %v378 = vpop.f32.mrf.mxu0
    %v379 = vadd.f32 0.0, %v378
    %v380 = vpop.f32.mrf.mxu0
    %381 = vmatprep.mubr.f32.mxu0 0.0
    %382 = vmatmul.mubr.f32.gmra.mxu0 %v141
    %v383 = vpop.f32.mrf.mxu0
    %v384 = vadd.f32 0.0, %v383
    %v385 = vpop.f32.mrf.mxu0
    %386 = vmatprep.mubr.f32.mxu0 0.0
    %387 = vmatmul.mubr.f32.gmra.mxu0 %v142
    %v388 = vpop.f32.mrf.mxu0
    %v389 = vadd.f32 0.0, %v388
    %v390 = vpop.f32.mrf.mxu0
    %391 = vmatprep.mubr.f32.mxu0 0.0
    %392 = vmatmul.mubr.f32.gmra.mxu0 %v143
    %v393 = vpop.f32.mrf.mxu0
    %v394 = vadd.f32 0.0, %v393
    %v395 = vpop.f32.mrf.mxu0
    %396 = vmatprep.mubr.f32.mxu0 0.0
    %397 = vmatmul.mubr.f32.gmra.mxu0 %v144
    %v398 = vpop.f32.mrf.mxu0
    %v399 = vadd.f32 0.0, %v398
    %v400 = vpop.f32.mrf.mxu0
    %401 = vmatprep.mubr.f32.mxu0 0.0
    %402 = vmatmul.mubr.f32.gmra.mxu0 %v145
    %v403 = vpop.f32.mrf.mxu0
    %v404 = vadd.f32 0.0, %v403
    %v405 = vpop.f32.mrf.mxu0
    %406 = vmatprep.mubr.f32.mxu0 0.0
    %407 = vmatmul.mubr.f32.gmra.mxu0 %v146
    %v408 = vpop.f32.mrf.mxu0
    %v409 = vadd.f32 0.0, %v408
    %v410 = vpop.f32.mrf.mxu0
    %411 = vmatprep.mubr.f32.mxu0 0.0
    %412 = vmatmul.mubr.f32.gmra.mxu0 %v147
    %v413 = vpop.f32.mrf.mxu0
    %v414 = vadd.f32 0.0, %v413
    %v415 = vpop.f32.mrf.mxu0
    %416 = vmatprep.mubr.f32.mxu0 0.0
    %417 = vmatmul.mubr.f32.gmra.mxu0 %v148
    %v418 = vpop.f32.mrf.mxu0
    %v419 = vadd.f32 0.0, %v418
    %v420 = vpop.f32.mrf.mxu0
    %421 = vmatprep.mubr.f32.mxu0 0.0
    %422 = vmatmul.mubr.f32.gmra.mxu0 %v149
    %v423 = vpop.f32.mrf.mxu0
    %v424 = vadd.f32 0.0, %v423
    %v425 = vpop.f32.mrf.mxu0
    %426 = vmatprep.mubr.f32.mxu0 0.0
    %427 = vmatmul.mubr.f32.gmra.mxu0 %v150
    %v428 = vpop.f32.mrf.mxu0
    %v429 = vadd.f32 0.0, %v428
    %v430 = vpop.f32.mrf.mxu0
    %431 = vmatprep.mubr.f32.mxu0 0.0
    %432 = vmatmul.mubr.f32.gmra.mxu0 %v151
    %v433 = vpop.f32.mrf.mxu0
    %v434 = vadd.f32 0.0, %v433
    %v435 = vpop.f32.mrf.mxu0
    %436 = vmatprep.mubr.f32.mxu0 0.0
    %437 = vmatmul.mubr.f32.gmra.mxu0 %v152
    %v438 = vpop.f32.mrf.mxu0
    %v439 = vadd.f32 0.0, %v438
    %v440 = vpop.f32.mrf.mxu0
    %441 = vmatprep.mubr.f32.mxu0 0.0
    %442 = vmatmul.mubr.f32.gmra.mxu0 %v153
    %v443 = vpop.f32.mrf.mxu0
    %v444 = vadd.f32 0.0, %v443
    %v445 = vpop.f32.mrf.mxu0
    %446 = vmatprep.mubr.f32.mxu0 0.0
    %447 = vmatmul.mubr.f32.gmra.mxu0 %v154
    %v448 = vpop.f32.mrf.mxu0
    %v449 = vadd.f32 0.0, %v448
    %v450 = vpop.f32.mrf.mxu0
    %451 = vmatprep.mubr.f32.mxu0 0.0
    %452 = vmatmul.mubr.f32.gmra.mxu0 %v155
    %v453 = vpop.f32.mrf.mxu0
    %v454 = vadd.f32 0.0, %v453
    %v455 = vpop.f32.mrf.mxu0
    %456 = vmatprep.mubr.f32.mxu0 0.0
    %457 = vmatmul.mubr.f32.gmra.mxu0 %v156
    %v458 = vpop.f32.mrf.mxu0
    %v459 = vadd.f32 0.0, %v458
    %v460 = vpop.f32.mrf.mxu0
    %461 = vmatprep.mubr.f32.mxu0 0.0
    %462 = vmatmul.mubr.f32.gmra.mxu0 %v157
    %v463 = vpop.f32.mrf.mxu0
    %v464 = vadd.f32 0.0, %v463
    %v465 = vpop.f32.mrf.mxu0
    %466 = vmatprep.mubr.f32.mxu0 0.0
    %467 = vmatmul.mubr.f32.gmra.mxu0 %v158
    %v468 = vpop.f32.mrf.mxu0
    %v469 = vadd.f32 0.0, %v468
    %v470 = vpop.f32.mrf.mxu0
    %471 = vmatprep.mubr.f32.mxu0 0.0
    %472 = vmatmul.mubr.f32.gmra.mxu0 %v159
    %v473 = vpop.f32.mrf.mxu0
    %v474 = vadd.f32 0.0, %v473
    %v475 = vpop.f32.mrf.mxu0
    %476 = vmatprep.mubr.f32.mxu0 0.0
    %477 = vmatmul.mubr.f32.gmra.mxu0 %v160
    %v478 = vpop.f32.mrf.mxu0
    %v479 = vadd.f32 0.0, %v478
    %v480 = vpop.f32.mrf.mxu0
    %481 = vmatprep.mubr.f32.mxu0 0.0
    %482 = vmatmul.mubr.f32.gmra.mxu0 %v161
    %v483 = vpop.f32.mrf.mxu0
    %v484 = vadd.f32 0.0, %v483
    %v485 = vpop.f32.mrf.mxu0
    %486 = vmatprep.mubr.f32.mxu0 0.0
    %487 = vmatmul.mubr.f32.gmra.mxu0 %v162
    %v488 = vpop.f32.mrf.mxu0
    %v489 = vadd.f32 0.0, %v488
    %v490 = vpop.f32.mrf.mxu0
    %491 = vmatprep.mubr.f32.mxu0 0.0
    %492 = vmatmul.mubr.f32.gmra.mxu0 %v163
    %v493 = vpop.f32.mrf.mxu0
    %v494 = vadd.f32 0.0, %v493
    %v495 = vpop.f32.mrf.mxu0
    %496 = vmatprep.mubr.f32.mxu0 0.0
    %497 = vmatmul.mubr.f32.gmra.mxu0 %v164
    %v498 = vpop.f32.mrf.mxu0
    %v499 = vadd.f32 0.0, %v498
    %v500 = vpop.f32.mrf.mxu0
    %501 = vmatprep.mubr.f32.mxu0 0.0
    %502 = vmatmul.mubr.f32.gmra.mxu0 %v165
    %v503 = vpop.f32.mrf.mxu0
    %v504 = vadd.f32 0.0, %v503
    %v505 = vpop.f32.mrf.mxu0
    %506 = vmatprep.mubr.f32.mxu0 0.0
    %507 = vmatmul.mubr.f32.gmra.mxu0 %v166
    %v508 = vpop.f32.mrf.mxu0
    %v509 = vadd.f32 0.0, %v508
    %v510 = vpop.f32.mrf.mxu0
    %511 = vmatprep.mubr.f32.mxu0 0.0
    %512 = vmatmul.mubr.f32.gmra.mxu0 %v167
    %v513 = vpop.f32.mrf.mxu0
    %v514 = vadd.f32 0.0, %v513
    %v515 = vpop.f32.mrf.mxu0
    %516 = vmatprep.mubr.f32.mxu0 0.0
    %517 = vmatmul.mubr.f32.gmra.mxu0 %v168
    %v518 = vpop.f32.mrf.mxu0
    %v519 = vadd.f32 0.0, %v518
    %v520 = vpop.f32.mrf.mxu0
    %521 = vmatprep.mubr.f32.mxu0 0.0
    %522 = vmatmul.mubr.f32.gmra.mxu0 %v169
    %v523 = vpop.f32.mrf.mxu0
    %v524 = vadd.f32 0.0, %v523
    %v525 = vpop.f32.mrf.mxu0
    %526 = vmatprep.mubr.f32.mxu0 0.0
    %527 = vmatmul.mubr.f32.gmra.mxu0 %v170
    %v528 = vpop.f32.mrf.mxu0
    %v529 = vadd.f32 0.0, %v528
    %v530 = vpop.f32.mrf.mxu0
    %531 = vmatprep.mubr.f32.mxu0 0.0
    %532 = vmatmul.mubr.f32.gmra.mxu0 %v171
    %v533 = vpop.f32.mrf.mxu0
    %v534 = vadd.f32 0.0, %v533
    %v535 = vpop.f32.mrf.mxu0
    %536 = vmatprep.mubr.f32.mxu0 0.0
    %537 = vmatmul.mubr.f32.gmra.mxu0 %v172
    %v538 = vpop.f32.mrf.mxu0
    %v539 = vadd.f32 0.0, %v538
    %v540 = vpop.f32.mrf.mxu0
    %541 = vmatprep.mubr.f32.mxu0 0.0
    %542 = vmatmul.mubr.f32.gmra.mxu0 %v173
    %v543 = vpop.f32.mrf.mxu0
    %v544 = vadd.f32 0.0, %v543
    %v545 = vpop.f32.mrf.mxu0
    %546 = vmatprep.mubr.f32.mxu0 0.0
    %547 = vmatmul.mubr.f32.gmra.mxu0 %v174
    %v548 = vpop.f32.mrf.mxu0
    %v549 = vadd.f32 0.0, %v548
    %v550 = vpop.f32.mrf.mxu0
    %551 = vmatprep.mubr.f32.mxu0 0.0
    %552 = vmatmul.mubr.f32.gmra.mxu0 %v175
    %v553 = vpop.f32.mrf.mxu0
    %v554 = vadd.f32 0.0, %v553
    %v555 = vpop.f32.mrf.mxu0
    %556 = vmatprep.mubr.f32.mxu0 0.0
    %557 = vmatmul.mubr.f32.gmra.mxu0 %v176
    %v558 = vpop.f32.mrf.mxu0
    %v559 = vadd.f32 0.0, %v558
    %v560 = vpop.f32.mrf.mxu0
    %561 = vmatprep.mubr.f32.mxu0 0.0
    %562 = vmatmul.mubr.f32.gmra.mxu0 %v177
    %v563 = vpop.f32.mrf.mxu0
    %v564 = vadd.f32 0.0, %v563
    %v565 = vpop.f32.mrf.mxu0
    %566 = vmatprep.mubr.f32.mxu0 0.0
    %567 = vmatmul.mubr.f32.gmra.mxu0 %v178
    %v568 = vpop.f32.mrf.mxu0
    %v569 = vadd.f32 0.0, %v568
    %v570 = vpop.f32.mrf.mxu0
    %571 = vmatprep.mubr.f32.mxu0 0.0
    %572 = vmatmul.mubr.f32.gmra.mxu0 %v179
    %v573 = vpop.f32.mrf.mxu0
    %v574 = vadd.f32 0.0, %v573
    %v575 = vpop.f32.mrf.mxu0
    %576 = vmatprep.mubr.f32.mxu0 0.0
    %577 = vmatmul.mubr.f32.gmra.mxu0 %v180
    %v578 = vpop.f32.mrf.mxu0
    %v579 = vadd.f32 0.0, %v578
    %v580 = vpop.f32.mrf.mxu0
    %581 = vmatprep.mubr.f32.mxu0 0.0
    %582 = vmatmul.mubr.f32.gmra.mxu0 %v181
    %v583 = vpop.f32.mrf.mxu0
    %v584 = vadd.f32 0.0, %v583
    %v585 = vpop.f32.mrf.mxu0
    %586 = vmatprep.mubr.f32.mxu0 0.0
    %587 = vmatmul.mubr.f32.gmra.mxu0 %v182
    %v588 = vpop.f32.mrf.mxu0
    %v589 = vadd.f32 0.0, %v588
    %v590 = vpop.f32.mrf.mxu0
    %591 = vmatprep.mubr.f32.mxu0 0.0
    %592 = vmatmul.mubr.f32.gmra.mxu0 %v183
    %v593 = vpop.f32.mrf.mxu0
    %v594 = vadd.f32 0.0, %v593
    %v595 = vpop.f32.mrf.mxu0
    %596 = vmatprep.mubr.f32.mxu0 0.0
    %597 = vmatmul.mubr.f32.gmra.mxu0 %v184
    %v598 = vpop.f32.mrf.mxu0
    %v599 = vadd.f32 0.0, %v598
    %v600 = vpop.f32.mrf.mxu0
    %601 = vmatprep.mubr.f32.mxu0 0.0
    %602 = vmatmul.mubr.f32.gmra.mxu0 %v185
    %v603 = vpop.f32.mrf.mxu0
    %v604 = vadd.f32 0.0, %v603
    %v605 = vpop.f32.mrf.mxu0
    %606 = vmatprep.mubr.f32.mxu0 0.0
    %607 = vmatmul.mubr.f32.gmra.mxu0 %v186
    %v608 = vpop.f32.mrf.mxu0
    %v609 = vadd.f32 0.0, %v608
    %v610 = vpop.f32.mrf.mxu0
    %611 = vmatprep.mubr.f32.mxu0 0.0
    %612 = vmatmul.mubr.f32.gmra.mxu0 %v187
    %v613 = vpop.f32.mrf.mxu0
    %v614 = vadd.f32 0.0, %v613
    %v615 = vpop.f32.mrf.mxu0
    %616 = vmatprep.mubr.f32.mxu0 0.0
    %617 = vmatmul.mubr.f32.gmra.mxu0 %v188
    %v618 = vpop.f32.mrf.mxu0
    %v619 = vadd.f32 0.0, %v618
    %v620 = vpop.f32.mrf.mxu0
    %621 = vmatprep.mubr.f32.mxu0 0.0
    %622 = vmatmul.mubr.f32.gmra.mxu0 %v189
    %v623 = vpop.f32.mrf.mxu0
    %v624 = vadd.f32 0.0, %v623
    %v625 = vpop.f32.mrf.mxu0
    %626 = vmatprep.mubr.f32.mxu0 0.0
    %627 = vmatmul.mubr.f32.gmra.mxu0 %v190
    %v628 = vpop.f32.mrf.mxu0
    %v629 = vadd.f32 0.0, %v628
    %v630 = vpop.f32.mrf.mxu0
    %631 = vmatprep.mubr.f32.mxu0 0.0
    %632 = vmatmul.mubr.f32.gmra.mxu0 %v191
    %v633 = vpop.f32.mrf.mxu0
    %v634 = vadd.f32 0.0, %v633
    %v635 = vpop.f32.mrf.mxu0
    %636 = vmatprep.mubr.f32.mxu0 0.0
    %637 = vmatmul.mubr.f32.gmra.mxu0 %v192
    %v638 = vpop.f32.mrf.mxu0
    %v639 = vadd.f32 0.0, %v638
    %v640 = vpop.f32.mrf.mxu0
    %641 = vmatprep.mubr.f32.mxu0 0.0
    %642 = vmatmul.mubr.f32.gmra.mxu0 %v193
    %v643 = vpop.f32.mrf.mxu0
    %v644 = vadd.f32 0.0, %v643
    %v645 = vpop.f32.mrf.mxu0
    %646 = vmatprep.mubr.f32.mxu0 0.0
    %647 = vmatmul.mubr.f32.gmra.mxu0 %v194
    %v648 = vpop.f32.mrf.mxu0
    %v649 = vadd.f32 0.0, %v648
    %v650 = vpop.f32.mrf.mxu0
    %651 = vmatprep.mubr.f32.mxu0 0.0
    %652 = vmatmul.mubr.f32.gmra.mxu0 %v195
    %v653 = vpop.f32.mrf.mxu0
    %v654 = vadd.f32 0.0, %v653
    %v655 = vpop.f32.mrf.mxu0
    %656 = vmatprep.mubr.f32.mxu0 0.0
    %657 = vmatmul.mubr.f32.gmra.mxu0 %v196
    %v658 = vpop.f32.mrf.mxu0
    %v659 = vadd.f32 0.0, %v658
    %v660 = vpop.f32.mrf.mxu0
    %661 = vmatprep.mubr.f32.mxu0 0.0
    %662 = vmatmul.mubr.f32.gmra.mxu0 %v197
    %v663 = vpop.f32.mrf.mxu0
    %v664 = vadd.f32 0.0, %v663
    %v665 = vpop.f32.mrf.mxu0
    %666 = vmatprep.mubr.f32.mxu0 0.0
    %667 = vmatmul.mubr.f32.gmra.mxu0 %v198
    %v668 = vpop.f32.mrf.mxu0
    %v669 = vadd.f32 0.0, %v668
    %v670 = vpop.f32.mrf.mxu0
    %671 = vmatprep.mubr.f32.mxu0 0.0
    %672 = vmatmul.mubr.f32.gmra.mxu0 %v199
    %v673 = vpop.f32.mrf.mxu0
    %v674 = vadd.f32 0.0, %v673
    %v675 = vpop.f32.mrf.mxu0
    %676 = vmatprep.mubr.f32.mxu0 0.0
    %677 = vmatmul.mubr.f32.gmra.mxu0 %v200
    %v678 = vpop.f32.mrf.mxu0
    %v679 = vadd.f32 0.0, %v678
    %v680 = vpop.f32.mrf.mxu0
    %681 = vmatprep.mubr.f32.mxu0 0.0
    %682 = vmatmul.mubr.f32.gmra.mxu0 %v201
    %v683 = vpop.f32.mrf.mxu0
    %v684 = vadd.f32 0.0, %v683
    %v685 = vpop.f32.mrf.mxu0
    %686 = vmatprep.mubr.f32.mxu0 0.0
    %687 = vmatmul.mubr.f32.gmra.mxu0 %v202
    %v688 = vpop.f32.mrf.mxu0
    %v689 = vadd.f32 0.0, %v688
    %v690 = vpop.f32.mrf.mxu0
    %691 = vmatprep.mubr.f32.mxu0 0.0
    %692 = vmatmul.mubr.f32.gmra.mxu0 %v203
    %v693 = vpop.f32.mrf.mxu0
    %v694 = vadd.f32 0.0, %v693
    %v695 = vpop.f32.mrf.mxu0
    %696 = vmatprep.mubr.f32.mxu0 0.0
    %697 = vmatmul.mubr.f32.gmra.mxu0 %v204
    %v698 = vpop.f32.mrf.mxu0
    %v699 = vadd.f32 0.0, %v698
    %v700 = vpop.f32.mrf.mxu0
    %701 = vmatprep.mubr.f32.mxu0 0.0
    %702 = vmatmul.mubr.f32.gmra.mxu0 %v205
    %v703 = vpop.f32.mrf.mxu0
    %v704 = vadd.f32 0.0, %v703
    %v705 = vpop.f32.mrf.mxu0
    %706 = vmatprep.mubr.f32.mxu0 0.0
    %707 = vmatmul.mubr.f32.gmra.mxu0 %v206
    %v708 = vpop.f32.mrf.mxu0
    %v709 = vadd.f32 0.0, %v708
    %v710 = vpop.f32.mrf.mxu0
    %711 = vmatprep.mubr.f32.mxu0 0.0
    %712 = vmatmul.mubr.f32.gmra.mxu0 %v207
    %v713 = vpop.f32.mrf.mxu0
    %v714 = vadd.f32 0.0, %v713
    %v715 = vpop.f32.mrf.mxu0
    %716 = vmatprep.mubr.f32.mxu0 0.0
    %717 = vmatmul.mubr.f32.gmra.mxu0 %v208
    %v718 = vpop.f32.mrf.mxu0
    %v719 = vadd.f32 0.0, %v718
    %v720 = vpop.f32.mrf.mxu0
    %721 = vmatprep.mubr.f32.mxu0 0.0
    %722 = vmatmul.mubr.f32.gmra.mxu0 %v209
    %v723 = vpop.f32.mrf.mxu0
    %v724 = vadd.f32 0.0, %v723
    %v725 = vpop.f32.mrf.mxu0
    %726 = vmatprep.mubr.f32.mxu0 0.0
    %727 = vmatmul.mubr.f32.gmra.mxu0 %v210
    %v728 = vpop.f32.mrf.mxu0
    %v729 = vadd.f32 0.0, %v728
    %v730 = vpop.f32.mrf.mxu0
    %731 = vmatprep.mubr.f32.mxu0 0.0
    %732 = vmatmul.mubr.f32.gmra.mxu0 %v211
    %v733 = vpop.f32.mrf.mxu0
    %v734 = vadd.f32 0.0, %v733
    %v735 = vpop.f32.mrf.mxu0
    %736 = vmatprep.mubr.f32.mxu0 0.0
    %737 = vmatmul.mubr.f32.gmra.mxu0 %v212
    %v738 = vpop.f32.mrf.mxu0
    %v739 = vadd.f32 0.0, %v738
    %v740 = vpop.f32.mrf.mxu0
    %741 = vmatprep.mubr.f32.mxu0 0.0
    %742 = vmatmul.mubr.f32.gmra.mxu0 %v213
    %v743 = vpop.f32.mrf.mxu0
    %v744 = vadd.f32 0.0, %v743
    %v745 = vpop.f32.mrf.mxu0
    %746 = vmatprep.mubr.f32.mxu0 0.0
    %747 = vmatmul.mubr.f32.gmra.mxu0 %v214
    %v748 = vpop.f32.mrf.mxu0
    %v749 = vadd.f32 0.0, %v748
    %v750 = vpop.f32.mrf.mxu0
    %751 = vmatprep.mubr.f32.mxu0 0.0
    %752 = vmatmul.mubr.f32.gmra.mxu0 %v215
    %v753 = vpop.f32.mrf.mxu0
    %v754 = vadd.f32 0.0, %v753
    %v755 = vpop.f32.mrf.mxu0
    %756 = vmatprep.mubr.f32.mxu0 0.0
    %757 = vmatmul.mubr.f32.gmra.mxu0 %v216
    %v758 = vpop.f32.mrf.mxu0
    %v759 = vadd.f32 0.0, %v758
    %v760 = vpop.f32.mrf.mxu0
    %761 = vmatprep.mubr.f32.mxu0 0.0
    %762 = vmatmul.mubr.f32.gmra.mxu0 %v217
    %v763 = vpop.f32.mrf.mxu0
    %v764 = vadd.f32 0.0, %v763
    %v765 = vpop.f32.mrf.mxu0
    %766 = vmatprep.mubr.f32.mxu0 0.0
    %767 = vmatmul.mubr.f32.gmra.mxu0 %v218
    %v768 = vpop.f32.mrf.mxu0
    %v769 = vadd.f32 0.0, %v768
    %v770 = vpop.f32.mrf.mxu0
    %771 = vmatprep.mubr.f32.mxu0 0.0
    %772 = vmatmul.mubr.f32.gmra.mxu0 %v219
    %v773 = vpop.f32.mrf.mxu0
    %v774 = vadd.f32 0.0, %v773
    %v775 = vpop.f32.mrf.mxu0
    %776 = vmatprep.mubr.f32.mxu0 0.0
    %777 = vmatmul.mubr.f32.gmra.mxu0 %v220
    %v778 = vpop.f32.mrf.mxu0
    %v779 = vadd.f32 0.0, %v778
    %v780 = vpop.f32.mrf.mxu0
    %781 = vmatprep.mubr.f32.mxu0 0.0
    %782 = vmatmul.mubr.f32.gmra.mxu0 %v221
    %v783 = vpop.f32.mrf.mxu0
    %v784 = vadd.f32 0.0, %v783
    %v785 = vpop.f32.mrf.mxu0
    %786 = vmatprep.mubr.f32.mxu0 0.0
    %787 = vmatmul.mubr.f32.gmra.mxu0 %v222
    %v788 = vpop.f32.mrf.mxu0
    %v789 = vadd.f32 0.0, %v788
    %v790 = vpop.f32.mrf.mxu0
    %791 = vmatprep.mubr.f32.mxu0 0.0
    %792 = vmatmul.mubr.f32.gmra.mxu0 %v223
    %v793 = vpop.f32.mrf.mxu0
    %v794 = vadd.f32 0.0, %v793
    %v795 = vpop.f32.mrf.mxu0
    %796 = vmatprep.mubr.f32.mxu0 0.0
    %797 = vmatmul.mubr.f32.gmra.mxu0 %v224
    %v798 = vpop.f32.mrf.mxu0
    %v799 = vadd.f32 0.0, %v798
    %v800 = vpop.f32.mrf.mxu0
    %801 = vmatprep.mubr.f32.mxu0 0.0
    %802 = vmatmul.mubr.f32.gmra.mxu0 %v225
    %v803 = vpop.f32.mrf.mxu0
    %v804 = vadd.f32 0.0, %v803
    %v805 = vpop.f32.mrf.mxu0
    %806 = vmatprep.mubr.f32.mxu0 0.0
    %807 = vmatmul.mubr.f32.gmra.mxu0 %v226
    %v808 = vpop.f32.mrf.mxu0
    %v809 = vadd.f32 0.0, %v808
    %v810 = vpop.f32.mrf.mxu0
    %811 = vmatprep.mubr.f32.mxu0 0.0
    %812 = vmatmul.mubr.f32.gmra.mxu0 %v227
    %v813 = vpop.f32.mrf.mxu0
    %v814 = vadd.f32 0.0, %v813
    %v815 = vpop.f32.mrf.mxu0
    %816 = vmatprep.mubr.f32.mxu0 0.0
    %817 = vmatmul.mubr.f32.gmra.mxu0 %v228
    %v818 = vpop.f32.mrf.mxu0
    %v819 = vadd.f32 0.0, %v818
    %v820 = vpop.f32.mrf.mxu0
    %821 = vmatprep.mubr.f32.mxu0 0.0
    %822 = vmatmul.mubr.f32.gmra.mxu0 %v229
    %v823 = vpop.f32.mrf.mxu0
    %v824 = vadd.f32 0.0, %v823
    %v825 = vpop.f32.mrf.mxu0
    %826 = vmatprep.mubr.f32.mxu0 0.0
    %827 = vmatmul.mubr.f32.gmra.mxu0 %v230
    %v828 = vpop.f32.mrf.mxu0
    %v829 = vadd.f32 0.0, %v828
    %v830 = vpop.f32.mrf.mxu0
    %831 = vmatprep.mubr.f32.mxu0 0.0
    %832 = vmatmul.mubr.f32.gmra.mxu0 %v231
    %v833 = vpop.f32.mrf.mxu0
    %v834 = vadd.f32 0.0, %v833
    %v835 = vpop.f32.mrf.mxu0
    %836 = vmatprep.mubr.f32.mxu0 0.0
    %837 = vmatmul.mubr.f32.gmra.mxu0 %v232
    %v838 = vpop.f32.mrf.mxu0
    %v839 = vadd.f32 0.0, %v838
    %v840 = vpop.f32.mrf.mxu0
    %841 = vmatprep.mubr.f32.mxu0 0.0
    %842 = vmatmul.mubr.f32.gmra.mxu0 %v233
    %v843 = vpop.f32.mrf.mxu0
    %v844 = vadd.f32 0.0, %v843
    %v845 = vpop.f32.mrf.mxu0
    %846 = vmatprep.mubr.f32.mxu0 0.0
    %847 = vmatmul.mubr.f32.gmra.mxu0 %v234
    %v848 = vpop.f32.mrf.mxu0
    %v849 = vadd.f32 0.0, %v848
    %v850 = vpop.f32.mrf.mxu0
    %851 = vmatprep.mubr.f32.mxu0 0.0
    %852 = vmatmul.mubr.f32.gmra.mxu0 %v235
    %v853 = vpop.f32.mrf.mxu0
    %v854 = vadd.f32 0.0, %v853
    %v855 = vpop.f32.mrf.mxu0
    %856 = vdwg.mxu0
    %857 = vst [vmem:[#allocation2] sm:$0xff] %v319
    %858 = vst [vmem:[#allocation2 + $0x8] sm:$0xff] %v324
    %859 = vst [vmem:[#allocation2 + $0x10] sm:$0xff] %v329
    %860 = vst [vmem:[#allocation2 + $0x18] sm:$0xff] %v334
    %861 = vst [vmem:[#allocation2 + $0x20] sm:$0xff] %v339
    %862 = vst [vmem:[#allocation2 + $0x28] sm:$0xff] %v344
    %863 = vst [vmem:[#allocation2 + $0x30] sm:$0xff] %v349
    %864 = vst [vmem:[#allocation2 + $0x38] sm:$0xff] %v354
    %865 = vst [vmem:[#allocation2 + $0x40] sm:$0xff] %v359
    %866 = vst [vmem:[#allocation2 + $0x48] sm:$0xff] %v364
    %867 = vst [vmem:[#allocation2 + $0x50] sm:$0xff] %v369
    %868 = vst [vmem:[#allocation2 + $0x58] sm:$0xff] %v374
    %869 = vst [vmem:[#allocation2 + $0x60] sm:$0xff] %v379
    %870 = vst [vmem:[#allocation2 + $0x68] sm:$0xff] %v384
    %871 = vst [vmem:[#allocation2 + $0x70] sm:$0xff] %v389
    %872 = vst [vmem:[#allocation2 + $0x78] sm:$0xff] %v394
    %873 = vst [vmem:[#allocation2 + $0x80] sm:$0xff] %v399
    %874 = vst [vmem:[#allocation2 + $0x88] sm:$0xff] %v404
    %875 = vst [vmem:[#allocation2 + $0x90] sm:$0xff] %v409
    %876 = vst [vmem:[#allocation2 + $0x98] sm:$0xff] %v414
    %877 = vst [vmem:[#allocation2 + $0xa0] sm:$0xff] %v419
    %878 = vst [vmem:[#allocation2 + $0xa8] sm:$0xff] %v424
    %879 = vst [vmem:[#allocation2 + $0xb0] sm:$0xff] %v429
    %880 = vst [vmem:[#allocation2 + $0xb8] sm:$0xff] %v434
    %881 = vst [vmem:[#allocation2 + $0xc0] sm:$0xff] %v439
    %882 = vst [vmem:[#allocation2 + $0xc8] sm:$0xff] %v444
    %883 = vst [vmem:[#allocation2 + $0xd0] sm:$0xff] %v449
    %884 = vst [vmem:[#allocation2 + $0xd8] sm:$0xff] %v454
    %885 = vst [vmem:[#allocation2 + $0xe0] sm:$0xff] %v459
    %886 = vst [vmem:[#allocation2 + $0xe8] sm:$0xff] %v464
    %887 = vst [vmem:[#allocation2 + $0xf0] sm:$0xff] %v469
    %888 = vst [vmem:[#allocation2 + $0xf8] sm:$0xff] %v474
    %889 = vst [vmem:[#allocation2 + $0x100] sm:$0xff] %v479
    %890 = vst [vmem:[#allocation2 + $0x108] sm:$0xff] %v484
    %891 = vst [vmem:[#allocation2 + $0x110] sm:$0xff] %v489
    %892 = vst [vmem:[#allocation2 + $0x118] sm:$0xff] %v494
    %893 = vst [vmem:[#allocation2 + $0x120] sm:$0xff] %v499
    %894 = vst [vmem:[#allocation2 + $0x128] sm:$0xff] %v504
    %895 = vst [vmem:[#allocation2 + $0x130] sm:$0xff] %v509
    %896 = vst [vmem:[#allocation2 + $0x138] sm:$0xff] %v514
    %897 = vst [vmem:[#allocation2 + $0x140] sm:$0xff] %v519
    %898 = vst [vmem:[#allocation2 + $0x148] sm:$0xff] %v524
    %899 = vst [vmem:[#allocation2 + $0x150] sm:$0xff] %v529
    %900 = vst [vmem:[#allocation2 + $0x158] sm:$0xff] %v534
    %901 = vst [vmem:[#allocation2 + $0x160] sm:$0xff] %v539
    %902 = vst [vmem:[#allocation2 + $0x168] sm:$0xff] %v544
    %903 = vst [vmem:[#allocation2 + $0x170] sm:$0xff] %v549
    %904 = vst [vmem:[#allocation2 + $0x178] sm:$0xff] %v554
    %905 = vst [vmem:[#allocation2 + $0x180] sm:$0xff] %v559
    %906 = vst [vmem:[#allocation2 + $0x188] sm:$0xff] %v564
    %907 = vst [vmem:[#allocation2 + $0x190] sm:$0xff] %v569
    %908 = vst [vmem:[#allocation2 + $0x198] sm:$0xff] %v574
    %909 = vst [vmem:[#allocation2 + $0x1a0] sm:$0xff] %v579
    %910 = vst [vmem:[#allocation2 + $0x1a8] sm:$0xff] %v584
    %911 = vst [vmem:[#allocation2 + $0x1b0] sm:$0xff] %v589
    %912 = vst [vmem:[#allocation2 + $0x1b8] sm:$0xff] %v594
    %913 = vst [vmem:[#allocation2 + $0x1c0] sm:$0xff] %v599
    %914 = vst [vmem:[#allocation2 + $0x1c8] sm:$0xff] %v604
    %915 = vst [vmem:[#allocation2 + $0x1d0] sm:$0xff] %v609
    %916 = vst [vmem:[#allocation2 + $0x1d8] sm:$0xff] %v614
    %917 = vst [vmem:[#allocation2 + $0x1e0] sm:$0xff] %v619
    %918 = vst [vmem:[#allocation2 + $0x1e8] sm:$0xff] %v624
    %919 = vst [vmem:[#allocation2 + $0x1f0] sm:$0xff] %v629
    %920 = vst [vmem:[#allocation2 + $0x1f8] sm:$0xff] %v634
    %921 = vst [vmem:[#allocation2 + $0x200] sm:$0xff] %v639
    %922 = vst [vmem:[#allocation2 + $0x208] sm:$0xff] %v644
    %923 = vst [vmem:[#allocation2 + $0x210] sm:$0xff] %v649
    %924 = vst [vmem:[#allocation2 + $0x218] sm:$0xff] %v654
    %925 = vst [vmem:[#allocation2 + $0x220] sm:$0xff] %v659
    %926 = vst [vmem:[#allocation2 + $0x228] sm:$0xff] %v664
    %927 = vst [vmem:[#allocation2 + $0x230] sm:$0xff] %v669
    %928 = vst [vmem:[#allocation2 + $0x238] sm:$0xff] %v674
    %929 = vst [vmem:[#allocation2 + $0x240] sm:$0xff] %v679
    %930 = vst [vmem:[#allocation2 + $0x248] sm:$0xff] %v684
    %931 = vst [vmem:[#allocation2 + $0x250] sm:$0xff] %v689
    %932 = vst [vmem:[#allocation2 + $0x258] sm:$0xff] %v694
    %933 = vst [vmem:[#allocation2 + $0x260] sm:$0xff] %v699
    %934 = vst [vmem:[#allocation2 + $0x268] sm:$0xff] %v704
    %935 = vst [vmem:[#allocation2 + $0x270] sm:$0xff] %v709
    %936 = vst [vmem:[#allocation2 + $0x278] sm:$0xff] %v714
    %937 = vst [vmem:[#allocation2 + $0x280] sm:$0xff] %v719
    %938 = vst [vmem:[#allocation2 + $0x288] sm:$0xff] %v724
    %939 = vst [vmem:[#allocation2 + $0x290] sm:$0xff] %v729
    %940 = vst [vmem:[#allocation2 + $0x298] sm:$0xff] %v734
    %941 = vst [vmem:[#allocation2 + $0x2a0] sm:$0xff] %v739
    %942 = vst [vmem:[#allocation2 + $0x2a8] sm:$0xff] %v744
    %943 = vst [vmem:[#allocation2 + $0x2b0] sm:$0xff] %v749
    %944 = vst [vmem:[#allocation2 + $0x2b8] sm:$0xff] %v754
    %945 = vst [vmem:[#allocation2 + $0x2c0] sm:$0xff] %v759
    %946 = vst [vmem:[#allocation2 + $0x2c8] sm:$0xff] %v764
    %947 = vst [vmem:[#allocation2 + $0x2d0] sm:$0xff] %v769
    %948 = vst [vmem:[#allocation2 + $0x2d8] sm:$0xff] %v774
    %949 = vst [vmem:[#allocation2 + $0x2e0] sm:$0xff] %v779
    %950 = vst [vmem:[#allocation2 + $0x2e8] sm:$0xff] %v784
    %951 = vst [vmem:[#allocation2 + $0x2f0] sm:$0xff] %v789
    %952 = vst [vmem:[#allocation2 + $0x2f8] sm:$0xff] %v794
    %953 = vst [vmem:[#allocation2 + $0x300] sm:$0xff] %v799
    %954 = vst [vmem:[#allocation2 + $0x308] sm:$0xff] %v804
    %955 = vst [vmem:[#allocation2 + $0x310] sm:$0xff] %v809
    %956 = vst [vmem:[#allocation2 + $0x318] sm:$0xff] %v814
    %957 = vst [vmem:[#allocation2 + $0x320] sm:$0xff] %v819
    %958 = vst [vmem:[#allocation2 + $0x328] sm:$0xff] %v824
    %959 = vst [vmem:[#allocation2 + $0x330] sm:$0xff] %v829
    %960 = vst [vmem:[#allocation2 + $0x338] sm:$0xff] %v834
    %961 = vst [vmem:[#allocation2 + $0x340] sm:$0xff] %v839
    %962 = vst [vmem:[#allocation2 + $0x348] sm:$0xff] %v844
    %963 = vst [vmem:[#allocation2 + $0x350] sm:$0xff] %v849
    %964 = vst [vmem:[#allocation2 + $0x358] sm:$0xff] %v854
    %v965 = vld [vmem:[#allocation2] sm:$0xff]
    %v966 = vld [vmem:[#allocation2 + $0x8] sm:$0xff]
    %v967 = vld [vmem:[#allocation2 + $0x10] sm:$0xff]
    %v968 = vld [vmem:[#allocation2 + $0x18] sm:$0xff]
    %v969 = vpack.c.bf16 %v966, %v965
    %v970 = vpack.c.bf16 %v968, %v967
    %v971 = vld [vmem:[#allocation9] sm:$0xf]
    %v972 = vld [vmem:[#allocation9 + $0x4] sm:$0xf]
    %v973 = vld [vmem:[#allocation9 + $0x8] sm:$0xf]
    %v974 = vld [vmem:[#allocation9 + $0xc] sm:$0xf]
    %v975 = vld [vmem:[#allocation9 + $0x10] sm:$0xf]
    %v976 = vld [vmem:[#allocation9 + $0x14] sm:$0xf]
    %v977 = vld [vmem:[#allocation9 + $0x18] sm:$0xf]
    %v978 = vld [vmem:[#allocation9 + $0x1c] sm:$0xf]
    %v979 = vld [vmem:[#allocation9 + $0x20] sm:$0xf]
    %v980 = vld [vmem:[#allocation9 + $0x24] sm:$0xf]
    %v981 = vld [vmem:[#allocation9 + $0x28] sm:$0xf]
    %v982 = vld [vmem:[#allocation9 + $0x2c] sm:$0xf]
    %v983 = vld [vmem:[#allocation9 + $0x30] sm:$0xf]
    %v984 = vld [vmem:[#allocation9 + $0x34] sm:$0xf]
    %v985 = vld [vmem:[#allocation9 + $0x38] sm:$0xf]
    %v986 = vld [vmem:[#allocation9 + $0x3c] sm:$0xf]
    %v987 = vld [vmem:[#allocation2 + $0x20] sm:$0xff]
    %v988 = vld [vmem:[#allocation2 + $0x28] sm:$0xff]
    %v989 = vld [vmem:[#allocation2 + $0x30] sm:$0xff]
    %v990 = vld [vmem:[#allocation2 + $0x38] sm:$0xff]
    %v991 = vpack.c.bf16 %v988, %v987
    %v992 = vpack.c.bf16 %v990, %v989
    %s993 = scalar_lea.vmem [#allocation9], 64
    %v994 = vld [vmem:[%s993] sm:$0xf]
    %v995 = vld [vmem:[%s993 + $0x4] sm:$0xf]
    %v996 = vld [vmem:[%s993 + $0x8] sm:$0xf]
    %v997 = vld [vmem:[%s993 + $0xc] sm:$0xf]
    %v998 = vld [vmem:[%s993 + $0x10] sm:$0xf]
    %v999 = vld [vmem:[%s993 + $0x14] sm:$0xf]
    %v1000 = vld [vmem:[%s993 + $0x18] sm:$0xf]
    %v1001 = vld [vmem:[%s993 + $0x1c] sm:$0xf]
    %v1002 = vld [vmem:[%s993 + $0x20] sm:$0xf]
    %v1003 = vld [vmem:[%s993 + $0x24] sm:$0xf]
    %v1004 = vld [vmem:[%s993 + $0x28] sm:$0xf]
    %v1005 = vld [vmem:[%s993 + $0x2c] sm:$0xf]
    %v1006 = vld [vmem:[%s993 + $0x30] sm:$0xf]
    %v1007 = vld [vmem:[%s993 + $0x34] sm:$0xf]
    %v1008 = vld [vmem:[%s993 + $0x38] sm:$0xf]
    %v1009 = vld [vmem:[%s993 + $0x3c] sm:$0xf]
    %v1026 = vunpack.c.l.b16 %v994
    %v1027 = vunpack.c.l.b16 %v995
    %v1028 = vunpack.c.l.b16 %v996
    %v1029 = vunpack.c.l.b16 %v997
    %v1030 = vunpack.c.l.b16 %v998
    %v1031 = vunpack.c.l.b16 %v999
    %v1032 = vunpack.c.l.b16 %v1000
    %v1033 = vunpack.c.l.b16 %v1001
    %v1034 = vunpack.c.l.b16 %v1002
    %v1035 = vunpack.c.l.b16 %v1003
    %v1036 = vunpack.c.l.b16 %v1004
    %v1037 = vunpack.c.l.b16 %v1005
    %v1038 = vunpack.c.l.b16 %v1006
    %v1039 = vunpack.c.l.b16 %v1007
    %v1040 = vunpack.c.l.b16 %v1008
    %v1041 = vunpack.c.l.b16 %v1009
    %v1042 = vpack.c.b16 %v1027, %v1026
    %v1043 = vpack.c.b16 %v1029, %v1028
    %v1044 = vpack.c.b16 %v1031, %v1030
    %v1045 = vpack.c.b16 %v1033, %v1032
    %v1046 = vpack.c.b16 %v1035, %v1034
    %v1047 = vpack.c.b16 %v1037, %v1036
    %v1048 = vpack.c.b16 %v1039, %v1038
    %v1049 = vpack.c.b16 %v1041, %v1040
    %1058 = vmatprep.subr.bf16.mxu0 0
    %1059 = vmatpush1.bf16.msra.mxu0 %v1049
    %1060 = vmatprep.subr.bf16.mxu0 0
    %1061 = vmatpush1.bf16.msra.mxu0 %v1048
    %1062 = vmatprep.subr.bf16.mxu0 0
    %1063 = vmatpush1.bf16.msra.mxu0 %v1047
    %1064 = vmatprep.subr.bf16.mxu0 0
    %1065 = vmatpush1.bf16.msra.mxu0 %v1046
    %1066 = vmatprep.subr.bf16.mxu0 0
    %1067 = vmatpush1.bf16.msra.mxu0 %v1045
    %1068 = vmatprep.subr.bf16.mxu0 0
    %1069 = vmatpush1.bf16.msra.mxu0 %v1044
    %1070 = vmatprep.subr.bf16.mxu0 0
    %1071 = vmatpush1.bf16.msra.mxu0 %v1043
    %1072 = vmatprep.subr.bf16.mxu0 0
    %1073 = vmatpush1.bf16.msra.mxu0 %v1042
    %1074 = vmatprep.subr.bf16.mxu0 0
    %1075 = vmatpush2.bf16.msra.mxu0 0
    %1076 = vmatprep.subr.bf16.mxu0 0
    %1077 = vmatpush2.bf16.msra.mxu0 0
    %1078 = vmatprep.subr.bf16.mxu0 0
    %1079 = vmatpush2.bf16.msra.mxu0 0
    %1080 = vmatprep.subr.bf16.mxu0 0
    %1081 = vmatpush2.bf16.msra.mxu0 0
    %1082 = vmatprep.subr.bf16.mxu0 0
    %1083 = vmatpush2.bf16.msra.mxu0 0
    %1084 = vmatprep.subr.bf16.mxu0 0
    %1085 = vmatpush2.bf16.msra.mxu0 0
    %1086 = vmatprep.subr.bf16.mxu0 0
    %1087 = vmatpush2.bf16.msra.mxu0 0
    %1088 = vmatprep.subr.bf16.mxu0 0
    %1089 = vmatpush2.bf16.msra.mxu0 0
    %1090 = vmatprep.mubr.bf16.mxu0 0
    %1091 = vmatmul.mubr.bf16.gmra.mxu0 %v991
    %v1092 = vpop.f32.mrf.mxu0
    %v1093 = vadd.f32 0.0, %v1092
    %v1094 = vpop.f32.mrf.mxu0
    %v1095 = vpop.f32.mrf.mxu0
    %v1096 = vadd.f32 0.0, %v1095
    %v1097 = vpop.f32.mrf.mxu0
    %1098 = vmatprep.mubr.bf16.mxu0 0
    %1099 = vmatmul.mubr.bf16.gmra.mxu0 %v992
    %v1100 = vpop.f32.mrf.mxu0
    %v1101 = vadd.f32 0.0, %v1100
    %v1102 = vpop.f32.mrf.mxu0
    %v1103 = vpop.f32.mrf.mxu0
    %v1104 = vadd.f32 0.0, %v1103
    %v1105 = vpop.f32.mrf.mxu0
    %1106 = vdwg.mxu0
    %v1123 = vunpack.c.l.b16 %v971
    %v1124 = vunpack.c.l.b16 %v972
    %v1125 = vunpack.c.l.b16 %v973
    %v1126 = vunpack.c.l.b16 %v974
    %v1127 = vunpack.c.l.b16 %v975
    %v1128 = vunpack.c.l.b16 %v976
    %v1129 = vunpack.c.l.b16 %v977
    %v1130 = vunpack.c.l.b16 %v978
    %v1131 = vunpack.c.l.b16 %v979
    %v1132 = vunpack.c.l.b16 %v980
    %v1133 = vunpack.c.l.b16 %v981
    %v1134 = vunpack.c.l.b16 %v982
    %v1135 = vunpack.c.l.b16 %v983
    %v1136 = vunpack.c.l.b16 %v984
    %v1137 = vunpack.c.l.b16 %v985
    %v1138 = vunpack.c.l.b16 %v986
    %v1139 = vpack.c.b16 %v1124, %v1123
    %v1140 = vpack.c.b16 %v1126, %v1125
    %v1141 = vpack.c.b16 %v1128, %v1127
    %v1142 = vpack.c.b16 %v1130, %v1129
    %v1143 = vpack.c.b16 %v1132, %v1131
    %v1144 = vpack.c.b16 %v1134, %v1133
    %v1145 = vpack.c.b16 %v1136, %v1135
    %v1146 = vpack.c.b16 %v1138, %v1137
    %1155 = vmatprep.subr.bf16.mxu0 0
    %1156 = vmatpush1.bf16.msra.mxu0 %v1146
    %1157 = vmatprep.subr.bf16.mxu0 0
    %1158 = vmatpush1.bf16.msra.mxu0 %v1145
    %1159 = vmatprep.subr.bf16.mxu0 0
    %1160 = vmatpush1.bf16.msra.mxu0 %v1144
    %1161 = vmatprep.subr.bf16.mxu0 0
    %1162 = vmatpush1.bf16.msra.mxu0 %v1143
    %1163 = vmatprep.subr.bf16.mxu0 0
    %1164 = vmatpush1.bf16.msra.mxu0 %v1142
    %1165 = vmatprep.subr.bf16.mxu0 0
    %1166 = vmatpush1.bf16.msra.mxu0 %v1141
    %1167 = vmatprep.subr.bf16.mxu0 0
    %1168 = vmatpush1.bf16.msra.mxu0 %v1140
    %1169 = vmatprep.subr.bf16.mxu0 0
    %1170 = vmatpush1.bf16.msra.mxu0 %v1139
    %1171 = vmatprep.subr.bf16.mxu0 0
    %1172 = vmatpush2.bf16.msra.mxu0 0
    %1173 = vmatprep.subr.bf16.mxu0 0
    %1174 = vmatpush2.bf16.msra.mxu0 0
    %1175 = vmatprep.subr.bf16.mxu0 0
    %1176 = vmatpush2.bf16.msra.mxu0 0
    %1177 = vmatprep.subr.bf16.mxu0 0
    %1178 = vmatpush2.bf16.msra.mxu0 0
    %1179 = vmatprep.subr.bf16.mxu0 0
    %1180 = vmatpush2.bf16.msra.mxu0 0
    %1181 = vmatprep.subr.bf16.mxu0 0
    %1182 = vmatpush2.bf16.msra.mxu0 0
    %1183 = vmatprep.subr.bf16.mxu0 0
    %1184 = vmatpush2.bf16.msra.mxu0 0
    %1185 = vmatprep.subr.bf16.mxu0 0
    %1186 = vmatpush2.bf16.msra.mxu0 0
    %1187 = vmatprep.mubr.bf16.mxu0 0
    %1188 = vmatmul.mubr.bf16.gmra.mxu0 %v969
    %v1189 = vpop.f32.mrf.mxu0
    %v1190 = vadd.f32 %v1093, %v1189
    %v1191 = vpop.f32.mrf.mxu0
    %v1192 = vpop.f32.mrf.mxu0
    %v1193 = vadd.f32 %v1096, %v1192
    %v1194 = vpop.f32.mrf.mxu0
    %1195 = vmatprep.mubr.bf16.mxu0 0
    %1196 = vmatmul.mubr.bf16.gmra.mxu0 %v970
    %v1197 = vpop.f32.mrf.mxu0
    %v1198 = vadd.f32 %v1101, %v1197
    %v1199 = vpop.f32.mrf.mxu0
    %v1200 = vpop.f32.mrf.mxu0
    %v1201 = vadd.f32 %v1104, %v1200
    %v1202 = vpop.f32.mrf.mxu0
    %1203 = vdwg.mxu0
    %v1204 = vld [vmem:[#allocation2 + $0x40] sm:$0xff]
    %v1205 = vld [vmem:[#allocation2 + $0x48] sm:$0xff]
    %v1206 = vld [vmem:[#allocation2 + $0x50] sm:$0xff]
    %v1207 = vld [vmem:[#allocation2 + $0x58] sm:$0xff]
    %v1208 = vpack.c.bf16 %v1205, %v1204
    %v1209 = vpack.c.bf16 %v1207, %v1206
    %s1210 = scalar_lea.vmem [#allocation9], 128
    %v1211 = vld [vmem:[%s1210] sm:$0xf]
    %v1212 = vld [vmem:[%s1210 + $0x4] sm:$0xf]
    %v1213 = vld [vmem:[%s1210 + $0x8] sm:$0xf]
    %v1214 = vld [vmem:[%s1210 + $0xc] sm:$0xf]
    %v1215 = vld [vmem:[%s1210 + $0x10] sm:$0xf]
    %v1216 = vld [vmem:[%s1210 + $0x14] sm:$0xf]
    %v1217 = vld [vmem:[%s1210 + $0x18] sm:$0xf]
    %v1218 = vld [vmem:[%s1210 + $0x1c] sm:$0xf]
    %v1219 = vld [vmem:[%s1210 + $0x20] sm:$0xf]
    %v1220 = vld [vmem:[%s1210 + $0x24] sm:$0xf]
    %v1221 = vld [vmem:[%s1210 + $0x28] sm:$0xf]
    %v1222 = vld [vmem:[%s1210 + $0x2c] sm:$0xf]
    %v1223 = vld [vmem:[%s1210 + $0x30] sm:$0xf]
    %v1224 = vld [vmem:[%s1210 + $0x34] sm:$0xf]
    %v1225 = vld [vmem:[%s1210 + $0x38] sm:$0xf]
    %v1226 = vld [vmem:[%s1210 + $0x3c] sm:$0xf]
    %v1243 = vunpack.c.l.b16 %v1211
    %v1244 = vunpack.c.l.b16 %v1212
    %v1245 = vunpack.c.l.b16 %v1213
    %v1246 = vunpack.c.l.b16 %v1214
    %v1247 = vunpack.c.l.b16 %v1215
    %v1248 = vunpack.c.l.b16 %v1216
    %v1249 = vunpack.c.l.b16 %v1217
    %v1250 = vunpack.c.l.b16 %v1218
    %v1251 = vunpack.c.l.b16 %v1219
    %v1252 = vunpack.c.l.b16 %v1220
    %v1253 = vunpack.c.l.b16 %v1221
    %v1254 = vunpack.c.l.b16 %v1222
    %v1255 = vunpack.c.l.b16 %v1223
    %v1256 = vunpack.c.l.b16 %v1224
    %v1257 = vunpack.c.l.b16 %v1225
    %v1258 = vunpack.c.l.b16 %v1226
    %v1259 = vpack.c.b16 %v1244, %v1243
    %v1260 = vpack.c.b16 %v1246, %v1245
    %v1261 = vpack.c.b16 %v1248, %v1247
    %v1262 = vpack.c.b16 %v1250, %v1249
    %v1263 = vpack.c.b16 %v1252, %v1251
    %v1264 = vpack.c.b16 %v1254, %v1253
    %v1265 = vpack.c.b16 %v1256, %v1255
    %v1266 = vpack.c.b16 %v1258, %v1257
    %1275 = vmatprep.subr.bf16.mxu0 0
    %1276 = vmatpush1.bf16.msra.mxu0 %v1266
    %1277 = vmatprep.subr.bf16.mxu0 0
    %1278 = vmatpush1.bf16.msra.mxu0 %v1265
    %1279 = vmatprep.subr.bf16.mxu0 0
    %1280 = vmatpush1.bf16.msra.mxu0 %v1264
    %1281 = vmatprep.subr.bf16.mxu0 0
    %1282 = vmatpush1.bf16.msra.mxu0 %v1263
    %1283 = vmatprep.subr.bf16.mxu0 0
    %1284 = vmatpush1.bf16.msra.mxu0 %v1262
    %1285 = vmatprep.subr.bf16.mxu0 0
    %1286 = vmatpush1.bf16.msra.mxu0 %v1261
    %1287 = vmatprep.subr.bf16.mxu0 0
    %1288 = vmatpush1.bf16.msra.mxu0 %v1260
    %1289 = vmatprep.subr.bf16.mxu0 0
    %1290 = vmatpush1.bf16.msra.mxu0 %v1259
    %1291 = vmatprep.subr.bf16.mxu0 0
    %1292 = vmatpush2.bf16.msra.mxu0 0
    %1293 = vmatprep.subr.bf16.mxu0 0
    %1294 = vmatpush2.bf16.msra.mxu0 0
    %1295 = vmatprep.subr.bf16.mxu0 0
    %1296 = vmatpush2.bf16.msra.mxu0 0
    %1297 = vmatprep.subr.bf16.mxu0 0
    %1298 = vmatpush2.bf16.msra.mxu0 0
    %1299 = vmatprep.subr.bf16.mxu0 0
    %1300 = vmatpush2.bf16.msra.mxu0 0
    %1301 = vmatprep.subr.bf16.mxu0 0
    %1302 = vmatpush2.bf16.msra.mxu0 0
    %1303 = vmatprep.subr.bf16.mxu0 0
    %1304 = vmatpush2.bf16.msra.mxu0 0
    %1305 = vmatprep.subr.bf16.mxu0 0
    %1306 = vmatpush2.bf16.msra.mxu0 0
    %1307 = vmatprep.mubr.bf16.mxu0 0
    %1308 = vmatmul.mubr.bf16.gmra.mxu0 %v1208
    %v1309 = vpop.f32.mrf.mxu0
    %v1310 = vadd.f32 0.0, %v1309
    %v1311 = vpop.f32.mrf.mxu0
    %v1312 = vpop.f32.mrf.mxu0
    %v1313 = vadd.f32 0.0, %v1312
    %v1314 = vpop.f32.mrf.mxu0
    %1315 = vmatprep.mubr.bf16.mxu0 0
    %1316 = vmatmul.mubr.bf16.gmra.mxu0 %v1209
    %v1317 = vpop.f32.mrf.mxu0
    %v1318 = vadd.f32 0.0, %v1317
    %v1319 = vpop.f32.mrf.mxu0
    %v1320 = vpop.f32.mrf.mxu0
    %v1321 = vadd.f32 0.0, %v1320
    %v1322 = vpop.f32.mrf.mxu0
    %1323 = vdwg.mxu0
    %v1324 = vadd.f32 %v1190, %v1310
    %v1325 = vadd.f32 %v1193, %v1313
    %v1326 = vadd.f32 %v1198, %v1318
    %v1327 = vadd.f32 %v1201, %v1321
    %v1328 = vld [vmem:[#allocation2 + $0x60] sm:$0xff]
    %v1329 = vld [vmem:[#allocation2 + $0x68] sm:$0xff]
    %v1330 = vld [vmem:[#allocation2 + $0x70] sm:$0xff]
    %v1331 = vld [vmem:[#allocation2 + $0x78] sm:$0xff]
    %v1332 = vpack.c.bf16 %v1329, %v1328
    %v1333 = vpack.c.bf16 %v1331, %v1330
    %s1334 = scalar_lea.vmem [#allocation9], 192
    %v1335 = vld [vmem:[%s1334] sm:$0xf]
    %v1336 = vld [vmem:[%s1334 + $0x4] sm:$0xf]
    %v1337 = vld [vmem:[%s1334 + $0x8] sm:$0xf]
    %v1338 = vld [vmem:[%s1334 + $0xc] sm:$0xf]
    %v1339 = vld [vmem:[%s1334 + $0x10] sm:$0xf]
    %v1340 = vld [vmem:[%s1334 + $0x14] sm:$0xf]
    %v1341 = vld [vmem:[%s1334 + $0x18] sm:$0xf]
    %v1342 = vld [vmem:[%s1334 + $0x1c] sm:$0xf]
    %v1343 = vld [vmem:[%s1334 + $0x20] sm:$0xf]
    %v1344 = vld [vmem:[%s1334 + $0x24] sm:$0xf]
    %v1345 = vld [vmem:[%s1334 + $0x28] sm:$0xf]
    %v1346 = vld [vmem:[%s1334 + $0x2c] sm:$0xf]
    %v1347 = vld [vmem:[%s1334 + $0x30] sm:$0xf]
    %v1348 = vld [vmem:[%s1334 + $0x34] sm:$0xf]
    %v1349 = vld [vmem:[%s1334 + $0x38] sm:$0xf]
    %v1350 = vld [vmem:[%s1334 + $0x3c] sm:$0xf]
    %v1367 = vunpack.c.l.b16 %v1335
    %v1368 = vunpack.c.l.b16 %v1336
    %v1369 = vunpack.c.l.b16 %v1337
    %v1370 = vunpack.c.l.b16 %v1338
    %v1371 = vunpack.c.l.b16 %v1339
    %v1372 = vunpack.c.l.b16 %v1340
    %v1373 = vunpack.c.l.b16 %v1341
    %v1374 = vunpack.c.l.b16 %v1342
    %v1375 = vunpack.c.l.b16 %v1343
    %v1376 = vunpack.c.l.b16 %v1344
    %v1377 = vunpack.c.l.b16 %v1345
    %v1378 = vunpack.c.l.b16 %v1346
    %v1379 = vunpack.c.l.b16 %v1347
    %v1380 = vunpack.c.l.b16 %v1348
    %v1381 = vunpack.c.l.b16 %v1349
    %v1382 = vunpack.c.l.b16 %v1350
    %v1383 = vpack.c.b16 %v1368, %v1367
    %v1384 = vpack.c.b16 %v1370, %v1369
    %v1385 = vpack.c.b16 %v1372, %v1371
    %v1386 = vpack.c.b16 %v1374, %v1373
    %v1387 = vpack.c.b16 %v1376, %v1375
    %v1388 = vpack.c.b16 %v1378, %v1377
    %v1389 = vpack.c.b16 %v1380, %v1379
    %v1390 = vpack.c.b16 %v1382, %v1381
    %1399 = vmatprep.subr.bf16.mxu0 0
    %1400 = vmatpush1.bf16.msra.mxu0 %v1390
    %1401 = vmatprep.subr.bf16.mxu0 0
    %1402 = vmatpush1.bf16.msra.mxu0 %v1389
    %1403 = vmatprep.subr.bf16.mxu0 0
    %1404 = vmatpush1.bf16.msra.mxu0 %v1388
    %1405 = vmatprep.subr.bf16.mxu0 0
    %1406 = vmatpush1.bf16.msra.mxu0 %v1387
    %1407 = vmatprep.subr.bf16.mxu0 0
    %1408 = vmatpush1.bf16.msra.mxu0 %v1386
    %1409 = vmatprep.subr.bf16.mxu0 0
    %1410 = vmatpush1.bf16.msra.mxu0 %v1385
    %1411 = vmatprep.subr.bf16.mxu0 0
    %1412 = vmatpush1.bf16.msra.mxu0 %v1384
    %1413 = vmatprep.subr.bf16.mxu0 0
    %1414 = vmatpush1.bf16.msra.mxu0 %v1383
    %1415 = vmatprep.subr.bf16.mxu0 0
    %1416 = vmatpush2.bf16.msra.mxu0 0
    %1417 = vmatprep.subr.bf16.mxu0 0
    %1418 = vmatpush2.bf16.msra.mxu0 0
    %1419 = vmatprep.subr.bf16.mxu0 0
    %1420 = vmatpush2.bf16.msra.mxu0 0
    %1421 = vmatprep.subr.bf16.mxu0 0
    %1422 = vmatpush2.bf16.msra.mxu0 0
    %1423 = vmatprep.subr.bf16.mxu0 0
    %1424 = vmatpush2.bf16.msra.mxu0 0
    %1425 = vmatprep.subr.bf16.mxu0 0
    %1426 = vmatpush2.bf16.msra.mxu0 0
    %1427 = vmatprep.subr.bf16.mxu0 0
    %1428 = vmatpush2.bf16.msra.mxu0 0
    %1429 = vmatprep.subr.bf16.mxu0 0
    %1430 = vmatpush2.bf16.msra.mxu0 0
    %1431 = vmatprep.mubr.bf16.mxu0 0
    %1432 = vmatmul.mubr.bf16.gmra.mxu0 %v1332
    %v1433 = vpop.f32.mrf.mxu0
    %v1434 = vadd.f32 0.0, %v1433
    %v1435 = vpop.f32.mrf.mxu0
    %v1436 = vpop.f32.mrf.mxu0
    %v1437 = vadd.f32 0.0, %v1436
    %v1438 = vpop.f32.mrf.mxu0
    %1439 = vmatprep.mubr.bf16.mxu0 0
    %1440 = vmatmul.mubr.bf16.gmra.mxu0 %v1333
    %v1441 = vpop.f32.mrf.mxu0
    %v1442 = vadd.f32 0.0, %v1441
    %v1443 = vpop.f32.mrf.mxu0
    %v1444 = vpop.f32.mrf.mxu0
    %v1445 = vadd.f32 0.0, %v1444
    %v1446 = vpop.f32.mrf.mxu0
    %1447 = vdwg.mxu0
    %v1448 = vadd.f32 %v1324, %v1434
    %v1449 = vadd.f32 %v1325, %v1437
    %v1450 = vadd.f32 %v1326, %v1442
    %v1451 = vadd.f32 %v1327, %v1445
    %v1452 = vld [vmem:[#allocation2 + $0x80] sm:$0xff]
    %v1453 = vld [vmem:[#allocation2 + $0x88] sm:$0xff]
    %v1454 = vld [vmem:[#allocation2 + $0x90] sm:$0xff]
    %v1455 = vld [vmem:[#allocation2 + $0x98] sm:$0xff]
    %v1456 = vpack.c.bf16 %v1453, %v1452
    %v1457 = vpack.c.bf16 %v1455, %v1454
    %s1458 = scalar_lea.vmem [#allocation9], 256
    %v1459 = vld [vmem:[%s1458] sm:$0xf]
    %v1460 = vld [vmem:[%s1458 + $0x4] sm:$0xf]
    %v1461 = vld [vmem:[%s1458 + $0x8] sm:$0xf]
    %v1462 = vld [vmem:[%s1458 + $0xc] sm:$0xf]
    %v1463 = vld [vmem:[%s1458 + $0x10] sm:$0xf]
    %v1464 = vld [vmem:[%s1458 + $0x14] sm:$0xf]
    %v1465 = vld [vmem:[%s1458 + $0x18] sm:$0xf]
    %v1466 = vld [vmem:[%s1458 + $0x1c] sm:$0xf]
    %v1467 = vld [vmem:[%s1458 + $0x20] sm:$0xf]
    %v1468 = vld [vmem:[%s1458 + $0x24] sm:$0xf]
    %v1469 = vld [vmem:[%s1458 + $0x28] sm:$0xf]
    %v1470 = vld [vmem:[%s1458 + $0x2c] sm:$0xf]
    %v1471 = vld [vmem:[%s1458 + $0x30] sm:$0xf]
    %v1472 = vld [vmem:[%s1458 + $0x34] sm:$0xf]
    %v1473 = vld [vmem:[%s1458 + $0x38] sm:$0xf]
    %v1474 = vld [vmem:[%s1458 + $0x3c] sm:$0xf]
    %v1491 = vunpack.c.l.b16 %v1459
    %v1492 = vunpack.c.l.b16 %v1460
    %v1493 = vunpack.c.l.b16 %v1461
    %v1494 = vunpack.c.l.b16 %v1462
    %v1495 = vunpack.c.l.b16 %v1463
    %v1496 = vunpack.c.l.b16 %v1464
    %v1497 = vunpack.c.l.b16 %v1465
    %v1498 = vunpack.c.l.b16 %v1466
    %v1499 = vunpack.c.l.b16 %v1467
    %v1500 = vunpack.c.l.b16 %v1468
    %v1501 = vunpack.c.l.b16 %v1469
    %v1502 = vunpack.c.l.b16 %v1470
    %v1503 = vunpack.c.l.b16 %v1471
    %v1504 = vunpack.c.l.b16 %v1472
    %v1505 = vunpack.c.l.b16 %v1473
    %v1506 = vunpack.c.l.b16 %v1474
    %v1507 = vpack.c.b16 %v1492, %v1491
    %v1508 = vpack.c.b16 %v1494, %v1493
    %v1509 = vpack.c.b16 %v1496, %v1495
    %v1510 = vpack.c.b16 %v1498, %v1497
    %v1511 = vpack.c.b16 %v1500, %v1499
    %v1512 = vpack.c.b16 %v1502, %v1501
    %v1513 = vpack.c.b16 %v1504, %v1503
    %v1514 = vpack.c.b16 %v1506, %v1505
    %1523 = vmatprep.subr.bf16.mxu0 0
    %1524 = vmatpush1.bf16.msra.mxu0 %v1514
    %1525 = vmatprep.subr.bf16.mxu0 0
    %1526 = vmatpush1.bf16.msra.mxu0 %v1513
    %1527 = vmatprep.subr.bf16.mxu0 0
    %1528 = vmatpush1.bf16.msra.mxu0 %v1512
    %1529 = vmatprep.subr.bf16.mxu0 0
    %1530 = vmatpush1.bf16.msra.mxu0 %v1511
    %1531 = vmatprep.subr.bf16.mxu0 0
    %1532 = vmatpush1.bf16.msra.mxu0 %v1510
    %1533 = vmatprep.subr.bf16.mxu0 0
    %1534 = vmatpush1.bf16.msra.mxu0 %v1509
    %1535 = vmatprep.subr.bf16.mxu0 0
    %1536 = vmatpush1.bf16.msra.mxu0 %v1508
    %1537 = vmatprep.subr.bf16.mxu0 0
    %1538 = vmatpush1.bf16.msra.mxu0 %v1507
    %1539 = vmatprep.subr.bf16.mxu0 0
    %1540 = vmatpush2.bf16.msra.mxu0 0
    %1541 = vmatprep.subr.bf16.mxu0 0
    %1542 = vmatpush2.bf16.msra.mxu0 0
    %1543 = vmatprep.subr.bf16.mxu0 0
    %1544 = vmatpush2.bf16.msra.mxu0 0
    %1545 = vmatprep.subr.bf16.mxu0 0
    %1546 = vmatpush2.bf16.msra.mxu0 0
    %1547 = vmatprep.subr.bf16.mxu0 0
    %1548 = vmatpush2.bf16.msra.mxu0 0
    %1549 = vmatprep.subr.bf16.mxu0 0
    %1550 = vmatpush2.bf16.msra.mxu0 0
    %1551 = vmatprep.subr.bf16.mxu0 0
    %1552 = vmatpush2.bf16.msra.mxu0 0
    %1553 = vmatprep.subr.bf16.mxu0 0
    %1554 = vmatpush2.bf16.msra.mxu0 0
    %1555 = vmatprep.mubr.bf16.mxu0 0
    %1556 = vmatmul.mubr.bf16.gmra.mxu0 %v1456
    %v1557 = vpop.f32.mrf.mxu0
    %v1558 = vadd.f32 0.0, %v1557
    %v1559 = vpop.f32.mrf.mxu0
    %v1560 = vpop.f32.mrf.mxu0
    %v1561 = vadd.f32 0.0, %v1560
    %v1562 = vpop.f32.mrf.mxu0
    %1563 = vmatprep.mubr.bf16.mxu0 0
    %1564 = vmatmul.mubr.bf16.gmra.mxu0 %v1457
    %v1565 = vpop.f32.mrf.mxu0
    %v1566 = vadd.f32 0.0, %v1565
    %v1567 = vpop.f32.mrf.mxu0
    %v1568 = vpop.f32.mrf.mxu0
    %v1569 = vadd.f32 0.0, %v1568
    %v1570 = vpop.f32.mrf.mxu0
    %1571 = vdwg.mxu0
    %v1572 = vadd.f32 %v1448, %v1558
    %v1573 = vadd.f32 %v1449, %v1561
    %v1574 = vadd.f32 %v1450, %v1566
    %v1575 = vadd.f32 %v1451, %v1569
    %v1576 = vld [vmem:[#allocation2 + $0xa0] sm:$0xff]
    %v1577 = vld [vmem:[#allocation2 + $0xa8] sm:$0xff]
    %v1578 = vld [vmem:[#allocation2 + $0xb0] sm:$0xff]
    %v1579 = vld [vmem:[#allocation2 + $0xb8] sm:$0xff]
    %v1580 = vpack.c.bf16 %v1577, %v1576
    %v1581 = vpack.c.bf16 %v1579, %v1578
    %s1582 = scalar_lea.vmem [#allocation9], 320
    %v1583 = vld [vmem:[%s1582] sm:$0xf]
    %v1584 = vld [vmem:[%s1582 + $0x4] sm:$0xf]
    %v1585 = vld [vmem:[%s1582 + $0x8] sm:$0xf]
    %v1586 = vld [vmem:[%s1582 + $0xc] sm:$0xf]
    %v1587 = vld [vmem:[%s1582 + $0x10] sm:$0xf]
    %v1588 = vld [vmem:[%s1582 + $0x14] sm:$0xf]
    %v1589 = vld [vmem:[%s1582 + $0x18] sm:$0xf]
    %v1590 = vld [vmem:[%s1582 + $0x1c] sm:$0xf]
    %v1591 = vld [vmem:[%s1582 + $0x20] sm:$0xf]
    %v1592 = vld [vmem:[%s1582 + $0x24] sm:$0xf]
    %v1593 = vld [vmem:[%s1582 + $0x28] sm:$0xf]
    %v1594 = vld [vmem:[%s1582 + $0x2c] sm:$0xf]
    %v1595 = vld [vmem:[%s1582 + $0x30] sm:$0xf]
    %v1596 = vld [vmem:[%s1582 + $0x34] sm:$0xf]
    %v1597 = vld [vmem:[%s1582 + $0x38] sm:$0xf]
    %v1598 = vld [vmem:[%s1582 + $0x3c] sm:$0xf]
    %v1615 = vunpack.c.l.b16 %v1583
    %v1616 = vunpack.c.l.b16 %v1584
    %v1617 = vunpack.c.l.b16 %v1585
    %v1618 = vunpack.c.l.b16 %v1586
    %v1619 = vunpack.c.l.b16 %v1587
    %v1620 = vunpack.c.l.b16 %v1588
    %v1621 = vunpack.c.l.b16 %v1589
    %v1622 = vunpack.c.l.b16 %v1590
    %v1623 = vunpack.c.l.b16 %v1591
    %v1624 = vunpack.c.l.b16 %v1592
    %v1625 = vunpack.c.l.b16 %v1593
    %v1626 = vunpack.c.l.b16 %v1594
    %v1627 = vunpack.c.l.b16 %v1595
    %v1628 = vunpack.c.l.b16 %v1596
    %v1629 = vunpack.c.l.b16 %v1597
    %v1630 = vunpack.c.l.b16 %v1598
    %v1631 = vpack.c.b16 %v1616, %v1615
    %v1632 = vpack.c.b16 %v1618, %v1617
    %v1633 = vpack.c.b16 %v1620, %v1619
    %v1634 = vpack.c.b16 %v1622, %v1621
    %v1635 = vpack.c.b16 %v1624, %v1623
    %v1636 = vpack.c.b16 %v1626, %v1625
    %v1637 = vpack.c.b16 %v1628, %v1627
    %v1638 = vpack.c.b16 %v1630, %v1629
    %1647 = vmatprep.subr.bf16.mxu0 0
    %1648 = vmatpush1.bf16.msra.mxu0 %v1638
    %1649 = vmatprep.subr.bf16.mxu0 0
    %1650 = vmatpush1.bf16.msra.mxu0 %v1637
    %1651 = vmatprep.subr.bf16.mxu0 0
    %1652 = vmatpush1.bf16.msra.mxu0 %v1636
    %1653 = vmatprep.subr.bf16.mxu0 0
    %1654 = vmatpush1.bf16.msra.mxu0 %v1635
    %1655 = vmatprep.subr.bf16.mxu0 0
    %1656 = vmatpush1.bf16.msra.mxu0 %v1634
    %1657 = vmatprep.subr.bf16.mxu0 0
    %1658 = vmatpush1.bf16.msra.mxu0 %v1633
    %1659 = vmatprep.subr.bf16.mxu0 0
    %1660 = vmatpush1.bf16.msra.mxu0 %v1632
    %1661 = vmatprep.subr.bf16.mxu0 0
    %1662 = vmatpush1.bf16.msra.mxu0 %v1631
    %1663 = vmatprep.subr.bf16.mxu0 0
    %1664 = vmatpush2.bf16.msra.mxu0 0
    %1665 = vmatprep.subr.bf16.mxu0 0
    %1666 = vmatpush2.bf16.msra.mxu0 0
    %1667 = vmatprep.subr.bf16.mxu0 0
    %1668 = vmatpush2.bf16.msra.mxu0 0
    %1669 = vmatprep.subr.bf16.mxu0 0
    %1670 = vmatpush2.bf16.msra.mxu0 0
    %1671 = vmatprep.subr.bf16.mxu0 0
    %1672 = vmatpush2.bf16.msra.mxu0 0
    %1673 = vmatprep.subr.bf16.mxu0 0
    %1674 = vmatpush2.bf16.msra.mxu0 0
    %1675 = vmatprep.subr.bf16.mxu0 0
    %1676 = vmatpush2.bf16.msra.mxu0 0
    %1677 = vmatprep.subr.bf16.mxu0 0
    %1678 = vmatpush2.bf16.msra.mxu0 0
    %1679 = vmatprep.mubr.bf16.mxu0 0
    %1680 = vmatmul.mubr.bf16.gmra.mxu0 %v1580
    %v1681 = vpop.f32.mrf.mxu0
    %v1682 = vadd.f32 0.0, %v1681
    %v1683 = vpop.f32.mrf.mxu0
    %v1684 = vpop.f32.mrf.mxu0
    %v1685 = vadd.f32 0.0, %v1684
    %v1686 = vpop.f32.mrf.mxu0
    %1687 = vmatprep.mubr.bf16.mxu0 0
    %1688 = vmatmul.mubr.bf16.gmra.mxu0 %v1581
    %v1689 = vpop.f32.mrf.mxu0
    %v1690 = vadd.f32 0.0, %v1689
    %v1691 = vpop.f32.mrf.mxu0
    %v1692 = vpop.f32.mrf.mxu0
    %v1693 = vadd.f32 0.0, %v1692
    %v1694 = vpop.f32.mrf.mxu0
    %1695 = vdwg.mxu0
    %v1696 = vadd.f32 %v1572, %v1682
    %v1697 = vadd.f32 %v1573, %v1685
    %v1698 = vadd.f32 %v1574, %v1690
    %v1699 = vadd.f32 %v1575, %v1693
    %v1700 = vld [vmem:[#allocation2 + $0xc0] sm:$0xff]
    %v1701 = vld [vmem:[#allocation2 + $0xc8] sm:$0xff]
    %v1702 = vld [vmem:[#allocation2 + $0xd0] sm:$0xff]
    %v1703 = vld [vmem:[#allocation2 + $0xd8] sm:$0xff]
    %v1704 = vpack.c.bf16 %v1701, %v1700
    %v1705 = vpack.c.bf16 %v1703, %v1702
    %s1706 = scalar_lea.vmem [#allocation9], 384
    %v1707 = vld [vmem:[%s1706] sm:$0xf]
    %v1708 = vld [vmem:[%s1706 + $0x4] sm:$0xf]
    %v1709 = vld [vmem:[%s1706 + $0x8] sm:$0xf]
    %v1710 = vld [vmem:[%s1706 + $0xc] sm:$0xf]
    %v1711 = vld [vmem:[%s1706 + $0x10] sm:$0xf]
    %v1712 = vld [vmem:[%s1706 + $0x14] sm:$0xf]
    %v1713 = vld [vmem:[%s1706 + $0x18] sm:$0xf]
    %v1714 = vld [vmem:[%s1706 + $0x1c] sm:$0xf]
    %v1715 = vld [vmem:[%s1706 + $0x20] sm:$0xf]
    %v1716 = vld [vmem:[%s1706 + $0x24] sm:$0xf]
    %v1717 = vld [vmem:[%s1706 + $0x28] sm:$0xf]
    %v1718 = vld [vmem:[%s1706 + $0x2c] sm:$0xf]
    %v1719 = vld [vmem:[%s1706 + $0x30] sm:$0xf]
    %v1720 = vld [vmem:[%s1706 + $0x34] sm:$0xf]
    %v1721 = vld [vmem:[%s1706 + $0x38] sm:$0xf]
    %v1722 = vld [vmem:[%s1706 + $0x3c] sm:$0xf]
    %v1739 = vunpack.c.l.b16 %v1707
    %v1740 = vunpack.c.l.b16 %v1708
    %v1741 = vunpack.c.l.b16 %v1709
    %v1742 = vunpack.c.l.b16 %v1710
    %v1743 = vunpack.c.l.b16 %v1711
    %v1744 = vunpack.c.l.b16 %v1712
    %v1745 = vunpack.c.l.b16 %v1713
    %v1746 = vunpack.c.l.b16 %v1714
    %v1747 = vunpack.c.l.b16 %v1715
    %v1748 = vunpack.c.l.b16 %v1716
    %v1749 = vunpack.c.l.b16 %v1717
    %v1750 = vunpack.c.l.b16 %v1718
    %v1751 = vunpack.c.l.b16 %v1719
    %v1752 = vunpack.c.l.b16 %v1720
    %v1753 = vunpack.c.l.b16 %v1721
    %v1754 = vunpack.c.l.b16 %v1722
    %v1755 = vpack.c.b16 %v1740, %v1739
    %v1756 = vpack.c.b16 %v1742, %v1741
    %v1757 = vpack.c.b16 %v1744, %v1743
    %v1758 = vpack.c.b16 %v1746, %v1745
    %v1759 = vpack.c.b16 %v1748, %v1747
    %v1760 = vpack.c.b16 %v1750, %v1749
    %v1761 = vpack.c.b16 %v1752, %v1751
    %v1762 = vpack.c.b16 %v1754, %v1753
    %1771 = vmatprep.subr.bf16.mxu0 0
    %1772 = vmatpush1.bf16.msra.mxu0 %v1762
    %1773 = vmatprep.subr.bf16.mxu0 0
    %1774 = vmatpush1.bf16.msra.mxu0 %v1761
    %1775 = vmatprep.subr.bf16.mxu0 0
    %1776 = vmatpush1.bf16.msra.mxu0 %v1760
    %1777 = vmatprep.subr.bf16.mxu0 0
    %1778 = vmatpush1.bf16.msra.mxu0 %v1759
    %1779 = vmatprep.subr.bf16.mxu0 0
    %1780 = vmatpush1.bf16.msra.mxu0 %v1758
    %1781 = vmatprep.subr.bf16.mxu0 0
    %1782 = vmatpush1.bf16.msra.mxu0 %v1757
    %1783 = vmatprep.subr.bf16.mxu0 0
    %1784 = vmatpush1.bf16.msra.mxu0 %v1756
    %1785 = vmatprep.subr.bf16.mxu0 0
    %1786 = vmatpush1.bf16.msra.mxu0 %v1755
    %1787 = vmatprep.subr.bf16.mxu0 0
    %1788 = vmatpush2.bf16.msra.mxu0 0
    %1789 = vmatprep.subr.bf16.mxu0 0
    %1790 = vmatpush2.bf16.msra.mxu0 0
    %1791 = vmatprep.subr.bf16.mxu0 0
    %1792 = vmatpush2.bf16.msra.mxu0 0
    %1793 = vmatprep.subr.bf16.mxu0 0
    %1794 = vmatpush2.bf16.msra.mxu0 0
    %1795 = vmatprep.subr.bf16.mxu0 0
    %1796 = vmatpush2.bf16.msra.mxu0 0
    %1797 = vmatprep.subr.bf16.mxu0 0
    %1798 = vmatpush2.bf16.msra.mxu0 0
    %1799 = vmatprep.subr.bf16.mxu0 0
    %1800 = vmatpush2.bf16.msra.mxu0 0
    %1801 = vmatprep.subr.bf16.mxu0 0
    %1802 = vmatpush2.bf16.msra.mxu0 0
    %1803 = vmatprep.mubr.bf16.mxu0 0
    %1804 = vmatmul.mubr.bf16.gmra.mxu0 %v1704
    %v1805 = vpop.f32.mrf.mxu0
    %v1806 = vadd.f32 0.0, %v1805
    %v1807 = vpop.f32.mrf.mxu0
    %v1808 = vpop.f32.mrf.mxu0
    %v1809 = vadd.f32 0.0, %v1808
    %v1810 = vpop.f32.mrf.mxu0
    %1811 = vmatprep.mubr.bf16.mxu0 0
    %1812 = vmatmul.mubr.bf16.gmra.mxu0 %v1705
    %v1813 = vpop.f32.mrf.mxu0
    %v1814 = vadd.f32 0.0, %v1813
    %v1815 = vpop.f32.mrf.mxu0
    %v1816 = vpop.f32.mrf.mxu0
    %v1817 = vadd.f32 0.0, %v1816
    %v1818 = vpop.f32.mrf.mxu0
    %1819 = vdwg.mxu0
    %v1820 = vadd.f32 %v1696, %v1806
    %v1821 = vadd.f32 %v1697, %v1809
    %v1822 = vadd.f32 %v1698, %v1814
    %v1823 = vadd.f32 %v1699, %v1817
    %v1824 = vld [vmem:[#allocation2 + $0xe0] sm:$0xff]
    %v1825 = vld [vmem:[#allocation2 + $0xe8] sm:$0xff]
    %v1826 = vld [vmem:[#allocation2 + $0xf0] sm:$0xff]
    %v1827 = vld [vmem:[#allocation2 + $0xf8] sm:$0xff]
    %v1828 = vpack.c.bf16 %v1825, %v1824
    %v1829 = vpack.c.bf16 %v1827, %v1826
    %s1830 = scalar_lea.vmem [#allocation9], 448
    %v1831 = vld [vmem:[%s1830] sm:$0xf]
    %v1832 = vld [vmem:[%s1830 + $0x4] sm:$0xf]
    %v1833 = vld [vmem:[%s1830 + $0x8] sm:$0xf]
    %v1834 = vld [vmem:[%s1830 + $0xc] sm:$0xf]
    %v1835 = vld [vmem:[%s1830 + $0x10] sm:$0xf]
    %v1836 = vld [vmem:[%s1830 + $0x14] sm:$0xf]
    %v1837 = vld [vmem:[%s1830 + $0x18] sm:$0xf]
    %v1838 = vld [vmem:[%s1830 + $0x1c] sm:$0xf]
    %v1839 = vld [vmem:[%s1830 + $0x20] sm:$0xf]
    %v1840 = vld [vmem:[%s1830 + $0x24] sm:$0xf]
    %v1841 = vld [vmem:[%s1830 + $0x28] sm:$0xf]
    %v1842 = vld [vmem:[%s1830 + $0x2c] sm:$0xf]
    %v1843 = vld [vmem:[%s1830 + $0x30] sm:$0xf]
    %v1844 = vld [vmem:[%s1830 + $0x34] sm:$0xf]
    %v1845 = vld [vmem:[%s1830 + $0x38] sm:$0xf]
    %v1846 = vld [vmem:[%s1830 + $0x3c] sm:$0xf]
    %v1863 = vunpack.c.l.b16 %v1831
    %v1864 = vunpack.c.l.b16 %v1832
    %v1865 = vunpack.c.l.b16 %v1833
    %v1866 = vunpack.c.l.b16 %v1834
    %v1867 = vunpack.c.l.b16 %v1835
    %v1868 = vunpack.c.l.b16 %v1836
    %v1869 = vunpack.c.l.b16 %v1837
    %v1870 = vunpack.c.l.b16 %v1838
    %v1871 = vunpack.c.l.b16 %v1839
    %v1872 = vunpack.c.l.b16 %v1840
    %v1873 = vunpack.c.l.b16 %v1841
    %v1874 = vunpack.c.l.b16 %v1842
    %v1875 = vunpack.c.l.b16 %v1843
    %v1876 = vunpack.c.l.b16 %v1844
    %v1877 = vunpack.c.l.b16 %v1845
    %v1878 = vunpack.c.l.b16 %v1846
    %v1879 = vpack.c.b16 %v1864, %v1863
    %v1880 = vpack.c.b16 %v1866, %v1865
    %v1881 = vpack.c.b16 %v1868, %v1867
    %v1882 = vpack.c.b16 %v1870, %v1869
    %v1883 = vpack.c.b16 %v1872, %v1871
    %v1884 = vpack.c.b16 %v1874, %v1873
    %v1885 = vpack.c.b16 %v1876, %v1875
    %v1886 = vpack.c.b16 %v1878, %v1877
    %1895 = vmatprep.subr.bf16.mxu0 0
    %1896 = vmatpush1.bf16.msra.mxu0 %v1886
    %1897 = vmatprep.subr.bf16.mxu0 0
    %1898 = vmatpush1.bf16.msra.mxu0 %v1885
    %1899 = vmatprep.subr.bf16.mxu0 0
    %1900 = vmatpush1.bf16.msra.mxu0 %v1884
    %1901 = vmatprep.subr.bf16.mxu0 0
    %1902 = vmatpush1.bf16.msra.mxu0 %v1883
    %1903 = vmatprep.subr.bf16.mxu0 0
    %1904 = vmatpush1.bf16.msra.mxu0 %v1882
    %1905 = vmatprep.subr.bf16.mxu0 0
    %1906 = vmatpush1.bf16.msra.mxu0 %v1881
    %1907 = vmatprep.subr.bf16.mxu0 0
    %1908 = vmatpush1.bf16.msra.mxu0 %v1880
    %1909 = vmatprep.subr.bf16.mxu0 0
    %1910 = vmatpush1.bf16.msra.mxu0 %v1879
    %1911 = vmatprep.subr.bf16.mxu0 0
    %1912 = vmatpush2.bf16.msra.mxu0 0
    %1913 = vmatprep.subr.bf16.mxu0 0
    %1914 = vmatpush2.bf16.msra.mxu0 0
    %1915 = vmatprep.subr.bf16.mxu0 0
    %1916 = vmatpush2.bf16.msra.mxu0 0
    %1917 = vmatprep.subr.bf16.mxu0 0
    %1918 = vmatpush2.bf16.msra.mxu0 0
    %1919 = vmatprep.subr.bf16.mxu0 0
    %1920 = vmatpush2.bf16.msra.mxu0 0
    %1921 = vmatprep.subr.bf16.mxu0 0
    %1922 = vmatpush2.bf16.msra.mxu0 0
    %1923 = vmatprep.subr.bf16.mxu0 0
    %1924 = vmatpush2.bf16.msra.mxu0 0
    %1925 = vmatprep.subr.bf16.mxu0 0
    %1926 = vmatpush2.bf16.msra.mxu0 0
    %1927 = vmatprep.mubr.bf16.mxu0 0
    %1928 = vmatmul.mubr.bf16.gmra.mxu0 %v1828
    %v1929 = vpop.f32.mrf.mxu0
    %v1930 = vadd.f32 0.0, %v1929
    %v1931 = vpop.f32.mrf.mxu0
    %v1932 = vpop.f32.mrf.mxu0
    %v1933 = vadd.f32 0.0, %v1932
    %v1934 = vpop.f32.mrf.mxu0
    %1935 = vmatprep.mubr.bf16.mxu0 0
    %1936 = vmatmul.mubr.bf16.gmra.mxu0 %v1829
    %v1937 = vpop.f32.mrf.mxu0
    %v1938 = vadd.f32 0.0, %v1937
    %v1939 = vpop.f32.mrf.mxu0
    %v1940 = vpop.f32.mrf.mxu0
    %v1941 = vadd.f32 0.0, %v1940
    %v1942 = vpop.f32.mrf.mxu0
    %1943 = vdwg.mxu0
    %v1944 = vadd.f32 %v1820, %v1930
    %v1945 = vadd.f32 %v1821, %v1933
    %v1946 = vadd.f32 %v1822, %v1938
    %v1947 = vadd.f32 %v1823, %v1941
    %v1948 = vld [vmem:[#allocation2 + $0x100] sm:$0xff]
    %v1949 = vld [vmem:[#allocation2 + $0x108] sm:$0xff]
    %v1950 = vld [vmem:[#allocation2 + $0x110] sm:$0xff]
    %v1951 = vld [vmem:[#allocation2 + $0x118] sm:$0xff]
    %v1952 = vpack.c.bf16 %v1949, %v1948
    %v1953 = vpack.c.bf16 %v1951, %v1950
    %s1954 = scalar_lea.vmem [#allocation9], 512
    %v1955 = vld [vmem:[%s1954] sm:$0xf]
    %v1956 = vld [vmem:[%s1954 + $0x4] sm:$0xf]
    %v1957 = vld [vmem:[%s1954 + $0x8] sm:$0xf]
    %v1958 = vld [vmem:[%s1954 + $0xc] sm:$0xf]
    %v1959 = vld [vmem:[%s1954 + $0x10] sm:$0xf]
    %v1960 = vld [vmem:[%s1954 + $0x14] sm:$0xf]
    %v1961 = vld [vmem:[%s1954 + $0x18] sm:$0xf]
    %v1962 = vld [vmem:[%s1954 + $0x1c] sm:$0xf]
    %v1963 = vld [vmem:[%s1954 + $0x20] sm:$0xf]
    %v1964 = vld [vmem:[%s1954 + $0x24] sm:$0xf]
    %v1965 = vld [vmem:[%s1954 + $0x28] sm:$0xf]
    %v1966 = vld [vmem:[%s1954 + $0x2c] sm:$0xf]
    %v1967 = vld [vmem:[%s1954 + $0x30] sm:$0xf]
    %v1968 = vld [vmem:[%s1954 + $0x34] sm:$0xf]
    %v1969 = vld [vmem:[%s1954 + $0x38] sm:$0xf]
    %v1970 = vld [vmem:[%s1954 + $0x3c] sm:$0xf]
    %v1987 = vunpack.c.l.b16 %v1955
    %v1988 = vunpack.c.l.b16 %v1956
    %v1989 = vunpack.c.l.b16 %v1957
    %v1990 = vunpack.c.l.b16 %v1958
    %v1991 = vunpack.c.l.b16 %v1959
    %v1992 = vunpack.c.l.b16 %v1960
    %v1993 = vunpack.c.l.b16 %v1961
    %v1994 = vunpack.c.l.b16 %v1962
    %v1995 = vunpack.c.l.b16 %v1963
    %v1996 = vunpack.c.l.b16 %v1964
    %v1997 = vunpack.c.l.b16 %v1965
    %v1998 = vunpack.c.l.b16 %v1966
    %v1999 = vunpack.c.l.b16 %v1967
    %v2000 = vunpack.c.l.b16 %v1968
    %v2001 = vunpack.c.l.b16 %v1969
    %v2002 = vunpack.c.l.b16 %v1970
    %v2003 = vpack.c.b16 %v1988, %v1987
    %v2004 = vpack.c.b16 %v1990, %v1989
    %v2005 = vpack.c.b16 %v1992, %v1991
    %v2006 = vpack.c.b16 %v1994, %v1993
    %v2007 = vpack.c.b16 %v1996, %v1995
    %v2008 = vpack.c.b16 %v1998, %v1997
    %v2009 = vpack.c.b16 %v2000, %v1999
    %v2010 = vpack.c.b16 %v2002, %v2001
    %2019 = vmatprep.subr.bf16.mxu0 0
    %2020 = vmatpush1.bf16.msra.mxu0 %v2010
    %2021 = vmatprep.subr.bf16.mxu0 0
    %2022 = vmatpush1.bf16.msra.mxu0 %v2009
    %2023 = vmatprep.subr.bf16.mxu0 0
    %2024 = vmatpush1.bf16.msra.mxu0 %v2008
    %2025 = vmatprep.subr.bf16.mxu0 0
    %2026 = vmatpush1.bf16.msra.mxu0 %v2007
    %2027 = vmatprep.subr.bf16.mxu0 0
    %2028 = vmatpush1.bf16.msra.mxu0 %v2006
    %2029 = vmatprep.subr.bf16.mxu0 0
    %2030 = vmatpush1.bf16.msra.mxu0 %v2005
    %2031 = vmatprep.subr.bf16.mxu0 0
    %2032 = vmatpush1.bf16.msra.mxu0 %v2004
    %2033 = vmatprep.subr.bf16.mxu0 0
    %2034 = vmatpush1.bf16.msra.mxu0 %v2003
    %2035 = vmatprep.subr.bf16.mxu0 0
    %2036 = vmatpush2.bf16.msra.mxu0 0
    %2037 = vmatprep.subr.bf16.mxu0 0
    %2038 = vmatpush2.bf16.msra.mxu0 0
    %2039 = vmatprep.subr.bf16.mxu0 0
    %2040 = vmatpush2.bf16.msra.mxu0 0
    %2041 = vmatprep.subr.bf16.mxu0 0
    %2042 = vmatpush2.bf16.msra.mxu0 0
    %2043 = vmatprep.subr.bf16.mxu0 0
    %2044 = vmatpush2.bf16.msra.mxu0 0
    %2045 = vmatprep.subr.bf16.mxu0 0
    %2046 = vmatpush2.bf16.msra.mxu0 0
    %2047 = vmatprep.subr.bf16.mxu0 0
    %2048 = vmatpush2.bf16.msra.mxu0 0
    %2049 = vmatprep.subr.bf16.mxu0 0
    %2050 = vmatpush2.bf16.msra.mxu0 0
    %2051 = vmatprep.mubr.bf16.mxu0 0
    %2052 = vmatmul.mubr.bf16.gmra.mxu0 %v1952
    %v2053 = vpop.f32.mrf.mxu0
    %v2054 = vadd.f32 0.0, %v2053
    %v2055 = vpop.f32.mrf.mxu0
    %v2056 = vpop.f32.mrf.mxu0
    %v2057 = vadd.f32 0.0, %v2056
    %v2058 = vpop.f32.mrf.mxu0
    %2059 = vmatprep.mubr.bf16.mxu0 0
    %2060 = vmatmul.mubr.bf16.gmra.mxu0 %v1953
    %v2061 = vpop.f32.mrf.mxu0
    %v2062 = vadd.f32 0.0, %v2061
    %v2063 = vpop.f32.mrf.mxu0
    %v2064 = vpop.f32.mrf.mxu0
    %v2065 = vadd.f32 0.0, %v2064
    %v2066 = vpop.f32.mrf.mxu0
    %2067 = vdwg.mxu0
    %v2068 = vadd.f32 %v1944, %v2054
    %v2069 = vadd.f32 %v1945, %v2057
    %v2070 = vadd.f32 %v1946, %v2062
    %v2071 = vadd.f32 %v1947, %v2065
    %v2072 = vld [vmem:[#allocation2 + $0x120] sm:$0xff]
    %v2073 = vld [vmem:[#allocation2 + $0x128] sm:$0xff]
    %v2074 = vld [vmem:[#allocation2 + $0x130] sm:$0xff]
    %v2075 = vld [vmem:[#allocation2 + $0x138] sm:$0xff]
    %v2076 = vpack.c.bf16 %v2073, %v2072
    %v2077 = vpack.c.bf16 %v2075, %v2074
    %s2078 = scalar_lea.vmem [#allocation9], 576
    %v2079 = vld [vmem:[%s2078] sm:$0xf]
    %v2080 = vld [vmem:[%s2078 + $0x4] sm:$0xf]
    %v2081 = vld [vmem:[%s2078 + $0x8] sm:$0xf]
    %v2082 = vld [vmem:[%s2078 + $0xc] sm:$0xf]
    %v2083 = vld [vmem:[%s2078 + $0x10] sm:$0xf]
    %v2084 = vld [vmem:[%s2078 + $0x14] sm:$0xf]
    %v2085 = vld [vmem:[%s2078 + $0x18] sm:$0xf]
    %v2086 = vld [vmem:[%s2078 + $0x1c] sm:$0xf]
    %v2087 = vld [vmem:[%s2078 + $0x20] sm:$0xf]
    %v2088 = vld [vmem:[%s2078 + $0x24] sm:$0xf]
    %v2089 = vld [vmem:[%s2078 + $0x28] sm:$0xf]
    %v2090 = vld [vmem:[%s2078 + $0x2c] sm:$0xf]
    %v2091 = vld [vmem:[%s2078 + $0x30] sm:$0xf]
    %v2092 = vld [vmem:[%s2078 + $0x34] sm:$0xf]
    %v2093 = vld [vmem:[%s2078 + $0x38] sm:$0xf]
    %v2094 = vld [vmem:[%s2078 + $0x3c] sm:$0xf]
    %v2111 = vunpack.c.l.b16 %v2079
    %v2112 = vunpack.c.l.b16 %v2080
    %v2113 = vunpack.c.l.b16 %v2081
    %v2114 = vunpack.c.l.b16 %v2082
    %v2115 = vunpack.c.l.b16 %v2083
    %v2116 = vunpack.c.l.b16 %v2084
    %v2117 = vunpack.c.l.b16 %v2085
    %v2118 = vunpack.c.l.b16 %v2086
    %v2119 = vunpack.c.l.b16 %v2087
    %v2120 = vunpack.c.l.b16 %v2088
    %v2121 = vunpack.c.l.b16 %v2089
    %v2122 = vunpack.c.l.b16 %v2090
    %v2123 = vunpack.c.l.b16 %v2091
    %v2124 = vunpack.c.l.b16 %v2092
    %v2125 = vunpack.c.l.b16 %v2093
    %v2126 = vunpack.c.l.b16 %v2094
    %v2127 = vpack.c.b16 %v2112, %v2111
    %v2128 = vpack.c.b16 %v2114, %v2113
    %v2129 = vpack.c.b16 %v2116, %v2115
    %v2130 = vpack.c.b16 %v2118, %v2117
    %v2131 = vpack.c.b16 %v2120, %v2119
    %v2132 = vpack.c.b16 %v2122, %v2121
    %v2133 = vpack.c.b16 %v2124, %v2123
    %v2134 = vpack.c.b16 %v2126, %v2125
    %2143 = vmatprep.subr.bf16.mxu0 0
    %2144 = vmatpush1.bf16.msra.mxu0 %v2134
    %2145 = vmatprep.subr.bf16.mxu0 0
    %2146 = vmatpush1.bf16.msra.mxu0 %v2133
    %2147 = vmatprep.subr.bf16.mxu0 0
    %2148 = vmatpush1.bf16.msra.mxu0 %v2132
    %2149 = vmatprep.subr.bf16.mxu0 0
    %2150 = vmatpush1.bf16.msra.mxu0 %v2131
    %2151 = vmatprep.subr.bf16.mxu0 0
    %2152 = vmatpush1.bf16.msra.mxu0 %v2130
    %2153 = vmatprep.subr.bf16.mxu0 0
    %2154 = vmatpush1.bf16.msra.mxu0 %v2129
    %2155 = vmatprep.subr.bf16.mxu0 0
    %2156 = vmatpush1.bf16.msra.mxu0 %v2128
    %2157 = vmatprep.subr.bf16.mxu0 0
    %2158 = vmatpush1.bf16.msra.mxu0 %v2127
    %2159 = vmatprep.subr.bf16.mxu0 0
    %2160 = vmatpush2.bf16.msra.mxu0 0
    %2161 = vmatprep.subr.bf16.mxu0 0
    %2162 = vmatpush2.bf16.msra.mxu0 0
    %2163 = vmatprep.subr.bf16.mxu0 0
    %2164 = vmatpush2.bf16.msra.mxu0 0
    %2165 = vmatprep.subr.bf16.mxu0 0
    %2166 = vmatpush2.bf16.msra.mxu0 0
    %2167 = vmatprep.subr.bf16.mxu0 0
    %2168 = vmatpush2.bf16.msra.mxu0 0
    %2169 = vmatprep.subr.bf16.mxu0 0
    %2170 = vmatpush2.bf16.msra.mxu0 0
    %2171 = vmatprep.subr.bf16.mxu0 0
    %2172 = vmatpush2.bf16.msra.mxu0 0
    %2173 = vmatprep.subr.bf16.mxu0 0
    %2174 = vmatpush2.bf16.msra.mxu0 0
    %2175 = vmatprep.mubr.bf16.mxu0 0
    %2176 = vmatmul.mubr.bf16.gmra.mxu0 %v2076
    %v2177 = vpop.f32.mrf.mxu0
    %v2178 = vadd.f32 0.0, %v2177
    %v2179 = vpop.f32.mrf.mxu0
    %v2180 = vpop.f32.mrf.mxu0
    %v2181 = vadd.f32 0.0, %v2180
    %v2182 = vpop.f32.mrf.mxu0
    %2183 = vmatprep.mubr.bf16.mxu0 0
    %2184 = vmatmul.mubr.bf16.gmra.mxu0 %v2077
    %v2185 = vpop.f32.mrf.mxu0
    %v2186 = vadd.f32 0.0, %v2185
    %v2187 = vpop.f32.mrf.mxu0
    %v2188 = vpop.f32.mrf.mxu0
    %v2189 = vadd.f32 0.0, %v2188
    %v2190 = vpop.f32.mrf.mxu0
    %2191 = vdwg.mxu0
    %v2192 = vadd.f32 %v2068, %v2178
    %v2193 = vadd.f32 %v2069, %v2181
    %v2194 = vadd.f32 %v2070, %v2186
    %v2195 = vadd.f32 %v2071, %v2189
    %v2196 = vld [vmem:[#allocation2 + $0x140] sm:$0xff]
    %v2197 = vld [vmem:[#allocation2 + $0x148] sm:$0xff]
    %v2198 = vld [vmem:[#allocation2 + $0x150] sm:$0xff]
    %v2199 = vld [vmem:[#allocation2 + $0x158] sm:$0xff]
    %v2200 = vpack.c.bf16 %v2197, %v2196
    %v2201 = vpack.c.bf16 %v2199, %v2198
    %s2202 = scalar_lea.vmem [#allocation9], 640
    %v2203 = vld [vmem:[%s2202] sm:$0xf]
    %v2204 = vld [vmem:[%s2202 + $0x4] sm:$0xf]
    %v2205 = vld [vmem:[%s2202 + $0x8] sm:$0xf]
    %v2206 = vld [vmem:[%s2202 + $0xc] sm:$0xf]
    %v2207 = vld [vmem:[%s2202 + $0x10] sm:$0xf]
    %v2208 = vld [vmem:[%s2202 + $0x14] sm:$0xf]
    %v2209 = vld [vmem:[%s2202 + $0x18] sm:$0xf]
    %v2210 = vld [vmem:[%s2202 + $0x1c] sm:$0xf]
    %v2211 = vld [vmem:[%s2202 + $0x20] sm:$0xf]
    %v2212 = vld [vmem:[%s2202 + $0x24] sm:$0xf]
    %v2213 = vld [vmem:[%s2202 + $0x28] sm:$0xf]
    %v2214 = vld [vmem:[%s2202 + $0x2c] sm:$0xf]
    %v2215 = vld [vmem:[%s2202 + $0x30] sm:$0xf]
    %v2216 = vld [vmem:[%s2202 + $0x34] sm:$0xf]
    %v2217 = vld [vmem:[%s2202 + $0x38] sm:$0xf]
    %v2218 = vld [vmem:[%s2202 + $0x3c] sm:$0xf]
    %v2235 = vunpack.c.l.b16 %v2203
    %v2236 = vunpack.c.l.b16 %v2204
    %v2237 = vunpack.c.l.b16 %v2205
    %v2238 = vunpack.c.l.b16 %v2206
    %v2239 = vunpack.c.l.b16 %v2207
    %v2240 = vunpack.c.l.b16 %v2208
    %v2241 = vunpack.c.l.b16 %v2209
    %v2242 = vunpack.c.l.b16 %v2210
    %v2243 = vunpack.c.l.b16 %v2211
    %v2244 = vunpack.c.l.b16 %v2212
    %v2245 = vunpack.c.l.b16 %v2213
    %v2246 = vunpack.c.l.b16 %v2214
    %v2247 = vunpack.c.l.b16 %v2215
    %v2248 = vunpack.c.l.b16 %v2216
    %v2249 = vunpack.c.l.b16 %v2217
    %v2250 = vunpack.c.l.b16 %v2218
    %v2251 = vpack.c.b16 %v2236, %v2235
    %v2252 = vpack.c.b16 %v2238, %v2237
    %v2253 = vpack.c.b16 %v2240, %v2239
    %v2254 = vpack.c.b16 %v2242, %v2241
    %v2255 = vpack.c.b16 %v2244, %v2243
    %v2256 = vpack.c.b16 %v2246, %v2245
    %v2257 = vpack.c.b16 %v2248, %v2247
    %v2258 = vpack.c.b16 %v2250, %v2249
    %2267 = vmatprep.subr.bf16.mxu0 0
    %2268 = vmatpush1.bf16.msra.mxu0 %v2258
    %2269 = vmatprep.subr.bf16.mxu0 0
    %2270 = vmatpush1.bf16.msra.mxu0 %v2257
    %2271 = vmatprep.subr.bf16.mxu0 0
    %2272 = vmatpush1.bf16.msra.mxu0 %v2256
    %2273 = vmatprep.subr.bf16.mxu0 0
    %2274 = vmatpush1.bf16.msra.mxu0 %v2255
    %2275 = vmatprep.subr.bf16.mxu0 0
    %2276 = vmatpush1.bf16.msra.mxu0 %v2254
    %2277 = vmatprep.subr.bf16.mxu0 0
    %2278 = vmatpush1.bf16.msra.mxu0 %v2253
    %2279 = vmatprep.subr.bf16.mxu0 0
    %2280 = vmatpush1.bf16.msra.mxu0 %v2252
    %2281 = vmatprep.subr.bf16.mxu0 0
    %2282 = vmatpush1.bf16.msra.mxu0 %v2251
    %2283 = vmatprep.subr.bf16.mxu0 0
    %2284 = vmatpush2.bf16.msra.mxu0 0
    %2285 = vmatprep.subr.bf16.mxu0 0
    %2286 = vmatpush2.bf16.msra.mxu0 0
    %2287 = vmatprep.subr.bf16.mxu0 0
    %2288 = vmatpush2.bf16.msra.mxu0 0
    %2289 = vmatprep.subr.bf16.mxu0 0
    %2290 = vmatpush2.bf16.msra.mxu0 0
    %2291 = vmatprep.subr.bf16.mxu0 0
    %2292 = vmatpush2.bf16.msra.mxu0 0
    %2293 = vmatprep.subr.bf16.mxu0 0
    %2294 = vmatpush2.bf16.msra.mxu0 0
    %2295 = vmatprep.subr.bf16.mxu0 0
    %2296 = vmatpush2.bf16.msra.mxu0 0
    %2297 = vmatprep.subr.bf16.mxu0 0
    %2298 = vmatpush2.bf16.msra.mxu0 0
    %2299 = vmatprep.mubr.bf16.mxu0 0
    %2300 = vmatmul.mubr.bf16.gmra.mxu0 %v2200
    %v2301 = vpop.f32.mrf.mxu0
    %v2302 = vadd.f32 0.0, %v2301
    %v2303 = vpop.f32.mrf.mxu0
    %v2304 = vpop.f32.mrf.mxu0
    %v2305 = vadd.f32 0.0, %v2304
    %v2306 = vpop.f32.mrf.mxu0
    %2307 = vmatprep.mubr.bf16.mxu0 0
    %2308 = vmatmul.mubr.bf16.gmra.mxu0 %v2201
    %v2309 = vpop.f32.mrf.mxu0
    %v2310 = vadd.f32 0.0, %v2309
    %v2311 = vpop.f32.mrf.mxu0
    %v2312 = vpop.f32.mrf.mxu0
    %v2313 = vadd.f32 0.0, %v2312
    %v2314 = vpop.f32.mrf.mxu0
    %2315 = vdwg.mxu0
    %v2316 = vadd.f32 %v2192, %v2302
    %v2317 = vadd.f32 %v2193, %v2305
    %v2318 = vadd.f32 %v2194, %v2310
    %v2319 = vadd.f32 %v2195, %v2313
    %v2320 = vld [vmem:[#allocation2 + $0x160] sm:$0xff]
    %v2321 = vld [vmem:[#allocation2 + $0x168] sm:$0xff]
    %v2322 = vld [vmem:[#allocation2 + $0x170] sm:$0xff]
    %v2323 = vld [vmem:[#allocation2 + $0x178] sm:$0xff]
    %v2324 = vpack.c.bf16 %v2321, %v2320
    %v2325 = vpack.c.bf16 %v2323, %v2322
    %s2326 = scalar_lea.vmem [#allocation9], 704
    %v2327 = vld [vmem:[%s2326] sm:$0xf]
    %v2328 = vld [vmem:[%s2326 + $0x4] sm:$0xf]
    %v2329 = vld [vmem:[%s2326 + $0x8] sm:$0xf]
    %v2330 = vld [vmem:[%s2326 + $0xc] sm:$0xf]
    %v2331 = vld [vmem:[%s2326 + $0x10] sm:$0xf]
    %v2332 = vld [vmem:[%s2326 + $0x14] sm:$0xf]
    %v2333 = vld [vmem:[%s2326 + $0x18] sm:$0xf]
    %v2334 = vld [vmem:[%s2326 + $0x1c] sm:$0xf]
    %v2335 = vld [vmem:[%s2326 + $0x20] sm:$0xf]
    %v2336 = vld [vmem:[%s2326 + $0x24] sm:$0xf]
    %v2337 = vld [vmem:[%s2326 + $0x28] sm:$0xf]
    %v2338 = vld [vmem:[%s2326 + $0x2c] sm:$0xf]
    %v2339 = vld [vmem:[%s2326 + $0x30] sm:$0xf]
    %v2340 = vld [vmem:[%s2326 + $0x34] sm:$0xf]
    %v2341 = vld [vmem:[%s2326 + $0x38] sm:$0xf]
    %v2342 = vld [vmem:[%s2326 + $0x3c] sm:$0xf]
    %v2359 = vunpack.c.l.b16 %v2327
    %v2360 = vunpack.c.l.b16 %v2328
    %v2361 = vunpack.c.l.b16 %v2329
    %v2362 = vunpack.c.l.b16 %v2330
    %v2363 = vunpack.c.l.b16 %v2331
    %v2364 = vunpack.c.l.b16 %v2332
    %v2365 = vunpack.c.l.b16 %v2333
    %v2366 = vunpack.c.l.b16 %v2334
    %v2367 = vunpack.c.l.b16 %v2335
    %v2368 = vunpack.c.l.b16 %v2336
    %v2369 = vunpack.c.l.b16 %v2337
    %v2370 = vunpack.c.l.b16 %v2338
    %v2371 = vunpack.c.l.b16 %v2339
    %v2372 = vunpack.c.l.b16 %v2340
    %v2373 = vunpack.c.l.b16 %v2341
    %v2374 = vunpack.c.l.b16 %v2342
    %v2375 = vpack.c.b16 %v2360, %v2359
    %v2376 = vpack.c.b16 %v2362, %v2361
    %v2377 = vpack.c.b16 %v2364, %v2363
    %v2378 = vpack.c.b16 %v2366, %v2365
    %v2379 = vpack.c.b16 %v2368, %v2367
    %v2380 = vpack.c.b16 %v2370, %v2369
    %v2381 = vpack.c.b16 %v2372, %v2371
    %v2382 = vpack.c.b16 %v2374, %v2373
    %2391 = vmatprep.subr.bf16.mxu0 0
    %2392 = vmatpush1.bf16.msra.mxu0 %v2382
    %2393 = vmatprep.subr.bf16.mxu0 0
    %2394 = vmatpush1.bf16.msra.mxu0 %v2381
    %2395 = vmatprep.subr.bf16.mxu0 0
    %2396 = vmatpush1.bf16.msra.mxu0 %v2380
    %2397 = vmatprep.subr.bf16.mxu0 0
    %2398 = vmatpush1.bf16.msra.mxu0 %v2379
    %2399 = vmatprep.subr.bf16.mxu0 0
    %2400 = vmatpush1.bf16.msra.mxu0 %v2378
    %2401 = vmatprep.subr.bf16.mxu0 0
    %2402 = vmatpush1.bf16.msra.mxu0 %v2377
    %2403 = vmatprep.subr.bf16.mxu0 0
    %2404 = vmatpush1.bf16.msra.mxu0 %v2376
    %2405 = vmatprep.subr.bf16.mxu0 0
    %2406 = vmatpush1.bf16.msra.mxu0 %v2375
    %2407 = vmatprep.subr.bf16.mxu0 0
    %2408 = vmatpush2.bf16.msra.mxu0 0
    %2409 = vmatprep.subr.bf16.mxu0 0
    %2410 = vmatpush2.bf16.msra.mxu0 0
    %2411 = vmatprep.subr.bf16.mxu0 0
    %2412 = vmatpush2.bf16.msra.mxu0 0
    %2413 = vmatprep.subr.bf16.mxu0 0
    %2414 = vmatpush2.bf16.msra.mxu0 0
    %2415 = vmatprep.subr.bf16.mxu0 0
    %2416 = vmatpush2.bf16.msra.mxu0 0
    %2417 = vmatprep.subr.bf16.mxu0 0
    %2418 = vmatpush2.bf16.msra.mxu0 0
    %2419 = vmatprep.subr.bf16.mxu0 0
    %2420 = vmatpush2.bf16.msra.mxu0 0
    %2421 = vmatprep.subr.bf16.mxu0 0
    %2422 = vmatpush2.bf16.msra.mxu0 0
    %2423 = vmatprep.mubr.bf16.mxu0 0
    %2424 = vmatmul.mubr.bf16.gmra.mxu0 %v2324
    %v2425 = vpop.f32.mrf.mxu0
    %v2426 = vadd.f32 0.0, %v2425
    %v2427 = vpop.f32.mrf.mxu0
    %v2428 = vpop.f32.mrf.mxu0
    %v2429 = vadd.f32 0.0, %v2428
    %v2430 = vpop.f32.mrf.mxu0
    %2431 = vmatprep.mubr.bf16.mxu0 0
    %2432 = vmatmul.mubr.bf16.gmra.mxu0 %v2325
    %v2433 = vpop.f32.mrf.mxu0
    %v2434 = vadd.f32 0.0, %v2433
    %v2435 = vpop.f32.mrf.mxu0
    %v2436 = vpop.f32.mrf.mxu0
    %v2437 = vadd.f32 0.0, %v2436
    %v2438 = vpop.f32.mrf.mxu0
    %2439 = vdwg.mxu0
    %v2440 = vadd.f32 %v2316, %v2426
    %v2441 = vadd.f32 %v2317, %v2429
    %v2442 = vadd.f32 %v2318, %v2434
    %v2443 = vadd.f32 %v2319, %v2437
    %v2444 = vld [vmem:[#allocation2 + $0x180] sm:$0xff]
    %v2445 = vld [vmem:[#allocation2 + $0x188] sm:$0xff]
    %v2446 = vld [vmem:[#allocation2 + $0x190] sm:$0xff]
    %v2447 = vld [vmem:[#allocation2 + $0x198] sm:$0xff]
    %v2448 = vpack.c.bf16 %v2445, %v2444
    %v2449 = vpack.c.bf16 %v2447, %v2446
    %s2450 = scalar_lea.vmem [#allocation9], 768
    %v2451 = vld [vmem:[%s2450] sm:$0xf]
    %v2452 = vld [vmem:[%s2450 + $0x4] sm:$0xf]
    %v2453 = vld [vmem:[%s2450 + $0x8] sm:$0xf]
    %v2454 = vld [vmem:[%s2450 + $0xc] sm:$0xf]
    %v2455 = vld [vmem:[%s2450 + $0x10] sm:$0xf]
    %v2456 = vld [vmem:[%s2450 + $0x14] sm:$0xf]
    %v2457 = vld [vmem:[%s2450 + $0x18] sm:$0xf]
    %v2458 = vld [vmem:[%s2450 + $0x1c] sm:$0xf]
    %v2459 = vld [vmem:[%s2450 + $0x20] sm:$0xf]
    %v2460 = vld [vmem:[%s2450 + $0x24] sm:$0xf]
    %v2461 = vld [vmem:[%s2450 + $0x28] sm:$0xf]
    %v2462 = vld [vmem:[%s2450 + $0x2c] sm:$0xf]
    %v2463 = vld [vmem:[%s2450 + $0x30] sm:$0xf]
    %v2464 = vld [vmem:[%s2450 + $0x34] sm:$0xf]
    %v2465 = vld [vmem:[%s2450 + $0x38] sm:$0xf]
    %v2466 = vld [vmem:[%s2450 + $0x3c] sm:$0xf]
    %v2483 = vunpack.c.l.b16 %v2451
    %v2484 = vunpack.c.l.b16 %v2452
    %v2485 = vunpack.c.l.b16 %v2453
    %v2486 = vunpack.c.l.b16 %v2454
    %v2487 = vunpack.c.l.b16 %v2455
    %v2488 = vunpack.c.l.b16 %v2456
    %v2489 = vunpack.c.l.b16 %v2457
    %v2490 = vunpack.c.l.b16 %v2458
    %v2491 = vunpack.c.l.b16 %v2459
    %v2492 = vunpack.c.l.b16 %v2460
    %v2493 = vunpack.c.l.b16 %v2461
    %v2494 = vunpack.c.l.b16 %v2462
    %v2495 = vunpack.c.l.b16 %v2463
    %v2496 = vunpack.c.l.b16 %v2464
    %v2497 = vunpack.c.l.b16 %v2465
    %v2498 = vunpack.c.l.b16 %v2466
    %v2499 = vpack.c.b16 %v2484, %v2483
    %v2500 = vpack.c.b16 %v2486, %v2485
    %v2501 = vpack.c.b16 %v2488, %v2487
    %v2502 = vpack.c.b16 %v2490, %v2489
    %v2503 = vpack.c.b16 %v2492, %v2491
    %v2504 = vpack.c.b16 %v2494, %v2493
    %v2505 = vpack.c.b16 %v2496, %v2495
    %v2506 = vpack.c.b16 %v2498, %v2497
    %2515 = vmatprep.subr.bf16.mxu0 0
    %2516 = vmatpush1.bf16.msra.mxu0 %v2506
    %2517 = vmatprep.subr.bf16.mxu0 0
    %2518 = vmatpush1.bf16.msra.mxu0 %v2505
    %2519 = vmatprep.subr.bf16.mxu0 0
    %2520 = vmatpush1.bf16.msra.mxu0 %v2504
    %2521 = vmatprep.subr.bf16.mxu0 0
    %2522 = vmatpush1.bf16.msra.mxu0 %v2503
    %2523 = vmatprep.subr.bf16.mxu0 0
    %2524 = vmatpush1.bf16.msra.mxu0 %v2502
    %2525 = vmatprep.subr.bf16.mxu0 0
    %2526 = vmatpush1.bf16.msra.mxu0 %v2501
    %2527 = vmatprep.subr.bf16.mxu0 0
    %2528 = vmatpush1.bf16.msra.mxu0 %v2500
    %2529 = vmatprep.subr.bf16.mxu0 0
    %2530 = vmatpush1.bf16.msra.mxu0 %v2499
    %2531 = vmatprep.subr.bf16.mxu0 0
    %2532 = vmatpush2.bf16.msra.mxu0 0
    %2533 = vmatprep.subr.bf16.mxu0 0
    %2534 = vmatpush2.bf16.msra.mxu0 0
    %2535 = vmatprep.subr.bf16.mxu0 0
    %2536 = vmatpush2.bf16.msra.mxu0 0
    %2537 = vmatprep.subr.bf16.mxu0 0
    %2538 = vmatpush2.bf16.msra.mxu0 0
    %2539 = vmatprep.subr.bf16.mxu0 0
    %2540 = vmatpush2.bf16.msra.mxu0 0
    %2541 = vmatprep.subr.bf16.mxu0 0
    %2542 = vmatpush2.bf16.msra.mxu0 0
    %2543 = vmatprep.subr.bf16.mxu0 0
    %2544 = vmatpush2.bf16.msra.mxu0 0
    %2545 = vmatprep.subr.bf16.mxu0 0
    %2546 = vmatpush2.bf16.msra.mxu0 0
    %2547 = vmatprep.mubr.bf16.mxu0 0
    %2548 = vmatmul.mubr.bf16.gmra.mxu0 %v2448
    %v2549 = vpop.f32.mrf.mxu0
    %v2550 = vadd.f32 0.0, %v2549
    %v2551 = vpop.f32.mrf.mxu0
    %v2552 = vpop.f32.mrf.mxu0
    %v2553 = vadd.f32 0.0, %v2552
    %v2554 = vpop.f32.mrf.mxu0
    %2555 = vmatprep.mubr.bf16.mxu0 0
    %2556 = vmatmul.mubr.bf16.gmra.mxu0 %v2449
    %v2557 = vpop.f32.mrf.mxu0
    %v2558 = vadd.f32 0.0, %v2557
    %v2559 = vpop.f32.mrf.mxu0
    %v2560 = vpop.f32.mrf.mxu0
    %v2561 = vadd.f32 0.0, %v2560
    %v2562 = vpop.f32.mrf.mxu0
    %2563 = vdwg.mxu0
    %v2564 = vadd.f32 %v2440, %v2550
    %v2565 = vadd.f32 %v2441, %v2553
    %v2566 = vadd.f32 %v2442, %v2558
    %v2567 = vadd.f32 %v2443, %v2561
    %v2568 = vld [vmem:[#allocation2 + $0x1a0] sm:$0xff]
    %v2569 = vld [vmem:[#allocation2 + $0x1a8] sm:$0xff]
    %v2570 = vld [vmem:[#allocation2 + $0x1b0] sm:$0xff]
    %v2571 = vld [vmem:[#allocation2 + $0x1b8] sm:$0xff]
    %v2572 = vpack.c.bf16 %v2569, %v2568
    %v2573 = vpack.c.bf16 %v2571, %v2570
    %s2574 = scalar_lea.vmem [#allocation9], 832
    %v2575 = vld [vmem:[%s2574] sm:$0xf]
    %v2576 = vld [vmem:[%s2574 + $0x4] sm:$0xf]
    %v2577 = vld [vmem:[%s2574 + $0x8] sm:$0xf]
    %v2578 = vld [vmem:[%s2574 + $0xc] sm:$0xf]
    %v2579 = vld [vmem:[%s2574 + $0x10] sm:$0xf]
    %v2580 = vld [vmem:[%s2574 + $0x14] sm:$0xf]
    %v2581 = vld [vmem:[%s2574 + $0x18] sm:$0xf]
    %v2582 = vld [vmem:[%s2574 + $0x1c] sm:$0xf]
    %v2583 = vld [vmem:[%s2574 + $0x20] sm:$0xf]
    %v2584 = vld [vmem:[%s2574 + $0x24] sm:$0xf]
    %v2585 = vld [vmem:[%s2574 + $0x28] sm:$0xf]
    %v2586 = vld [vmem:[%s2574 + $0x2c] sm:$0xf]
    %v2587 = vld [vmem:[%s2574 + $0x30] sm:$0xf]
    %v2588 = vld [vmem:[%s2574 + $0x34] sm:$0xf]
    %v2589 = vld [vmem:[%s2574 + $0x38] sm:$0xf]
    %v2590 = vld [vmem:[%s2574 + $0x3c] sm:$0xf]
    %v2607 = vunpack.c.l.b16 %v2575
    %v2608 = vunpack.c.l.b16 %v2576
    %v2609 = vunpack.c.l.b16 %v2577
    %v2610 = vunpack.c.l.b16 %v2578
    %v2611 = vunpack.c.l.b16 %v2579
    %v2612 = vunpack.c.l.b16 %v2580
    %v2613 = vunpack.c.l.b16 %v2581
    %v2614 = vunpack.c.l.b16 %v2582
    %v2615 = vunpack.c.l.b16 %v2583
    %v2616 = vunpack.c.l.b16 %v2584
    %v2617 = vunpack.c.l.b16 %v2585
    %v2618 = vunpack.c.l.b16 %v2586
    %v2619 = vunpack.c.l.b16 %v2587
    %v2620 = vunpack.c.l.b16 %v2588
    %v2621 = vunpack.c.l.b16 %v2589
    %v2622 = vunpack.c.l.b16 %v2590
    %v2623 = vpack.c.b16 %v2608, %v2607
    %v2624 = vpack.c.b16 %v2610, %v2609
    %v2625 = vpack.c.b16 %v2612, %v2611
    %v2626 = vpack.c.b16 %v2614, %v2613
    %v2627 = vpack.c.b16 %v2616, %v2615
    %v2628 = vpack.c.b16 %v2618, %v2617
    %v2629 = vpack.c.b16 %v2620, %v2619
    %v2630 = vpack.c.b16 %v2622, %v2621
    %2639 = vmatprep.subr.bf16.mxu0 0
    %2640 = vmatpush1.bf16.msra.mxu0 %v2630
    %2641 = vmatprep.subr.bf16.mxu0 0
    %2642 = vmatpush1.bf16.msra.mxu0 %v2629
    %2643 = vmatprep.subr.bf16.mxu0 0
    %2644 = vmatpush1.bf16.msra.mxu0 %v2628
    %2645 = vmatprep.subr.bf16.mxu0 0
    %2646 = vmatpush1.bf16.msra.mxu0 %v2627
    %2647 = vmatprep.subr.bf16.mxu0 0
    %2648 = vmatpush1.bf16.msra.mxu0 %v2626
    %2649 = vmatprep.subr.bf16.mxu0 0
    %2650 = vmatpush1.bf16.msra.mxu0 %v2625
    %2651 = vmatprep.subr.bf16.mxu0 0
    %2652 = vmatpush1.bf16.msra.mxu0 %v2624
    %2653 = vmatprep.subr.bf16.mxu0 0
    %2654 = vmatpush1.bf16.msra.mxu0 %v2623
    %2655 = vmatprep.subr.bf16.mxu0 0
    %2656 = vmatpush2.bf16.msra.mxu0 0
    %2657 = vmatprep.subr.bf16.mxu0 0
    %2658 = vmatpush2.bf16.msra.mxu0 0
    %2659 = vmatprep.subr.bf16.mxu0 0
    %2660 = vmatpush2.bf16.msra.mxu0 0
    %2661 = vmatprep.subr.bf16.mxu0 0
    %2662 = vmatpush2.bf16.msra.mxu0 0
    %2663 = vmatprep.subr.bf16.mxu0 0
    %2664 = vmatpush2.bf16.msra.mxu0 0
    %2665 = vmatprep.subr.bf16.mxu0 0
    %2666 = vmatpush2.bf16.msra.mxu0 0
    %2667 = vmatprep.subr.bf16.mxu0 0
    %2668 = vmatpush2.bf16.msra.mxu0 0
    %2669 = vmatprep.subr.bf16.mxu0 0
    %2670 = vmatpush2.bf16.msra.mxu0 0
    %2671 = vmatprep.mubr.bf16.mxu0 0
    %2672 = vmatmul.mubr.bf16.gmra.mxu0 %v2572
    %v2673 = vpop.f32.mrf.mxu0
    %v2674 = vadd.f32 0.0, %v2673
    %v2675 = vpop.f32.mrf.mxu0
    %v2676 = vpop.f32.mrf.mxu0
    %v2677 = vadd.f32 0.0, %v2676
    %v2678 = vpop.f32.mrf.mxu0
    %2679 = vmatprep.mubr.bf16.mxu0 0
    %2680 = vmatmul.mubr.bf16.gmra.mxu0 %v2573
    %v2681 = vpop.f32.mrf.mxu0
    %v2682 = vadd.f32 0.0, %v2681
    %v2683 = vpop.f32.mrf.mxu0
    %v2684 = vpop.f32.mrf.mxu0
    %v2685 = vadd.f32 0.0, %v2684
    %v2686 = vpop.f32.mrf.mxu0
    %2687 = vdwg.mxu0
    %v2688 = vadd.f32 %v2564, %v2674
    %v2689 = vadd.f32 %v2565, %v2677
    %v2690 = vadd.f32 %v2566, %v2682
    %v2691 = vadd.f32 %v2567, %v2685
    %v2692 = vld [vmem:[#allocation2 + $0x1c0] sm:$0xff]
    %v2693 = vld [vmem:[#allocation2 + $0x1c8] sm:$0xff]
    %v2694 = vld [vmem:[#allocation2 + $0x1d0] sm:$0xff]
    %v2695 = vld [vmem:[#allocation2 + $0x1d8] sm:$0xff]
    %v2696 = vpack.c.bf16 %v2693, %v2692
    %v2697 = vpack.c.bf16 %v2695, %v2694
    %s2698 = scalar_lea.vmem [#allocation9], 896
    %v2699 = vld [vmem:[%s2698] sm:$0xf]
    %v2700 = vld [vmem:[%s2698 + $0x4] sm:$0xf]
    %v2701 = vld [vmem:[%s2698 + $0x8] sm:$0xf]
    %v2702 = vld [vmem:[%s2698 + $0xc] sm:$0xf]
    %v2703 = vld [vmem:[%s2698 + $0x10] sm:$0xf]
    %v2704 = vld [vmem:[%s2698 + $0x14] sm:$0xf]
    %v2705 = vld [vmem:[%s2698 + $0x18] sm:$0xf]
    %v2706 = vld [vmem:[%s2698 + $0x1c] sm:$0xf]
    %v2707 = vld [vmem:[%s2698 + $0x20] sm:$0xf]
    %v2708 = vld [vmem:[%s2698 + $0x24] sm:$0xf]
    %v2709 = vld [vmem:[%s2698 + $0x28] sm:$0xf]
    %v2710 = vld [vmem:[%s2698 + $0x2c] sm:$0xf]
    %v2711 = vld [vmem:[%s2698 + $0x30] sm:$0xf]
    %v2712 = vld [vmem:[%s2698 + $0x34] sm:$0xf]
    %v2713 = vld [vmem:[%s2698 + $0x38] sm:$0xf]
    %v2714 = vld [vmem:[%s2698 + $0x3c] sm:$0xf]
    %v2731 = vunpack.c.l.b16 %v2699
    %v2732 = vunpack.c.l.b16 %v2700
    %v2733 = vunpack.c.l.b16 %v2701
    %v2734 = vunpack.c.l.b16 %v2702
    %v2735 = vunpack.c.l.b16 %v2703
    %v2736 = vunpack.c.l.b16 %v2704
    %v2737 = vunpack.c.l.b16 %v2705
    %v2738 = vunpack.c.l.b16 %v2706
    %v2739 = vunpack.c.l.b16 %v2707
    %v2740 = vunpack.c.l.b16 %v2708
    %v2741 = vunpack.c.l.b16 %v2709
    %v2742 = vunpack.c.l.b16 %v2710
    %v2743 = vunpack.c.l.b16 %v2711
    %v2744 = vunpack.c.l.b16 %v2712
    %v2745 = vunpack.c.l.b16 %v2713
    %v2746 = vunpack.c.l.b16 %v2714
    %v2747 = vpack.c.b16 %v2732, %v2731
    %v2748 = vpack.c.b16 %v2734, %v2733
    %v2749 = vpack.c.b16 %v2736, %v2735
    %v2750 = vpack.c.b16 %v2738, %v2737
    %v2751 = vpack.c.b16 %v2740, %v2739
    %v2752 = vpack.c.b16 %v2742, %v2741
    %v2753 = vpack.c.b16 %v2744, %v2743
    %v2754 = vpack.c.b16 %v2746, %v2745
    %2763 = vmatprep.subr.bf16.mxu0 0
    %2764 = vmatpush1.bf16.msra.mxu0 %v2754
    %2765 = vmatprep.subr.bf16.mxu0 0
    %2766 = vmatpush1.bf16.msra.mxu0 %v2753
    %2767 = vmatprep.subr.bf16.mxu0 0
    %2768 = vmatpush1.bf16.msra.mxu0 %v2752
    %2769 = vmatprep.subr.bf16.mxu0 0
    %2770 = vmatpush1.bf16.msra.mxu0 %v2751
    %2771 = vmatprep.subr.bf16.mxu0 0
    %2772 = vmatpush1.bf16.msra.mxu0 %v2750
    %2773 = vmatprep.subr.bf16.mxu0 0
    %2774 = vmatpush1.bf16.msra.mxu0 %v2749
    %2775 = vmatprep.subr.bf16.mxu0 0
    %2776 = vmatpush1.bf16.msra.mxu0 %v2748
    %2777 = vmatprep.subr.bf16.mxu0 0
    %2778 = vmatpush1.bf16.msra.mxu0 %v2747
    %2779 = vmatprep.subr.bf16.mxu0 0
    %2780 = vmatpush2.bf16.msra.mxu0 0
    %2781 = vmatprep.subr.bf16.mxu0 0
    %2782 = vmatpush2.bf16.msra.mxu0 0
    %2783 = vmatprep.subr.bf16.mxu0 0
    %2784 = vmatpush2.bf16.msra.mxu0 0
    %2785 = vmatprep.subr.bf16.mxu0 0
    %2786 = vmatpush2.bf16.msra.mxu0 0
    %2787 = vmatprep.subr.bf16.mxu0 0
    %2788 = vmatpush2.bf16.msra.mxu0 0
    %2789 = vmatprep.subr.bf16.mxu0 0
    %2790 = vmatpush2.bf16.msra.mxu0 0
    %2791 = vmatprep.subr.bf16.mxu0 0
    %2792 = vmatpush2.bf16.msra.mxu0 0
    %2793 = vmatprep.subr.bf16.mxu0 0
    %2794 = vmatpush2.bf16.msra.mxu0 0
    %2795 = vmatprep.mubr.bf16.mxu0 0
    %2796 = vmatmul.mubr.bf16.gmra.mxu0 %v2696
    %v2797 = vpop.f32.mrf.mxu0
    %v2798 = vadd.f32 0.0, %v2797
    %v2799 = vpop.f32.mrf.mxu0
    %v2800 = vpop.f32.mrf.mxu0
    %v2801 = vadd.f32 0.0, %v2800
    %v2802 = vpop.f32.mrf.mxu0
    %2803 = vmatprep.mubr.bf16.mxu0 0
    %2804 = vmatmul.mubr.bf16.gmra.mxu0 %v2697
    %v2805 = vpop.f32.mrf.mxu0
    %v2806 = vadd.f32 0.0, %v2805
    %v2807 = vpop.f32.mrf.mxu0
    %v2808 = vpop.f32.mrf.mxu0
    %v2809 = vadd.f32 0.0, %v2808
    %v2810 = vpop.f32.mrf.mxu0
    %2811 = vdwg.mxu0
    %v2812 = vadd.f32 %v2688, %v2798
    %v2813 = vadd.f32 %v2689, %v2801
    %v2814 = vadd.f32 %v2690, %v2806
    %v2815 = vadd.f32 %v2691, %v2809
    %v2816 = vld [vmem:[#allocation2 + $0x1e0] sm:$0xff]
    %v2817 = vld [vmem:[#allocation2 + $0x1e8] sm:$0xff]
    %v2818 = vld [vmem:[#allocation2 + $0x1f0] sm:$0xff]
    %v2819 = vld [vmem:[#allocation2 + $0x1f8] sm:$0xff]
    %v2820 = vpack.c.bf16 %v2817, %v2816
    %v2821 = vpack.c.bf16 %v2819, %v2818
    %s2822 = scalar_lea.vmem [#allocation9], 960
    %v2823 = vld [vmem:[%s2822] sm:$0xf]
    %v2824 = vld [vmem:[%s2822 + $0x4] sm:$0xf]
    %v2825 = vld [vmem:[%s2822 + $0x8] sm:$0xf]
    %v2826 = vld [vmem:[%s2822 + $0xc] sm:$0xf]
    %v2827 = vld [vmem:[%s2822 + $0x10] sm:$0xf]
    %v2828 = vld [vmem:[%s2822 + $0x14] sm:$0xf]
    %v2829 = vld [vmem:[%s2822 + $0x18] sm:$0xf]
    %v2830 = vld [vmem:[%s2822 + $0x1c] sm:$0xf]
    %v2831 = vld [vmem:[%s2822 + $0x20] sm:$0xf]
    %v2832 = vld [vmem:[%s2822 + $0x24] sm:$0xf]
    %v2833 = vld [vmem:[%s2822 + $0x28] sm:$0xf]
    %v2834 = vld [vmem:[%s2822 + $0x2c] sm:$0xf]
    %v2835 = vld [vmem:[%s2822 + $0x30] sm:$0xf]
    %v2836 = vld [vmem:[%s2822 + $0x34] sm:$0xf]
    %v2837 = vld [vmem:[%s2822 + $0x38] sm:$0xf]
    %v2838 = vld [vmem:[%s2822 + $0x3c] sm:$0xf]
    %v2855 = vunpack.c.l.b16 %v2823
    %v2856 = vunpack.c.l.b16 %v2824
    %v2857 = vunpack.c.l.b16 %v2825
    %v2858 = vunpack.c.l.b16 %v2826
    %v2859 = vunpack.c.l.b16 %v2827
    %v2860 = vunpack.c.l.b16 %v2828
    %v2861 = vunpack.c.l.b16 %v2829
    %v2862 = vunpack.c.l.b16 %v2830
    %v2863 = vunpack.c.l.b16 %v2831
    %v2864 = vunpack.c.l.b16 %v2832
    %v2865 = vunpack.c.l.b16 %v2833
    %v2866 = vunpack.c.l.b16 %v2834
    %v2867 = vunpack.c.l.b16 %v2835
    %v2868 = vunpack.c.l.b16 %v2836
    %v2869 = vunpack.c.l.b16 %v2837
    %v2870 = vunpack.c.l.b16 %v2838
    %v2871 = vpack.c.b16 %v2856, %v2855
    %v2872 = vpack.c.b16 %v2858, %v2857
    %v2873 = vpack.c.b16 %v2860, %v2859
    %v2874 = vpack.c.b16 %v2862, %v2861
    %v2875 = vpack.c.b16 %v2864, %v2863
    %v2876 = vpack.c.b16 %v2866, %v2865
    %v2877 = vpack.c.b16 %v2868, %v2867
    %v2878 = vpack.c.b16 %v2870, %v2869
    %2887 = vmatprep.subr.bf16.mxu0 0
    %2888 = vmatpush1.bf16.msra.mxu0 %v2878
    %2889 = vmatprep.subr.bf16.mxu0 0
    %2890 = vmatpush1.bf16.msra.mxu0 %v2877
    %2891 = vmatprep.subr.bf16.mxu0 0
    %2892 = vmatpush1.bf16.msra.mxu0 %v2876
    %2893 = vmatprep.subr.bf16.mxu0 0
    %2894 = vmatpush1.bf16.msra.mxu0 %v2875
    %2895 = vmatprep.subr.bf16.mxu0 0
    %2896 = vmatpush1.bf16.msra.mxu0 %v2874
    %2897 = vmatprep.subr.bf16.mxu0 0
    %2898 = vmatpush1.bf16.msra.mxu0 %v2873
    %2899 = vmatprep.subr.bf16.mxu0 0
    %2900 = vmatpush1.bf16.msra.mxu0 %v2872
    %2901 = vmatprep.subr.bf16.mxu0 0
    %2902 = vmatpush1.bf16.msra.mxu0 %v2871
    %2903 = vmatprep.subr.bf16.mxu0 0
    %2904 = vmatpush2.bf16.msra.mxu0 0
    %2905 = vmatprep.subr.bf16.mxu0 0
    %2906 = vmatpush2.bf16.msra.mxu0 0
    %2907 = vmatprep.subr.bf16.mxu0 0
    %2908 = vmatpush2.bf16.msra.mxu0 0
    %2909 = vmatprep.subr.bf16.mxu0 0
    %2910 = vmatpush2.bf16.msra.mxu0 0
    %2911 = vmatprep.subr.bf16.mxu0 0
    %2912 = vmatpush2.bf16.msra.mxu0 0
    %2913 = vmatprep.subr.bf16.mxu0 0
    %2914 = vmatpush2.bf16.msra.mxu0 0
    %2915 = vmatprep.subr.bf16.mxu0 0
    %2916 = vmatpush2.bf16.msra.mxu0 0
    %2917 = vmatprep.subr.bf16.mxu0 0
    %2918 = vmatpush2.bf16.msra.mxu0 0
    %2919 = vmatprep.mubr.bf16.mxu0 0
    %2920 = vmatmul.mubr.bf16.gmra.mxu0 %v2820
    %v2921 = vpop.f32.mrf.mxu0
    %v2922 = vadd.f32 0.0, %v2921
    %v2923 = vpop.f32.mrf.mxu0
    %v2924 = vpop.f32.mrf.mxu0
    %v2925 = vadd.f32 0.0, %v2924
    %v2926 = vpop.f32.mrf.mxu0
    %2927 = vmatprep.mubr.bf16.mxu0 0
    %2928 = vmatmul.mubr.bf16.gmra.mxu0 %v2821
    %v2929 = vpop.f32.mrf.mxu0
    %v2930 = vadd.f32 0.0, %v2929
    %v2931 = vpop.f32.mrf.mxu0
    %v2932 = vpop.f32.mrf.mxu0
    %v2933 = vadd.f32 0.0, %v2932
    %v2934 = vpop.f32.mrf.mxu0
    %2935 = vdwg.mxu0
    %v2936 = vadd.f32 %v2812, %v2922
    %v2937 = vadd.f32 %v2813, %v2925
    %v2938 = vadd.f32 %v2814, %v2930
    %v2939 = vadd.f32 %v2815, %v2933
    %v2940 = vld [vmem:[#allocation2 + $0x200] sm:$0xff]
    %v2941 = vld [vmem:[#allocation2 + $0x208] sm:$0xff]
    %v2942 = vld [vmem:[#allocation2 + $0x210] sm:$0xff]
    %v2943 = vld [vmem:[#allocation2 + $0x218] sm:$0xff]
    %v2944 = vpack.c.bf16 %v2941, %v2940
    %v2945 = vpack.c.bf16 %v2943, %v2942
    %s2946 = scalar_lea.vmem [#allocation9], 1024
    %v2947 = vld [vmem:[%s2946] sm:$0xf]
    %v2948 = vld [vmem:[%s2946 + $0x4] sm:$0xf]
    %v2949 = vld [vmem:[%s2946 + $0x8] sm:$0xf]
    %v2950 = vld [vmem:[%s2946 + $0xc] sm:$0xf]
    %v2951 = vld [vmem:[%s2946 + $0x10] sm:$0xf]
    %v2952 = vld [vmem:[%s2946 + $0x14] sm:$0xf]
    %v2953 = vld [vmem:[%s2946 + $0x18] sm:$0xf]
    %v2954 = vld [vmem:[%s2946 + $0x1c] sm:$0xf]
    %v2955 = vld [vmem:[%s2946 + $0x20] sm:$0xf]
    %v2956 = vld [vmem:[%s2946 + $0x24] sm:$0xf]
    %v2957 = vld [vmem:[%s2946 + $0x28] sm:$0xf]
    %v2958 = vld [vmem:[%s2946 + $0x2c] sm:$0xf]
    %v2959 = vld [vmem:[%s2946 + $0x30] sm:$0xf]
    %v2960 = vld [vmem:[%s2946 + $0x34] sm:$0xf]
    %v2961 = vld [vmem:[%s2946 + $0x38] sm:$0xf]
    %v2962 = vld [vmem:[%s2946 + $0x3c] sm:$0xf]
    %v2979 = vunpack.c.l.b16 %v2947
    %v2980 = vunpack.c.l.b16 %v2948
    %v2981 = vunpack.c.l.b16 %v2949
    %v2982 = vunpack.c.l.b16 %v2950
    %v2983 = vunpack.c.l.b16 %v2951
    %v2984 = vunpack.c.l.b16 %v2952
    %v2985 = vunpack.c.l.b16 %v2953
    %v2986 = vunpack.c.l.b16 %v2954
    %v2987 = vunpack.c.l.b16 %v2955
    %v2988 = vunpack.c.l.b16 %v2956
    %v2989 = vunpack.c.l.b16 %v2957
    %v2990 = vunpack.c.l.b16 %v2958
    %v2991 = vunpack.c.l.b16 %v2959
    %v2992 = vunpack.c.l.b16 %v2960
    %v2993 = vunpack.c.l.b16 %v2961
    %v2994 = vunpack.c.l.b16 %v2962
    %v2995 = vpack.c.b16 %v2980, %v2979
    %v2996 = vpack.c.b16 %v2982, %v2981
    %v2997 = vpack.c.b16 %v2984, %v2983
    %v2998 = vpack.c.b16 %v2986, %v2985
    %v2999 = vpack.c.b16 %v2988, %v2987
    %v3000 = vpack.c.b16 %v2990, %v2989
    %v3001 = vpack.c.b16 %v2992, %v2991
    %v3002 = vpack.c.b16 %v2994, %v2993
    %3011 = vmatprep.subr.bf16.mxu0 0
    %3012 = vmatpush1.bf16.msra.mxu0 %v3002
    %3013 = vmatprep.subr.bf16.mxu0 0
    %3014 = vmatpush1.bf16.msra.mxu0 %v3001
    %3015 = vmatprep.subr.bf16.mxu0 0
    %3016 = vmatpush1.bf16.msra.mxu0 %v3000
    %3017 = vmatprep.subr.bf16.mxu0 0
    %3018 = vmatpush1.bf16.msra.mxu0 %v2999
    %3019 = vmatprep.subr.bf16.mxu0 0
    %3020 = vmatpush1.bf16.msra.mxu0 %v2998
    %3021 = vmatprep.subr.bf16.mxu0 0
    %3022 = vmatpush1.bf16.msra.mxu0 %v2997
    %3023 = vmatprep.subr.bf16.mxu0 0
    %3024 = vmatpush1.bf16.msra.mxu0 %v2996
    %3025 = vmatprep.subr.bf16.mxu0 0
    %3026 = vmatpush1.bf16.msra.mxu0 %v2995
    %3027 = vmatprep.subr.bf16.mxu0 0
    %3028 = vmatpush2.bf16.msra.mxu0 0
    %3029 = vmatprep.subr.bf16.mxu0 0
    %3030 = vmatpush2.bf16.msra.mxu0 0
    %3031 = vmatprep.subr.bf16.mxu0 0
    %3032 = vmatpush2.bf16.msra.mxu0 0
    %3033 = vmatprep.subr.bf16.mxu0 0
    %3034 = vmatpush2.bf16.msra.mxu0 0
    %3035 = vmatprep.subr.bf16.mxu0 0
    %3036 = vmatpush2.bf16.msra.mxu0 0
    %3037 = vmatprep.subr.bf16.mxu0 0
    %3038 = vmatpush2.bf16.msra.mxu0 0
    %3039 = vmatprep.subr.bf16.mxu0 0
    %3040 = vmatpush2.bf16.msra.mxu0 0
    %3041 = vmatprep.subr.bf16.mxu0 0
    %3042 = vmatpush2.bf16.msra.mxu0 0
    %3043 = vmatprep.mubr.bf16.mxu0 0
    %3044 = vmatmul.mubr.bf16.gmra.mxu0 %v2944
    %v3045 = vpop.f32.mrf.mxu0
    %v3046 = vadd.f32 0.0, %v3045
    %v3047 = vpop.f32.mrf.mxu0
    %v3048 = vpop.f32.mrf.mxu0
    %v3049 = vadd.f32 0.0, %v3048
    %v3050 = vpop.f32.mrf.mxu0
    %3051 = vmatprep.mubr.bf16.mxu0 0
    %3052 = vmatmul.mubr.bf16.gmra.mxu0 %v2945
    %v3053 = vpop.f32.mrf.mxu0
    %v3054 = vadd.f32 0.0, %v3053
    %v3055 = vpop.f32.mrf.mxu0
    %v3056 = vpop.f32.mrf.mxu0
    %v3057 = vadd.f32 0.0, %v3056
    %v3058 = vpop.f32.mrf.mxu0
    %3059 = vdwg.mxu0
    %v3060 = vadd.f32 %v2936, %v3046
    %v3061 = vadd.f32 %v2937, %v3049
    %v3062 = vadd.f32 %v2938, %v3054
    %v3063 = vadd.f32 %v2939, %v3057
    %v3064 = vld [vmem:[#allocation2 + $0x220] sm:$0xff]
    %v3065 = vld [vmem:[#allocation2 + $0x228] sm:$0xff]
    %v3066 = vld [vmem:[#allocation2 + $0x230] sm:$0xff]
    %v3067 = vld [vmem:[#allocation2 + $0x238] sm:$0xff]
    %v3068 = vpack.c.bf16 %v3065, %v3064
    %v3069 = vpack.c.bf16 %v3067, %v3066
    %s3070 = scalar_lea.vmem [#allocation9], 1088
    %v3071 = vld [vmem:[%s3070] sm:$0xf]
    %v3072 = vld [vmem:[%s3070 + $0x4] sm:$0xf]
    %v3073 = vld [vmem:[%s3070 + $0x8] sm:$0xf]
    %v3074 = vld [vmem:[%s3070 + $0xc] sm:$0xf]
    %v3075 = vld [vmem:[%s3070 + $0x10] sm:$0xf]
    %v3076 = vld [vmem:[%s3070 + $0x14] sm:$0xf]
    %v3077 = vld [vmem:[%s3070 + $0x18] sm:$0xf]
    %v3078 = vld [vmem:[%s3070 + $0x1c] sm:$0xf]
    %v3079 = vld [vmem:[%s3070 + $0x20] sm:$0xf]
    %v3080 = vld [vmem:[%s3070 + $0x24] sm:$0xf]
    %v3081 = vld [vmem:[%s3070 + $0x28] sm:$0xf]
    %v3082 = vld [vmem:[%s3070 + $0x2c] sm:$0xf]
    %v3083 = vld [vmem:[%s3070 + $0x30] sm:$0xf]
    %v3084 = vld [vmem:[%s3070 + $0x34] sm:$0xf]
    %v3085 = vld [vmem:[%s3070 + $0x38] sm:$0xf]
    %v3086 = vld [vmem:[%s3070 + $0x3c] sm:$0xf]
    %v3103 = vunpack.c.l.b16 %v3071
    %v3104 = vunpack.c.l.b16 %v3072
    %v3105 = vunpack.c.l.b16 %v3073
    %v3106 = vunpack.c.l.b16 %v3074
    %v3107 = vunpack.c.l.b16 %v3075
    %v3108 = vunpack.c.l.b16 %v3076
    %v3109 = vunpack.c.l.b16 %v3077
    %v3110 = vunpack.c.l.b16 %v3078
    %v3111 = vunpack.c.l.b16 %v3079
    %v3112 = vunpack.c.l.b16 %v3080
    %v3113 = vunpack.c.l.b16 %v3081
    %v3114 = vunpack.c.l.b16 %v3082
    %v3115 = vunpack.c.l.b16 %v3083
    %v3116 = vunpack.c.l.b16 %v3084
    %v3117 = vunpack.c.l.b16 %v3085
    %v3118 = vunpack.c.l.b16 %v3086
    %v3119 = vpack.c.b16 %v3104, %v3103
    %v3120 = vpack.c.b16 %v3106, %v3105
    %v3121 = vpack.c.b16 %v3108, %v3107
    %v3122 = vpack.c.b16 %v3110, %v3109
    %v3123 = vpack.c.b16 %v3112, %v3111
    %v3124 = vpack.c.b16 %v3114, %v3113
    %v3125 = vpack.c.b16 %v3116, %v3115
    %v3126 = vpack.c.b16 %v3118, %v3117
    %3135 = vmatprep.subr.bf16.mxu0 0
    %3136 = vmatpush1.bf16.msra.mxu0 %v3126
    %3137 = vmatprep.subr.bf16.mxu0 0
    %3138 = vmatpush1.bf16.msra.mxu0 %v3125
    %3139 = vmatprep.subr.bf16.mxu0 0
    %3140 = vmatpush1.bf16.msra.mxu0 %v3124
    %3141 = vmatprep.subr.bf16.mxu0 0
    %3142 = vmatpush1.bf16.msra.mxu0 %v3123
    %3143 = vmatprep.subr.bf16.mxu0 0
    %3144 = vmatpush1.bf16.msra.mxu0 %v3122
    %3145 = vmatprep.subr.bf16.mxu0 0
    %3146 = vmatpush1.bf16.msra.mxu0 %v3121
    %3147 = vmatprep.subr.bf16.mxu0 0
    %3148 = vmatpush1.bf16.msra.mxu0 %v3120
    %3149 = vmatprep.subr.bf16.mxu0 0
    %3150 = vmatpush1.bf16.msra.mxu0 %v3119
    %3151 = vmatprep.subr.bf16.mxu0 0
    %3152 = vmatpush2.bf16.msra.mxu0 0
    %3153 = vmatprep.subr.bf16.mxu0 0
    %3154 = vmatpush2.bf16.msra.mxu0 0
    %3155 = vmatprep.subr.bf16.mxu0 0
    %3156 = vmatpush2.bf16.msra.mxu0 0
    %3157 = vmatprep.subr.bf16.mxu0 0
    %3158 = vmatpush2.bf16.msra.mxu0 0
    %3159 = vmatprep.subr.bf16.mxu0 0
    %3160 = vmatpush2.bf16.msra.mxu0 0
    %3161 = vmatprep.subr.bf16.mxu0 0
    %3162 = vmatpush2.bf16.msra.mxu0 0
    %3163 = vmatprep.subr.bf16.mxu0 0
    %3164 = vmatpush2.bf16.msra.mxu0 0
    %3165 = vmatprep.subr.bf16.mxu0 0
    %3166 = vmatpush2.bf16.msra.mxu0 0
    %3167 = vmatprep.mubr.bf16.mxu0 0
    %3168 = vmatmul.mubr.bf16.gmra.mxu0 %v3068
    %v3169 = vpop.f32.mrf.mxu0
    %v3170 = vadd.f32 0.0, %v3169
    %v3171 = vpop.f32.mrf.mxu0
    %v3172 = vpop.f32.mrf.mxu0
    %v3173 = vadd.f32 0.0, %v3172
    %v3174 = vpop.f32.mrf.mxu0
    %3175 = vmatprep.mubr.bf16.mxu0 0
    %3176 = vmatmul.mubr.bf16.gmra.mxu0 %v3069
    %v3177 = vpop.f32.mrf.mxu0
    %v3178 = vadd.f32 0.0, %v3177
    %v3179 = vpop.f32.mrf.mxu0
    %v3180 = vpop.f32.mrf.mxu0
    %v3181 = vadd.f32 0.0, %v3180
    %v3182 = vpop.f32.mrf.mxu0
    %3183 = vdwg.mxu0
    %v3184 = vadd.f32 %v3060, %v3170
    %v3185 = vadd.f32 %v3061, %v3173
    %v3186 = vadd.f32 %v3062, %v3178
    %v3187 = vadd.f32 %v3063, %v3181
    %v3188 = vld [vmem:[#allocation2 + $0x240] sm:$0xff]
    %v3189 = vld [vmem:[#allocation2 + $0x248] sm:$0xff]
    %v3190 = vld [vmem:[#allocation2 + $0x250] sm:$0xff]
    %v3191 = vld [vmem:[#allocation2 + $0x258] sm:$0xff]
    %v3192 = vpack.c.bf16 %v3189, %v3188
    %v3193 = vpack.c.bf16 %v3191, %v3190
    %s3194 = scalar_lea.vmem [#allocation9], 1152
    %v3195 = vld [vmem:[%s3194] sm:$0xf]
    %v3196 = vld [vmem:[%s3194 + $0x4] sm:$0xf]
    %v3197 = vld [vmem:[%s3194 + $0x8] sm:$0xf]
    %v3198 = vld [vmem:[%s3194 + $0xc] sm:$0xf]
    %v3199 = vld [vmem:[%s3194 + $0x10] sm:$0xf]
    %v3200 = vld [vmem:[%s3194 + $0x14] sm:$0xf]
    %v3201 = vld [vmem:[%s3194 + $0x18] sm:$0xf]
    %v3202 = vld [vmem:[%s3194 + $0x1c] sm:$0xf]
    %v3203 = vld [vmem:[%s3194 + $0x20] sm:$0xf]
    %v3204 = vld [vmem:[%s3194 + $0x24] sm:$0xf]
    %v3205 = vld [vmem:[%s3194 + $0x28] sm:$0xf]
    %v3206 = vld [vmem:[%s3194 + $0x2c] sm:$0xf]
    %v3207 = vld [vmem:[%s3194 + $0x30] sm:$0xf]
    %v3208 = vld [vmem:[%s3194 + $0x34] sm:$0xf]
    %v3209 = vld [vmem:[%s3194 + $0x38] sm:$0xf]
    %v3210 = vld [vmem:[%s3194 + $0x3c] sm:$0xf]
    %v3227 = vunpack.c.l.b16 %v3195
    %v3228 = vunpack.c.l.b16 %v3196
    %v3229 = vunpack.c.l.b16 %v3197
    %v3230 = vunpack.c.l.b16 %v3198
    %v3231 = vunpack.c.l.b16 %v3199
    %v3232 = vunpack.c.l.b16 %v3200
    %v3233 = vunpack.c.l.b16 %v3201
    %v3234 = vunpack.c.l.b16 %v3202
    %v3235 = vunpack.c.l.b16 %v3203
    %v3236 = vunpack.c.l.b16 %v3204
    %v3237 = vunpack.c.l.b16 %v3205
    %v3238 = vunpack.c.l.b16 %v3206
    %v3239 = vunpack.c.l.b16 %v3207
    %v3240 = vunpack.c.l.b16 %v3208
    %v3241 = vunpack.c.l.b16 %v3209
    %v3242 = vunpack.c.l.b16 %v3210
    %v3243 = vpack.c.b16 %v3228, %v3227
    %v3244 = vpack.c.b16 %v3230, %v3229
    %v3245 = vpack.c.b16 %v3232, %v3231
    %v3246 = vpack.c.b16 %v3234, %v3233
    %v3247 = vpack.c.b16 %v3236, %v3235
    %v3248 = vpack.c.b16 %v3238, %v3237
    %v3249 = vpack.c.b16 %v3240, %v3239
    %v3250 = vpack.c.b16 %v3242, %v3241
    %3259 = vmatprep.subr.bf16.mxu0 0
    %3260 = vmatpush1.bf16.msra.mxu0 %v3250
    %3261 = vmatprep.subr.bf16.mxu0 0
    %3262 = vmatpush1.bf16.msra.mxu0 %v3249
    %3263 = vmatprep.subr.bf16.mxu0 0
    %3264 = vmatpush1.bf16.msra.mxu0 %v3248
    %3265 = vmatprep.subr.bf16.mxu0 0
    %3266 = vmatpush1.bf16.msra.mxu0 %v3247
    %3267 = vmatprep.subr.bf16.mxu0 0
    %3268 = vmatpush1.bf16.msra.mxu0 %v3246
    %3269 = vmatprep.subr.bf16.mxu0 0
    %3270 = vmatpush1.bf16.msra.mxu0 %v3245
    %3271 = vmatprep.subr.bf16.mxu0 0
    %3272 = vmatpush1.bf16.msra.mxu0 %v3244
    %3273 = vmatprep.subr.bf16.mxu0 0
    %3274 = vmatpush1.bf16.msra.mxu0 %v3243
    %3275 = vmatprep.subr.bf16.mxu0 0
    %3276 = vmatpush2.bf16.msra.mxu0 0
    %3277 = vmatprep.subr.bf16.mxu0 0
    %3278 = vmatpush2.bf16.msra.mxu0 0
    %3279 = vmatprep.subr.bf16.mxu0 0
    %3280 = vmatpush2.bf16.msra.mxu0 0
    %3281 = vmatprep.subr.bf16.mxu0 0
    %3282 = vmatpush2.bf16.msra.mxu0 0
    %3283 = vmatprep.subr.bf16.mxu0 0
    %3284 = vmatpush2.bf16.msra.mxu0 0
    %3285 = vmatprep.subr.bf16.mxu0 0
    %3286 = vmatpush2.bf16.msra.mxu0 0
    %3287 = vmatprep.subr.bf16.mxu0 0
    %3288 = vmatpush2.bf16.msra.mxu0 0
    %3289 = vmatprep.subr.bf16.mxu0 0
    %3290 = vmatpush2.bf16.msra.mxu0 0
    %3291 = vmatprep.mubr.bf16.mxu0 0
    %3292 = vmatmul.mubr.bf16.gmra.mxu0 %v3192
    %v3293 = vpop.f32.mrf.mxu0
    %v3294 = vadd.f32 0.0, %v3293
    %v3295 = vpop.f32.mrf.mxu0
    %v3296 = vpop.f32.mrf.mxu0
    %v3297 = vadd.f32 0.0, %v3296
    %v3298 = vpop.f32.mrf.mxu0
    %3299 = vmatprep.mubr.bf16.mxu0 0
    %3300 = vmatmul.mubr.bf16.gmra.mxu0 %v3193
    %v3301 = vpop.f32.mrf.mxu0
    %v3302 = vadd.f32 0.0, %v3301
    %v3303 = vpop.f32.mrf.mxu0
    %v3304 = vpop.f32.mrf.mxu0
    %v3305 = vadd.f32 0.0, %v3304
    %v3306 = vpop.f32.mrf.mxu0
    %3307 = vdwg.mxu0
    %v3308 = vadd.f32 %v3184, %v3294
    %v3309 = vadd.f32 %v3185, %v3297
    %v3310 = vadd.f32 %v3186, %v3302
    %v3311 = vadd.f32 %v3187, %v3305
    %v3312 = vld [vmem:[#allocation2 + $0x260] sm:$0xff]
    %v3313 = vld [vmem:[#allocation2 + $0x268] sm:$0xff]
    %v3314 = vld [vmem:[#allocation2 + $0x270] sm:$0xff]
    %v3315 = vld [vmem:[#allocation2 + $0x278] sm:$0xff]
    %v3316 = vpack.c.bf16 %v3313, %v3312
    %v3317 = vpack.c.bf16 %v3315, %v3314
    %s3318 = scalar_lea.vmem [#allocation9], 1216
    %v3319 = vld [vmem:[%s3318] sm:$0xf]
    %v3320 = vld [vmem:[%s3318 + $0x4] sm:$0xf]
    %v3321 = vld [vmem:[%s3318 + $0x8] sm:$0xf]
    %v3322 = vld [vmem:[%s3318 + $0xc] sm:$0xf]
    %v3323 = vld [vmem:[%s3318 + $0x10] sm:$0xf]
    %v3324 = vld [vmem:[%s3318 + $0x14] sm:$0xf]
    %v3325 = vld [vmem:[%s3318 + $0x18] sm:$0xf]
    %v3326 = vld [vmem:[%s3318 + $0x1c] sm:$0xf]
    %v3327 = vld [vmem:[%s3318 + $0x20] sm:$0xf]
    %v3328 = vld [vmem:[%s3318 + $0x24] sm:$0xf]
    %v3329 = vld [vmem:[%s3318 + $0x28] sm:$0xf]
    %v3330 = vld [vmem:[%s3318 + $0x2c] sm:$0xf]
    %v3331 = vld [vmem:[%s3318 + $0x30] sm:$0xf]
    %v3332 = vld [vmem:[%s3318 + $0x34] sm:$0xf]
    %v3333 = vld [vmem:[%s3318 + $0x38] sm:$0xf]
    %v3334 = vld [vmem:[%s3318 + $0x3c] sm:$0xf]
    %v3351 = vunpack.c.l.b16 %v3319
    %v3352 = vunpack.c.l.b16 %v3320
    %v3353 = vunpack.c.l.b16 %v3321
    %v3354 = vunpack.c.l.b16 %v3322
    %v3355 = vunpack.c.l.b16 %v3323
    %v3356 = vunpack.c.l.b16 %v3324
    %v3357 = vunpack.c.l.b16 %v3325
    %v3358 = vunpack.c.l.b16 %v3326
    %v3359 = vunpack.c.l.b16 %v3327
    %v3360 = vunpack.c.l.b16 %v3328
    %v3361 = vunpack.c.l.b16 %v3329
    %v3362 = vunpack.c.l.b16 %v3330
    %v3363 = vunpack.c.l.b16 %v3331
    %v3364 = vunpack.c.l.b16 %v3332
    %v3365 = vunpack.c.l.b16 %v3333
    %v3366 = vunpack.c.l.b16 %v3334
    %v3367 = vpack.c.b16 %v3352, %v3351
    %v3368 = vpack.c.b16 %v3354, %v3353
    %v3369 = vpack.c.b16 %v3356, %v3355
    %v3370 = vpack.c.b16 %v3358, %v3357
    %v3371 = vpack.c.b16 %v3360, %v3359
    %v3372 = vpack.c.b16 %v3362, %v3361
    %v3373 = vpack.c.b16 %v3364, %v3363
    %v3374 = vpack.c.b16 %v3366, %v3365
    %3383 = vmatprep.subr.bf16.mxu0 0
    %3384 = vmatpush1.bf16.msra.mxu0 %v3374
    %3385 = vmatprep.subr.bf16.mxu0 0
    %3386 = vmatpush1.bf16.msra.mxu0 %v3373
    %3387 = vmatprep.subr.bf16.mxu0 0
    %3388 = vmatpush1.bf16.msra.mxu0 %v3372
    %3389 = vmatprep.subr.bf16.mxu0 0
    %3390 = vmatpush1.bf16.msra.mxu0 %v3371
    %3391 = vmatprep.subr.bf16.mxu0 0
    %3392 = vmatpush1.bf16.msra.mxu0 %v3370
    %3393 = vmatprep.subr.bf16.mxu0 0
    %3394 = vmatpush1.bf16.msra.mxu0 %v3369
    %3395 = vmatprep.subr.bf16.mxu0 0
    %3396 = vmatpush1.bf16.msra.mxu0 %v3368
    %3397 = vmatprep.subr.bf16.mxu0 0
    %3398 = vmatpush1.bf16.msra.mxu0 %v3367
    %3399 = vmatprep.subr.bf16.mxu0 0
    %3400 = vmatpush2.bf16.msra.mxu0 0
    %3401 = vmatprep.subr.bf16.mxu0 0
    %3402 = vmatpush2.bf16.msra.mxu0 0
    %3403 = vmatprep.subr.bf16.mxu0 0
    %3404 = vmatpush2.bf16.msra.mxu0 0
    %3405 = vmatprep.subr.bf16.mxu0 0
    %3406 = vmatpush2.bf16.msra.mxu0 0
    %3407 = vmatprep.subr.bf16.mxu0 0
    %3408 = vmatpush2.bf16.msra.mxu0 0
    %3409 = vmatprep.subr.bf16.mxu0 0
    %3410 = vmatpush2.bf16.msra.mxu0 0
    %3411 = vmatprep.subr.bf16.mxu0 0
    %3412 = vmatpush2.bf16.msra.mxu0 0
    %3413 = vmatprep.subr.bf16.mxu0 0
    %3414 = vmatpush2.bf16.msra.mxu0 0
    %3415 = vmatprep.mubr.bf16.mxu0 0
    %3416 = vmatmul.mubr.bf16.gmra.mxu0 %v3316
    %v3417 = vpop.f32.mrf.mxu0
    %v3418 = vadd.f32 0.0, %v3417
    %v3419 = vpop.f32.mrf.mxu0
    %v3420 = vpop.f32.mrf.mxu0
    %v3421 = vadd.f32 0.0, %v3420
    %v3422 = vpop.f32.mrf.mxu0
    %3423 = vmatprep.mubr.bf16.mxu0 0
    %3424 = vmatmul.mubr.bf16.gmra.mxu0 %v3317
    %v3425 = vpop.f32.mrf.mxu0
    %v3426 = vadd.f32 0.0, %v3425
    %v3427 = vpop.f32.mrf.mxu0
    %v3428 = vpop.f32.mrf.mxu0
    %v3429 = vadd.f32 0.0, %v3428
    %v3430 = vpop.f32.mrf.mxu0
    %3431 = vdwg.mxu0
    %v3432 = vadd.f32 %v3308, %v3418
    %v3433 = vadd.f32 %v3309, %v3421
    %v3434 = vadd.f32 %v3310, %v3426
    %v3435 = vadd.f32 %v3311, %v3429
    %v3436 = vld [vmem:[#allocation2 + $0x280] sm:$0xff]
    %v3437 = vld [vmem:[#allocation2 + $0x288] sm:$0xff]
    %v3438 = vld [vmem:[#allocation2 + $0x290] sm:$0xff]
    %v3439 = vld [vmem:[#allocation2 + $0x298] sm:$0xff]
    %v3440 = vpack.c.bf16 %v3437, %v3436
    %v3441 = vpack.c.bf16 %v3439, %v3438
    %s3442 = scalar_lea.vmem [#allocation9], 1280
    %v3443 = vld [vmem:[%s3442] sm:$0xf]
    %v3444 = vld [vmem:[%s3442 + $0x4] sm:$0xf]
    %v3445 = vld [vmem:[%s3442 + $0x8] sm:$0xf]
    %v3446 = vld [vmem:[%s3442 + $0xc] sm:$0xf]
    %v3447 = vld [vmem:[%s3442 + $0x10] sm:$0xf]
    %v3448 = vld [vmem:[%s3442 + $0x14] sm:$0xf]
    %v3449 = vld [vmem:[%s3442 + $0x18] sm:$0xf]
    %v3450 = vld [vmem:[%s3442 + $0x1c] sm:$0xf]
    %v3451 = vld [vmem:[%s3442 + $0x20] sm:$0xf]
    %v3452 = vld [vmem:[%s3442 + $0x24] sm:$0xf]
    %v3453 = vld [vmem:[%s3442 + $0x28] sm:$0xf]
    %v3454 = vld [vmem:[%s3442 + $0x2c] sm:$0xf]
    %v3455 = vld [vmem:[%s3442 + $0x30] sm:$0xf]
    %v3456 = vld [vmem:[%s3442 + $0x34] sm:$0xf]
    %v3457 = vld [vmem:[%s3442 + $0x38] sm:$0xf]
    %v3458 = vld [vmem:[%s3442 + $0x3c] sm:$0xf]
    %v3475 = vunpack.c.l.b16 %v3443
    %v3476 = vunpack.c.l.b16 %v3444
    %v3477 = vunpack.c.l.b16 %v3445
    %v3478 = vunpack.c.l.b16 %v3446
    %v3479 = vunpack.c.l.b16 %v3447
    %v3480 = vunpack.c.l.b16 %v3448
    %v3481 = vunpack.c.l.b16 %v3449
    %v3482 = vunpack.c.l.b16 %v3450
    %v3483 = vunpack.c.l.b16 %v3451
    %v3484 = vunpack.c.l.b16 %v3452
    %v3485 = vunpack.c.l.b16 %v3453
    %v3486 = vunpack.c.l.b16 %v3454
    %v3487 = vunpack.c.l.b16 %v3455
    %v3488 = vunpack.c.l.b16 %v3456
    %v3489 = vunpack.c.l.b16 %v3457
    %v3490 = vunpack.c.l.b16 %v3458
    %v3491 = vpack.c.b16 %v3476, %v3475
    %v3492 = vpack.c.b16 %v3478, %v3477
    %v3493 = vpack.c.b16 %v3480, %v3479
    %v3494 = vpack.c.b16 %v3482, %v3481
    %v3495 = vpack.c.b16 %v3484, %v3483
    %v3496 = vpack.c.b16 %v3486, %v3485
    %v3497 = vpack.c.b16 %v3488, %v3487
    %v3498 = vpack.c.b16 %v3490, %v3489
    %3507 = vmatprep.subr.bf16.mxu0 0
    %3508 = vmatpush1.bf16.msra.mxu0 %v3498
    %3509 = vmatprep.subr.bf16.mxu0 0
    %3510 = vmatpush1.bf16.msra.mxu0 %v3497
    %3511 = vmatprep.subr.bf16.mxu0 0
    %3512 = vmatpush1.bf16.msra.mxu0 %v3496
    %3513 = vmatprep.subr.bf16.mxu0 0
    %3514 = vmatpush1.bf16.msra.mxu0 %v3495
    %3515 = vmatprep.subr.bf16.mxu0 0
    %3516 = vmatpush1.bf16.msra.mxu0 %v3494
    %3517 = vmatprep.subr.bf16.mxu0 0
    %3518 = vmatpush1.bf16.msra.mxu0 %v3493
    %3519 = vmatprep.subr.bf16.mxu0 0
    %3520 = vmatpush1.bf16.msra.mxu0 %v3492
    %3521 = vmatprep.subr.bf16.mxu0 0
    %3522 = vmatpush1.bf16.msra.mxu0 %v3491
    %3523 = vmatprep.subr.bf16.mxu0 0
    %3524 = vmatpush2.bf16.msra.mxu0 0
    %3525 = vmatprep.subr.bf16.mxu0 0
    %3526 = vmatpush2.bf16.msra.mxu0 0
    %3527 = vmatprep.subr.bf16.mxu0 0
    %3528 = vmatpush2.bf16.msra.mxu0 0
    %3529 = vmatprep.subr.bf16.mxu0 0
    %3530 = vmatpush2.bf16.msra.mxu0 0
    %3531 = vmatprep.subr.bf16.mxu0 0
    %3532 = vmatpush2.bf16.msra.mxu0 0
    %3533 = vmatprep.subr.bf16.mxu0 0
    %3534 = vmatpush2.bf16.msra.mxu0 0
    %3535 = vmatprep.subr.bf16.mxu0 0
    %3536 = vmatpush2.bf16.msra.mxu0 0
    %3537 = vmatprep.subr.bf16.mxu0 0
    %3538 = vmatpush2.bf16.msra.mxu0 0
    %3539 = vmatprep.mubr.bf16.mxu0 0
    %3540 = vmatmul.mubr.bf16.gmra.mxu0 %v3440
    %v3541 = vpop.f32.mrf.mxu0
    %v3542 = vadd.f32 0.0, %v3541
    %v3543 = vpop.f32.mrf.mxu0
    %v3544 = vpop.f32.mrf.mxu0
    %v3545 = vadd.f32 0.0, %v3544
    %v3546 = vpop.f32.mrf.mxu0
    %3547 = vmatprep.mubr.bf16.mxu0 0
    %3548 = vmatmul.mubr.bf16.gmra.mxu0 %v3441
    %v3549 = vpop.f32.mrf.mxu0
    %v3550 = vadd.f32 0.0, %v3549
    %v3551 = vpop.f32.mrf.mxu0
    %v3552 = vpop.f32.mrf.mxu0
    %v3553 = vadd.f32 0.0, %v3552
    %v3554 = vpop.f32.mrf.mxu0
    %3555 = vdwg.mxu0
    %v3556 = vadd.f32 %v3432, %v3542
    %v3557 = vadd.f32 %v3433, %v3545
    %v3558 = vadd.f32 %v3434, %v3550
    %v3559 = vadd.f32 %v3435, %v3553
    %v3560 = vld [vmem:[#allocation2 + $0x2a0] sm:$0xff]
    %v3561 = vld [vmem:[#allocation2 + $0x2a8] sm:$0xff]
    %v3562 = vld [vmem:[#allocation2 + $0x2b0] sm:$0xff]
    %v3563 = vld [vmem:[#allocation2 + $0x2b8] sm:$0xff]
    %v3564 = vpack.c.bf16 %v3561, %v3560
    %v3565 = vpack.c.bf16 %v3563, %v3562
    %s3566 = scalar_lea.vmem [#allocation9], 1344
    %v3567 = vld [vmem:[%s3566] sm:$0xf]
    %v3568 = vld [vmem:[%s3566 + $0x4] sm:$0xf]
    %v3569 = vld [vmem:[%s3566 + $0x8] sm:$0xf]
    %v3570 = vld [vmem:[%s3566 + $0xc] sm:$0xf]
    %v3571 = vld [vmem:[%s3566 + $0x10] sm:$0xf]
    %v3572 = vld [vmem:[%s3566 + $0x14] sm:$0xf]
    %v3573 = vld [vmem:[%s3566 + $0x18] sm:$0xf]
    %v3574 = vld [vmem:[%s3566 + $0x1c] sm:$0xf]
    %v3575 = vld [vmem:[%s3566 + $0x20] sm:$0xf]
    %v3576 = vld [vmem:[%s3566 + $0x24] sm:$0xf]
    %v3577 = vld [vmem:[%s3566 + $0x28] sm:$0xf]
    %v3578 = vld [vmem:[%s3566 + $0x2c] sm:$0xf]
    %v3579 = vld [vmem:[%s3566 + $0x30] sm:$0xf]
    %v3580 = vld [vmem:[%s3566 + $0x34] sm:$0xf]
    %v3581 = vld [vmem:[%s3566 + $0x38] sm:$0xf]
    %v3582 = vld [vmem:[%s3566 + $0x3c] sm:$0xf]
    %v3599 = vunpack.c.l.b16 %v3567
    %v3600 = vunpack.c.l.b16 %v3568
    %v3601 = vunpack.c.l.b16 %v3569
    %v3602 = vunpack.c.l.b16 %v3570
    %v3603 = vunpack.c.l.b16 %v3571
    %v3604 = vunpack.c.l.b16 %v3572
    %v3605 = vunpack.c.l.b16 %v3573
    %v3606 = vunpack.c.l.b16 %v3574
    %v3607 = vunpack.c.l.b16 %v3575
    %v3608 = vunpack.c.l.b16 %v3576
    %v3609 = vunpack.c.l.b16 %v3577
    %v3610 = vunpack.c.l.b16 %v3578
    %v3611 = vunpack.c.l.b16 %v3579
    %v3612 = vunpack.c.l.b16 %v3580
    %v3613 = vunpack.c.l.b16 %v3581
    %v3614 = vunpack.c.l.b16 %v3582
    %v3615 = vpack.c.b16 %v3600, %v3599
    %v3616 = vpack.c.b16 %v3602, %v3601
    %v3617 = vpack.c.b16 %v3604, %v3603
    %v3618 = vpack.c.b16 %v3606, %v3605
    %v3619 = vpack.c.b16 %v3608, %v3607
    %v3620 = vpack.c.b16 %v3610, %v3609
    %v3621 = vpack.c.b16 %v3612, %v3611
    %v3622 = vpack.c.b16 %v3614, %v3613
    %3631 = vmatprep.subr.bf16.mxu0 0
    %3632 = vmatpush1.bf16.msra.mxu0 %v3622
    %3633 = vmatprep.subr.bf16.mxu0 0
    %3634 = vmatpush1.bf16.msra.mxu0 %v3621
    %3635 = vmatprep.subr.bf16.mxu0 0
    %3636 = vmatpush1.bf16.msra.mxu0 %v3620
    %3637 = vmatprep.subr.bf16.mxu0 0
    %3638 = vmatpush1.bf16.msra.mxu0 %v3619
    %3639 = vmatprep.subr.bf16.mxu0 0
    %3640 = vmatpush1.bf16.msra.mxu0 %v3618
    %3641 = vmatprep.subr.bf16.mxu0 0
    %3642 = vmatpush1.bf16.msra.mxu0 %v3617
    %3643 = vmatprep.subr.bf16.mxu0 0
    %3644 = vmatpush1.bf16.msra.mxu0 %v3616
    %3645 = vmatprep.subr.bf16.mxu0 0
    %3646 = vmatpush1.bf16.msra.mxu0 %v3615
    %3647 = vmatprep.subr.bf16.mxu0 0
    %3648 = vmatpush2.bf16.msra.mxu0 0
    %3649 = vmatprep.subr.bf16.mxu0 0
    %3650 = vmatpush2.bf16.msra.mxu0 0
    %3651 = vmatprep.subr.bf16.mxu0 0
    %3652 = vmatpush2.bf16.msra.mxu0 0
    %3653 = vmatprep.subr.bf16.mxu0 0
    %3654 = vmatpush2.bf16.msra.mxu0 0
    %3655 = vmatprep.subr.bf16.mxu0 0
    %3656 = vmatpush2.bf16.msra.mxu0 0
    %3657 = vmatprep.subr.bf16.mxu0 0
    %3658 = vmatpush2.bf16.msra.mxu0 0
    %3659 = vmatprep.subr.bf16.mxu0 0
    %3660 = vmatpush2.bf16.msra.mxu0 0
    %3661 = vmatprep.subr.bf16.mxu0 0
    %3662 = vmatpush2.bf16.msra.mxu0 0
    %3663 = vmatprep.mubr.bf16.mxu0 0
    %3664 = vmatmul.mubr.bf16.gmra.mxu0 %v3564
    %v3665 = vpop.f32.mrf.mxu0
    %v3666 = vadd.f32 0.0, %v3665
    %v3667 = vpop.f32.mrf.mxu0
    %v3668 = vpop.f32.mrf.mxu0
    %v3669 = vadd.f32 0.0, %v3668
    %v3670 = vpop.f32.mrf.mxu0
    %3671 = vmatprep.mubr.bf16.mxu0 0
    %3672 = vmatmul.mubr.bf16.gmra.mxu0 %v3565
    %v3673 = vpop.f32.mrf.mxu0
    %v3674 = vadd.f32 0.0, %v3673
    %v3675 = vpop.f32.mrf.mxu0
    %v3676 = vpop.f32.mrf.mxu0
    %v3677 = vadd.f32 0.0, %v3676
    %v3678 = vpop.f32.mrf.mxu0
    %3679 = vdwg.mxu0
    %v3680 = vadd.f32 %v3556, %v3666
    %v3681 = vadd.f32 %v3557, %v3669
    %v3682 = vadd.f32 %v3558, %v3674
    %v3683 = vadd.f32 %v3559, %v3677
    %v3684 = vld [vmem:[#allocation2 + $0x2c0] sm:$0xff]
    %v3685 = vld [vmem:[#allocation2 + $0x2c8] sm:$0xff]
    %v3686 = vld [vmem:[#allocation2 + $0x2d0] sm:$0xff]
    %v3687 = vld [vmem:[#allocation2 + $0x2d8] sm:$0xff]
    %v3688 = vpack.c.bf16 %v3685, %v3684
    %v3689 = vpack.c.bf16 %v3687, %v3686
    %s3690 = scalar_lea.vmem [#allocation9], 1408
    %v3691 = vld [vmem:[%s3690] sm:$0xf]
    %v3692 = vld [vmem:[%s3690 + $0x4] sm:$0xf]
    %v3693 = vld [vmem:[%s3690 + $0x8] sm:$0xf]
    %v3694 = vld [vmem:[%s3690 + $0xc] sm:$0xf]
    %v3695 = vld [vmem:[%s3690 + $0x10] sm:$0xf]
    %v3696 = vld [vmem:[%s3690 + $0x14] sm:$0xf]
    %v3697 = vld [vmem:[%s3690 + $0x18] sm:$0xf]
    %v3698 = vld [vmem:[%s3690 + $0x1c] sm:$0xf]
    %v3699 = vld [vmem:[%s3690 + $0x20] sm:$0xf]
    %v3700 = vld [vmem:[%s3690 + $0x24] sm:$0xf]
    %v3701 = vld [vmem:[%s3690 + $0x28] sm:$0xf]
    %v3702 = vld [vmem:[%s3690 + $0x2c] sm:$0xf]
    %v3703 = vld [vmem:[%s3690 + $0x30] sm:$0xf]
    %v3704 = vld [vmem:[%s3690 + $0x34] sm:$0xf]
    %v3705 = vld [vmem:[%s3690 + $0x38] sm:$0xf]
    %v3706 = vld [vmem:[%s3690 + $0x3c] sm:$0xf]
    %v3723 = vunpack.c.l.b16 %v3691
    %v3724 = vunpack.c.l.b16 %v3692
    %v3725 = vunpack.c.l.b16 %v3693
    %v3726 = vunpack.c.l.b16 %v3694
    %v3727 = vunpack.c.l.b16 %v3695
    %v3728 = vunpack.c.l.b16 %v3696
    %v3729 = vunpack.c.l.b16 %v3697
    %v3730 = vunpack.c.l.b16 %v3698
    %v3731 = vunpack.c.l.b16 %v3699
    %v3732 = vunpack.c.l.b16 %v3700
    %v3733 = vunpack.c.l.b16 %v3701
    %v3734 = vunpack.c.l.b16 %v3702
    %v3735 = vunpack.c.l.b16 %v3703
    %v3736 = vunpack.c.l.b16 %v3704
    %v3737 = vunpack.c.l.b16 %v3705
    %v3738 = vunpack.c.l.b16 %v3706
    %v3739 = vpack.c.b16 %v3724, %v3723
    %v3740 = vpack.c.b16 %v3726, %v3725
    %v3741 = vpack.c.b16 %v3728, %v3727
    %v3742 = vpack.c.b16 %v3730, %v3729
    %v3743 = vpack.c.b16 %v3732, %v3731
    %v3744 = vpack.c.b16 %v3734, %v3733
    %v3745 = vpack.c.b16 %v3736, %v3735
    %v3746 = vpack.c.b16 %v3738, %v3737
    %3755 = vmatprep.subr.bf16.mxu0 0
    %3756 = vmatpush1.bf16.msra.mxu0 %v3746
    %3757 = vmatprep.subr.bf16.mxu0 0
    %3758 = vmatpush1.bf16.msra.mxu0 %v3745
    %3759 = vmatprep.subr.bf16.mxu0 0
    %3760 = vmatpush1.bf16.msra.mxu0 %v3744
    %3761 = vmatprep.subr.bf16.mxu0 0
    %3762 = vmatpush1.bf16.msra.mxu0 %v3743
    %3763 = vmatprep.subr.bf16.mxu0 0
    %3764 = vmatpush1.bf16.msra.mxu0 %v3742
    %3765 = vmatprep.subr.bf16.mxu0 0
    %3766 = vmatpush1.bf16.msra.mxu0 %v3741
    %3767 = vmatprep.subr.bf16.mxu0 0
    %3768 = vmatpush1.bf16.msra.mxu0 %v3740
    %3769 = vmatprep.subr.bf16.mxu0 0
    %3770 = vmatpush1.bf16.msra.mxu0 %v3739
    %3771 = vmatprep.subr.bf16.mxu0 0
    %3772 = vmatpush2.bf16.msra.mxu0 0
    %3773 = vmatprep.subr.bf16.mxu0 0
    %3774 = vmatpush2.bf16.msra.mxu0 0
    %3775 = vmatprep.subr.bf16.mxu0 0
    %3776 = vmatpush2.bf16.msra.mxu0 0
    %3777 = vmatprep.subr.bf16.mxu0 0
    %3778 = vmatpush2.bf16.msra.mxu0 0
    %3779 = vmatprep.subr.bf16.mxu0 0
    %3780 = vmatpush2.bf16.msra.mxu0 0
    %3781 = vmatprep.subr.bf16.mxu0 0
    %3782 = vmatpush2.bf16.msra.mxu0 0
    %3783 = vmatprep.subr.bf16.mxu0 0
    %3784 = vmatpush2.bf16.msra.mxu0 0
    %3785 = vmatprep.subr.bf16.mxu0 0
    %3786 = vmatpush2.bf16.msra.mxu0 0
    %3787 = vmatprep.mubr.bf16.mxu0 0
    %3788 = vmatmul.mubr.bf16.gmra.mxu0 %v3688
    %v3789 = vpop.f32.mrf.mxu0
    %v3790 = vadd.f32 0.0, %v3789
    %v3791 = vpop.f32.mrf.mxu0
    %v3792 = vpop.f32.mrf.mxu0
    %v3793 = vadd.f32 0.0, %v3792
    %v3794 = vpop.f32.mrf.mxu0
    %3795 = vmatprep.mubr.bf16.mxu0 0
    %3796 = vmatmul.mubr.bf16.gmra.mxu0 %v3689
    %v3797 = vpop.f32.mrf.mxu0
    %v3798 = vadd.f32 0.0, %v3797
    %v3799 = vpop.f32.mrf.mxu0
    %v3800 = vpop.f32.mrf.mxu0
    %v3801 = vadd.f32 0.0, %v3800
    %v3802 = vpop.f32.mrf.mxu0
    %3803 = vdwg.mxu0
    %v3804 = vadd.f32 %v3680, %v3790
    %v3805 = vadd.f32 %v3681, %v3793
    %v3806 = vadd.f32 %v3682, %v3798
    %v3807 = vadd.f32 %v3683, %v3801
    %v3808 = vld [vmem:[#allocation2 + $0x2e0] sm:$0xff]
    %v3809 = vld [vmem:[#allocation2 + $0x2e8] sm:$0xff]
    %v3810 = vld [vmem:[#allocation2 + $0x2f0] sm:$0xff]
    %v3811 = vld [vmem:[#allocation2 + $0x2f8] sm:$0xff]
    %v3812 = vpack.c.bf16 %v3809, %v3808
    %v3813 = vpack.c.bf16 %v3811, %v3810
    %s3814 = scalar_lea.vmem [#allocation9], 1472
    %v3815 = vld [vmem:[%s3814] sm:$0xf]
    %v3816 = vld [vmem:[%s3814 + $0x4] sm:$0xf]
    %v3817 = vld [vmem:[%s3814 + $0x8] sm:$0xf]
    %v3818 = vld [vmem:[%s3814 + $0xc] sm:$0xf]
    %v3819 = vld [vmem:[%s3814 + $0x10] sm:$0xf]
    %v3820 = vld [vmem:[%s3814 + $0x14] sm:$0xf]
    %v3821 = vld [vmem:[%s3814 + $0x18] sm:$0xf]
    %v3822 = vld [vmem:[%s3814 + $0x1c] sm:$0xf]
    %v3823 = vld [vmem:[%s3814 + $0x20] sm:$0xf]
    %v3824 = vld [vmem:[%s3814 + $0x24] sm:$0xf]
    %v3825 = vld [vmem:[%s3814 + $0x28] sm:$0xf]
    %v3826 = vld [vmem:[%s3814 + $0x2c] sm:$0xf]
    %v3827 = vld [vmem:[%s3814 + $0x30] sm:$0xf]
    %v3828 = vld [vmem:[%s3814 + $0x34] sm:$0xf]
    %v3829 = vld [vmem:[%s3814 + $0x38] sm:$0xf]
    %v3830 = vld [vmem:[%s3814 + $0x3c] sm:$0xf]
    %v3847 = vunpack.c.l.b16 %v3815
    %v3848 = vunpack.c.l.b16 %v3816
    %v3849 = vunpack.c.l.b16 %v3817
    %v3850 = vunpack.c.l.b16 %v3818
    %v3851 = vunpack.c.l.b16 %v3819
    %v3852 = vunpack.c.l.b16 %v3820
    %v3853 = vunpack.c.l.b16 %v3821
    %v3854 = vunpack.c.l.b16 %v3822
    %v3855 = vunpack.c.l.b16 %v3823
    %v3856 = vunpack.c.l.b16 %v3824
    %v3857 = vunpack.c.l.b16 %v3825
    %v3858 = vunpack.c.l.b16 %v3826
    %v3859 = vunpack.c.l.b16 %v3827
    %v3860 = vunpack.c.l.b16 %v3828
    %v3861 = vunpack.c.l.b16 %v3829
    %v3862 = vunpack.c.l.b16 %v3830
    %v3863 = vpack.c.b16 %v3848, %v3847
    %v3864 = vpack.c.b16 %v3850, %v3849
    %v3865 = vpack.c.b16 %v3852, %v3851
    %v3866 = vpack.c.b16 %v3854, %v3853
    %v3867 = vpack.c.b16 %v3856, %v3855
    %v3868 = vpack.c.b16 %v3858, %v3857
    %v3869 = vpack.c.b16 %v3860, %v3859
    %v3870 = vpack.c.b16 %v3862, %v3861
    %3879 = vmatprep.subr.bf16.mxu0 0
    %3880 = vmatpush1.bf16.msra.mxu0 %v3870
    %3881 = vmatprep.subr.bf16.mxu0 0
    %3882 = vmatpush1.bf16.msra.mxu0 %v3869
    %3883 = vmatprep.subr.bf16.mxu0 0
    %3884 = vmatpush1.bf16.msra.mxu0 %v3868
    %3885 = vmatprep.subr.bf16.mxu0 0
    %3886 = vmatpush1.bf16.msra.mxu0 %v3867
    %3887 = vmatprep.subr.bf16.mxu0 0
    %3888 = vmatpush1.bf16.msra.mxu0 %v3866
    %3889 = vmatprep.subr.bf16.mxu0 0
    %3890 = vmatpush1.bf16.msra.mxu0 %v3865
    %3891 = vmatprep.subr.bf16.mxu0 0
    %3892 = vmatpush1.bf16.msra.mxu0 %v3864
    %3893 = vmatprep.subr.bf16.mxu0 0
    %3894 = vmatpush1.bf16.msra.mxu0 %v3863
    %3895 = vmatprep.subr.bf16.mxu0 0
    %3896 = vmatpush2.bf16.msra.mxu0 0
    %3897 = vmatprep.subr.bf16.mxu0 0
    %3898 = vmatpush2.bf16.msra.mxu0 0
    %3899 = vmatprep.subr.bf16.mxu0 0
    %3900 = vmatpush2.bf16.msra.mxu0 0
    %3901 = vmatprep.subr.bf16.mxu0 0
    %3902 = vmatpush2.bf16.msra.mxu0 0
    %3903 = vmatprep.subr.bf16.mxu0 0
    %3904 = vmatpush2.bf16.msra.mxu0 0
    %3905 = vmatprep.subr.bf16.mxu0 0
    %3906 = vmatpush2.bf16.msra.mxu0 0
    %3907 = vmatprep.subr.bf16.mxu0 0
    %3908 = vmatpush2.bf16.msra.mxu0 0
    %3909 = vmatprep.subr.bf16.mxu0 0
    %3910 = vmatpush2.bf16.msra.mxu0 0
    %3911 = vmatprep.mubr.bf16.mxu0 0
    %3912 = vmatmul.mubr.bf16.gmra.mxu0 %v3812
    %v3913 = vpop.f32.mrf.mxu0
    %v3914 = vadd.f32 0.0, %v3913
    %v3915 = vpop.f32.mrf.mxu0
    %v3916 = vpop.f32.mrf.mxu0
    %v3917 = vadd.f32 0.0, %v3916
    %v3918 = vpop.f32.mrf.mxu0
    %3919 = vmatprep.mubr.bf16.mxu0 0
    %3920 = vmatmul.mubr.bf16.gmra.mxu0 %v3813
    %v3921 = vpop.f32.mrf.mxu0
    %v3922 = vadd.f32 0.0, %v3921
    %v3923 = vpop.f32.mrf.mxu0
    %v3924 = vpop.f32.mrf.mxu0
    %v3925 = vadd.f32 0.0, %v3924
    %v3926 = vpop.f32.mrf.mxu0
    %3927 = vdwg.mxu0
    %v3928 = vadd.f32 %v3804, %v3914
    %v3929 = vadd.f32 %v3805, %v3917
    %v3930 = vadd.f32 %v3806, %v3922
    %v3931 = vadd.f32 %v3807, %v3925
    %v3932 = vld [vmem:[#allocation2 + $0x300] sm:$0xff]
    %v3933 = vld [vmem:[#allocation2 + $0x308] sm:$0xff]
    %v3934 = vld [vmem:[#allocation2 + $0x310] sm:$0xff]
    %v3935 = vld [vmem:[#allocation2 + $0x318] sm:$0xff]
    %v3936 = vpack.c.bf16 %v3933, %v3932
    %v3937 = vpack.c.bf16 %v3935, %v3934
    %s3938 = scalar_lea.vmem [#allocation9], 1536
    %v3939 = vld [vmem:[%s3938] sm:$0xf]
    %v3940 = vld [vmem:[%s3938 + $0x4] sm:$0xf]
    %v3941 = vld [vmem:[%s3938 + $0x8] sm:$0xf]
    %v3942 = vld [vmem:[%s3938 + $0xc] sm:$0xf]
    %v3943 = vld [vmem:[%s3938 + $0x10] sm:$0xf]
    %v3944 = vld [vmem:[%s3938 + $0x14] sm:$0xf]
    %v3945 = vld [vmem:[%s3938 + $0x18] sm:$0xf]
    %v3946 = vld [vmem:[%s3938 + $0x1c] sm:$0xf]
    %v3947 = vld [vmem:[%s3938 + $0x20] sm:$0xf]
    %v3948 = vld [vmem:[%s3938 + $0x24] sm:$0xf]
    %v3949 = vld [vmem:[%s3938 + $0x28] sm:$0xf]
    %v3950 = vld [vmem:[%s3938 + $0x2c] sm:$0xf]
    %v3951 = vld [vmem:[%s3938 + $0x30] sm:$0xf]
    %v3952 = vld [vmem:[%s3938 + $0x34] sm:$0xf]
    %v3953 = vld [vmem:[%s3938 + $0x38] sm:$0xf]
    %v3954 = vld [vmem:[%s3938 + $0x3c] sm:$0xf]
    %v3971 = vunpack.c.l.b16 %v3939
    %v3972 = vunpack.c.l.b16 %v3940
    %v3973 = vunpack.c.l.b16 %v3941
    %v3974 = vunpack.c.l.b16 %v3942
    %v3975 = vunpack.c.l.b16 %v3943
    %v3976 = vunpack.c.l.b16 %v3944
    %v3977 = vunpack.c.l.b16 %v3945
    %v3978 = vunpack.c.l.b16 %v3946
    %v3979 = vunpack.c.l.b16 %v3947
    %v3980 = vunpack.c.l.b16 %v3948
    %v3981 = vunpack.c.l.b16 %v3949
    %v3982 = vunpack.c.l.b16 %v3950
    %v3983 = vunpack.c.l.b16 %v3951
    %v3984 = vunpack.c.l.b16 %v3952
    %v3985 = vunpack.c.l.b16 %v3953
    %v3986 = vunpack.c.l.b16 %v3954
    %v3987 = vpack.c.b16 %v3972, %v3971
    %v3988 = vpack.c.b16 %v3974, %v3973
    %v3989 = vpack.c.b16 %v3976, %v3975
    %v3990 = vpack.c.b16 %v3978, %v3977
    %v3991 = vpack.c.b16 %v3980, %v3979
    %v3992 = vpack.c.b16 %v3982, %v3981
    %v3993 = vpack.c.b16 %v3984, %v3983
    %v3994 = vpack.c.b16 %v3986, %v3985
    %4003 = vmatprep.subr.bf16.mxu0 0
    %4004 = vmatpush1.bf16.msra.mxu0 %v3994
    %4005 = vmatprep.subr.bf16.mxu0 0
    %4006 = vmatpush1.bf16.msra.mxu0 %v3993
    %4007 = vmatprep.subr.bf16.mxu0 0
    %4008 = vmatpush1.bf16.msra.mxu0 %v3992
    %4009 = vmatprep.subr.bf16.mxu0 0
    %4010 = vmatpush1.bf16.msra.mxu0 %v3991
    %4011 = vmatprep.subr.bf16.mxu0 0
    %4012 = vmatpush1.bf16.msra.mxu0 %v3990
    %4013 = vmatprep.subr.bf16.mxu0 0
    %4014 = vmatpush1.bf16.msra.mxu0 %v3989
    %4015 = vmatprep.subr.bf16.mxu0 0
    %4016 = vmatpush1.bf16.msra.mxu0 %v3988
    %4017 = vmatprep.subr.bf16.mxu0 0
    %4018 = vmatpush1.bf16.msra.mxu0 %v3987
    %4019 = vmatprep.subr.bf16.mxu0 0
    %4020 = vmatpush2.bf16.msra.mxu0 0
    %4021 = vmatprep.subr.bf16.mxu0 0
    %4022 = vmatpush2.bf16.msra.mxu0 0
    %4023 = vmatprep.subr.bf16.mxu0 0
    %4024 = vmatpush2.bf16.msra.mxu0 0
    %4025 = vmatprep.subr.bf16.mxu0 0
    %4026 = vmatpush2.bf16.msra.mxu0 0
    %4027 = vmatprep.subr.bf16.mxu0 0
    %4028 = vmatpush2.bf16.msra.mxu0 0
    %4029 = vmatprep.subr.bf16.mxu0 0
    %4030 = vmatpush2.bf16.msra.mxu0 0
    %4031 = vmatprep.subr.bf16.mxu0 0
    %4032 = vmatpush2.bf16.msra.mxu0 0
    %4033 = vmatprep.subr.bf16.mxu0 0
    %4034 = vmatpush2.bf16.msra.mxu0 0
    %4035 = vmatprep.mubr.bf16.mxu0 0
    %4036 = vmatmul.mubr.bf16.gmra.mxu0 %v3936
    %v4037 = vpop.f32.mrf.mxu0
    %v4038 = vadd.f32 0.0, %v4037
    %v4039 = vpop.f32.mrf.mxu0
    %v4040 = vpop.f32.mrf.mxu0
    %v4041 = vadd.f32 0.0, %v4040
    %v4042 = vpop.f32.mrf.mxu0
    %4043 = vmatprep.mubr.bf16.mxu0 0
    %4044 = vmatmul.mubr.bf16.gmra.mxu0 %v3937
    %v4045 = vpop.f32.mrf.mxu0
    %v4046 = vadd.f32 0.0, %v4045
    %v4047 = vpop.f32.mrf.mxu0
    %v4048 = vpop.f32.mrf.mxu0
    %v4049 = vadd.f32 0.0, %v4048
    %v4050 = vpop.f32.mrf.mxu0
    %4051 = vdwg.mxu0
    %v4052 = vadd.f32 %v3928, %v4038
    %v4053 = vadd.f32 %v3929, %v4041
    %v4054 = vadd.f32 %v3930, %v4046
    %v4055 = vadd.f32 %v3931, %v4049
    %v4056 = vld [vmem:[#allocation2 + $0x320] sm:$0xff]
    %v4057 = vld [vmem:[#allocation2 + $0x328] sm:$0xff]
    %v4058 = vld [vmem:[#allocation2 + $0x330] sm:$0xff]
    %v4059 = vld [vmem:[#allocation2 + $0x338] sm:$0xff]
    %v4060 = vpack.c.bf16 %v4057, %v4056
    %v4061 = vpack.c.bf16 %v4059, %v4058
    %s4062 = scalar_lea.vmem [#allocation9], 1600
    %v4063 = vld [vmem:[%s4062] sm:$0xf]
    %v4064 = vld [vmem:[%s4062 + $0x4] sm:$0xf]
    %v4065 = vld [vmem:[%s4062 + $0x8] sm:$0xf]
    %v4066 = vld [vmem:[%s4062 + $0xc] sm:$0xf]
    %v4067 = vld [vmem:[%s4062 + $0x10] sm:$0xf]
    %v4068 = vld [vmem:[%s4062 + $0x14] sm:$0xf]
    %v4069 = vld [vmem:[%s4062 + $0x18] sm:$0xf]
    %v4070 = vld [vmem:[%s4062 + $0x1c] sm:$0xf]
    %v4071 = vld [vmem:[%s4062 + $0x20] sm:$0xf]
    %v4072 = vld [vmem:[%s4062 + $0x24] sm:$0xf]
    %v4073 = vld [vmem:[%s4062 + $0x28] sm:$0xf]
    %v4074 = vld [vmem:[%s4062 + $0x2c] sm:$0xf]
    %v4075 = vld [vmem:[%s4062 + $0x30] sm:$0xf]
    %v4076 = vld [vmem:[%s4062 + $0x34] sm:$0xf]
    %v4077 = vld [vmem:[%s4062 + $0x38] sm:$0xf]
    %v4078 = vld [vmem:[%s4062 + $0x3c] sm:$0xf]
    %v4095 = vunpack.c.l.b16 %v4063
    %v4096 = vunpack.c.l.b16 %v4064
    %v4097 = vunpack.c.l.b16 %v4065
    %v4098 = vunpack.c.l.b16 %v4066
    %v4099 = vunpack.c.l.b16 %v4067
    %v4100 = vunpack.c.l.b16 %v4068
    %v4101 = vunpack.c.l.b16 %v4069
    %v4102 = vunpack.c.l.b16 %v4070
    %v4103 = vunpack.c.l.b16 %v4071
    %v4104 = vunpack.c.l.b16 %v4072
    %v4105 = vunpack.c.l.b16 %v4073
    %v4106 = vunpack.c.l.b16 %v4074
    %v4107 = vunpack.c.l.b16 %v4075
    %v4108 = vunpack.c.l.b16 %v4076
    %v4109 = vunpack.c.l.b16 %v4077
    %v4110 = vunpack.c.l.b16 %v4078
    %v4111 = vpack.c.b16 %v4096, %v4095
    %v4112 = vpack.c.b16 %v4098, %v4097
    %v4113 = vpack.c.b16 %v4100, %v4099
    %v4114 = vpack.c.b16 %v4102, %v4101
    %v4115 = vpack.c.b16 %v4104, %v4103
    %v4116 = vpack.c.b16 %v4106, %v4105
    %v4117 = vpack.c.b16 %v4108, %v4107
    %v4118 = vpack.c.b16 %v4110, %v4109
    %4127 = vmatprep.subr.bf16.mxu0 0
    %4128 = vmatpush1.bf16.msra.mxu0 %v4118
    %4129 = vmatprep.subr.bf16.mxu0 0
    %4130 = vmatpush1.bf16.msra.mxu0 %v4117
    %4131 = vmatprep.subr.bf16.mxu0 0
    %4132 = vmatpush1.bf16.msra.mxu0 %v4116
    %4133 = vmatprep.subr.bf16.mxu0 0
    %4134 = vmatpush1.bf16.msra.mxu0 %v4115
    %4135 = vmatprep.subr.bf16.mxu0 0
    %4136 = vmatpush1.bf16.msra.mxu0 %v4114
    %4137 = vmatprep.subr.bf16.mxu0 0
    %4138 = vmatpush1.bf16.msra.mxu0 %v4113
    %4139 = vmatprep.subr.bf16.mxu0 0
    %4140 = vmatpush1.bf16.msra.mxu0 %v4112
    %4141 = vmatprep.subr.bf16.mxu0 0
    %4142 = vmatpush1.bf16.msra.mxu0 %v4111
    %4143 = vmatprep.subr.bf16.mxu0 0
    %4144 = vmatpush2.bf16.msra.mxu0 0
    %4145 = vmatprep.subr.bf16.mxu0 0
    %4146 = vmatpush2.bf16.msra.mxu0 0
    %4147 = vmatprep.subr.bf16.mxu0 0
    %4148 = vmatpush2.bf16.msra.mxu0 0
    %4149 = vmatprep.subr.bf16.mxu0 0
    %4150 = vmatpush2.bf16.msra.mxu0 0
    %4151 = vmatprep.subr.bf16.mxu0 0
    %4152 = vmatpush2.bf16.msra.mxu0 0
    %4153 = vmatprep.subr.bf16.mxu0 0
    %4154 = vmatpush2.bf16.msra.mxu0 0
    %4155 = vmatprep.subr.bf16.mxu0 0
    %4156 = vmatpush2.bf16.msra.mxu0 0
    %4157 = vmatprep.subr.bf16.mxu0 0
    %4158 = vmatpush2.bf16.msra.mxu0 0
    %4159 = vmatprep.mubr.bf16.mxu0 0
    %4160 = vmatmul.mubr.bf16.gmra.mxu0 %v4060
    %v4161 = vpop.f32.mrf.mxu0
    %v4162 = vadd.f32 0.0, %v4161
    %v4163 = vpop.f32.mrf.mxu0
    %v4164 = vpop.f32.mrf.mxu0
    %v4165 = vadd.f32 0.0, %v4164
    %v4166 = vpop.f32.mrf.mxu0
    %4167 = vmatprep.mubr.bf16.mxu0 0
    %4168 = vmatmul.mubr.bf16.gmra.mxu0 %v4061
    %v4169 = vpop.f32.mrf.mxu0
    %v4170 = vadd.f32 0.0, %v4169
    %v4171 = vpop.f32.mrf.mxu0
    %v4172 = vpop.f32.mrf.mxu0
    %v4173 = vadd.f32 0.0, %v4172
    %v4174 = vpop.f32.mrf.mxu0
    %4175 = vdwg.mxu0
    %v4176 = vadd.f32 %v4052, %v4162
    %v4177 = vadd.f32 %v4053, %v4165
    %v4178 = vadd.f32 %v4054, %v4170
    %v4179 = vadd.f32 %v4055, %v4173
    %v4180 = vld [vmem:[#allocation2 + $0x340] sm:$0xff]
    %v4181 = vld [vmem:[#allocation2 + $0x348] sm:$0xff]
    %v4182 = vld [vmem:[#allocation2 + $0x350] sm:$0xff]
    %v4183 = vld [vmem:[#allocation2 + $0x358] sm:$0xff]
    %v4184 = vpack.c.bf16 %v4181, %v4180
    %v4185 = vpack.c.bf16 %v4183, %v4182
    %s4186 = scalar_lea.vmem [#allocation9], 1664
    %v4187 = vld [vmem:[%s4186] sm:$0xf]
    %v4188 = vld [vmem:[%s4186 + $0x4] sm:$0xf]
    %v4189 = vld [vmem:[%s4186 + $0x8] sm:$0xf]
    %v4190 = vld [vmem:[%s4186 + $0xc] sm:$0xf]
    %v4191 = vld [vmem:[%s4186 + $0x10] sm:$0xf]
    %v4192 = vld [vmem:[%s4186 + $0x14] sm:$0xf]
    %v4193 = vld [vmem:[%s4186 + $0x18] sm:$0xf]
    %v4194 = vld [vmem:[%s4186 + $0x1c] sm:$0xf]
    %v4195 = vld [vmem:[%s4186 + $0x20] sm:$0xf]
    %v4196 = vld [vmem:[%s4186 + $0x24] sm:$0xf]
    %v4197 = vld [vmem:[%s4186 + $0x28] sm:$0xf]
    %v4198 = vld [vmem:[%s4186 + $0x2c] sm:$0xf]
    %v4199 = vld [vmem:[%s4186 + $0x30] sm:$0xf]
    %v4200 = vld [vmem:[%s4186 + $0x34] sm:$0xf]
    %v4201 = vld [vmem:[%s4186 + $0x38] sm:$0xf]
    %v4202 = vld [vmem:[%s4186 + $0x3c] sm:$0xf]
    %v4219 = vunpack.c.l.b16 %v4187
    %v4220 = vunpack.c.l.b16 %v4188
    %v4221 = vunpack.c.l.b16 %v4189
    %v4222 = vunpack.c.l.b16 %v4190
    %v4223 = vunpack.c.l.b16 %v4191
    %v4224 = vunpack.c.l.b16 %v4192
    %v4225 = vunpack.c.l.b16 %v4193
    %v4226 = vunpack.c.l.b16 %v4194
    %v4227 = vunpack.c.l.b16 %v4195
    %v4228 = vunpack.c.l.b16 %v4196
    %v4229 = vunpack.c.l.b16 %v4197
    %v4230 = vunpack.c.l.b16 %v4198
    %v4231 = vunpack.c.l.b16 %v4199
    %v4232 = vunpack.c.l.b16 %v4200
    %v4233 = vunpack.c.l.b16 %v4201
    %v4234 = vunpack.c.l.b16 %v4202
    %v4235 = vpack.c.b16 %v4220, %v4219
    %v4236 = vpack.c.b16 %v4222, %v4221
    %v4237 = vpack.c.b16 %v4224, %v4223
    %v4238 = vpack.c.b16 %v4226, %v4225
    %v4239 = vpack.c.b16 %v4228, %v4227
    %v4240 = vpack.c.b16 %v4230, %v4229
    %v4241 = vpack.c.b16 %v4232, %v4231
    %v4242 = vpack.c.b16 %v4234, %v4233
    %4251 = vmatprep.subr.bf16.mxu0 0
    %4252 = vmatpush1.bf16.msra.mxu0 %v4242
    %4253 = vmatprep.subr.bf16.mxu0 0
    %4254 = vmatpush1.bf16.msra.mxu0 %v4241
    %4255 = vmatprep.subr.bf16.mxu0 0
    %4256 = vmatpush1.bf16.msra.mxu0 %v4240
    %4257 = vmatprep.subr.bf16.mxu0 0
    %4258 = vmatpush1.bf16.msra.mxu0 %v4239
    %4259 = vmatprep.subr.bf16.mxu0 0
    %4260 = vmatpush1.bf16.msra.mxu0 %v4238
    %4261 = vmatprep.subr.bf16.mxu0 0
    %4262 = vmatpush1.bf16.msra.mxu0 %v4237
    %4263 = vmatprep.subr.bf16.mxu0 0
    %4264 = vmatpush1.bf16.msra.mxu0 %v4236
    %4265 = vmatprep.subr.bf16.mxu0 0
    %4266 = vmatpush1.bf16.msra.mxu0 %v4235
    %4267 = vmatprep.subr.bf16.mxu0 0
    %4268 = vmatpush2.bf16.msra.mxu0 0
    %4269 = vmatprep.subr.bf16.mxu0 0
    %4270 = vmatpush2.bf16.msra.mxu0 0
    %4271 = vmatprep.subr.bf16.mxu0 0
    %4272 = vmatpush2.bf16.msra.mxu0 0
    %4273 = vmatprep.subr.bf16.mxu0 0
    %4274 = vmatpush2.bf16.msra.mxu0 0
    %4275 = vmatprep.subr.bf16.mxu0 0
    %4276 = vmatpush2.bf16.msra.mxu0 0
    %4277 = vmatprep.subr.bf16.mxu0 0
    %4278 = vmatpush2.bf16.msra.mxu0 0
    %4279 = vmatprep.subr.bf16.mxu0 0
    %4280 = vmatpush2.bf16.msra.mxu0 0
    %4281 = vmatprep.subr.bf16.mxu0 0
    %4282 = vmatpush2.bf16.msra.mxu0 0
    %4283 = vmatprep.mubr.bf16.mxu0 0
    %4284 = vmatmul.mubr.bf16.gmra.mxu0 %v4184
    %v4285 = vpop.f32.mrf.mxu0
    %v4286 = vadd.f32 0.0, %v4285
    %v4287 = vpop.f32.mrf.mxu0
    %v4288 = vpop.f32.mrf.mxu0
    %v4289 = vadd.f32 0.0, %v4288
    %v4290 = vpop.f32.mrf.mxu0
    %4291 = vmatprep.mubr.bf16.mxu0 0
    %4292 = vmatmul.mubr.bf16.gmra.mxu0 %v4185
    %v4293 = vpop.f32.mrf.mxu0
    %v4294 = vadd.f32 0.0, %v4293
    %v4295 = vpop.f32.mrf.mxu0
    %v4296 = vpop.f32.mrf.mxu0
    %v4297 = vadd.f32 0.0, %v4296
    %v4298 = vpop.f32.mrf.mxu0
    %4299 = vdwg.mxu0
    %v4300 = vadd.f32 %v4176, %v4286
    %v4301 = vadd.f32 %v4177, %v4289
    %v4302 = vadd.f32 %v4178, %v4294
    %v4303 = vadd.f32 %v4179, %v4297
    %v4304 = vadd.f32 %v4300, %v4301
    %v4305 = vadd.f32 %v4304, %v4302
    %v4306 = vadd.f32 %v4305, %v4303
    %v4307 = vrot.slane %v4306, 4
    %v4308 = vadd.f32 %v4306, %v4307
    %v4309 = vrot.slane %v4308, 2
    %v4310 = vadd.f32 %v4308, %v4309
    %v4311 = vrot.slane %v4310, 1
    %v4312 = vadd.f32 %v4310, %v4311
    %v4313 = vrcp.pop 32.0
    %v4314 = vmul.f32 %v4312, %v4313
    %v4315 = vsub.f32 %v4300, %v4314
    %v4316 = vsub.f32 %v4301, %v4314
    %v4317 = vsub.f32 %v4302, %v4314
    %v4318 = vsub.f32 %v4303, %v4314
    %v4319 = vmul.f32 %v4315, %v4315
    %v4320 = vmul.f32 %v4316, %v4316
    %v4321 = vmul.f32 %v4317, %v4317
    %v4322 = vmul.f32 %v4318, %v4318
    %v4323 = vadd.f32 %v4319, %v4320
    %v4324 = vadd.f32 %v4323, %v4321
    %v4325 = vadd.f32 %v4324, %v4322
    %v4326 = vrot.slane %v4325, 4
    %v4327 = vadd.f32 %v4325, %v4326
    %v4328 = vrot.slane %v4327, 2
    %v4329 = vadd.f32 %v4327, %v4328
    %v4330 = vrot.slane %v4329, 1
    %v4331 = vadd.f32 %v4329, %v4330
    %v4332 = vmul.f32 %v4331, %v4313
    %v4333 = vld [vmem:[%s3] sm:$0x1]
    %v4334 = vadd.f32 %v4332, 0.0001
    %v4335 = vrsqrt.pop %v4334
    %v4336 = vmul.f32 %v4333, %v4335
    %v4337 = vld [vmem:[%s4] sm:$0x1]
    %v4338 = vmul.f32 %v4314, %v4336
    %v4339 = vsub.f32 %v4337, %v4338
    %v4341 = vlaneseq
    %v4342 = vshrl.u32 %v4341, 7
    %v4343 = vsub.s32 0, %v4342
    %v4344 = vrot.slane %v4336, %v4343
    %v4346 = vmul.f32 %v4300, %v4344
    %v4347 = vmul.f32 %v4301, %v4344
    %v4348 = vmul.f32 %v4302, %v4344
    %v4349 = vmul.f32 %v4303, %v4344
    %v4351 = vlaneseq
    %v4352 = vshrl.u32 %v4351, 7
    %v4353 = vsub.s32 0, %v4352
    %v4354 = vrot.slane %v4339, %v4353
    %v4356 = vadd.f32 %v4346, %v4354
    %v4357 = vadd.f32 %v4347, %v4354
    %v4358 = vadd.f32 %v4348, %v4354
    %v4359 = vadd.f32 %v4349, %v4354
    %v4360 = vmax.f32 %v4356, 0.0
    %v4361 = vmax.f32 %v4357, 0.0
    %v4362 = vmax.f32 %v4358, 0.0
    %v4363 = vmax.f32 %v4359, 0.0
    %4364 = vst [vmem:[#allocation3] sm:$0xff] 0.0
    %4365 = vst [vmem:[#allocation3 + $0x8] sm:$0xff] 0.0
    %4366 = vst [vmem:[#allocation3 + $0x10] sm:$0xff] 0.0
    %4367 = vst [vmem:[#allocation3 + $0x18] sm:$0xff] 0.0
    %4368 = vst [vmem:[#allocation3 + $0x20] sm:$0xff] 0.0
    %4369 = vst [vmem:[#allocation3 + $0x28] sm:$0xff] 0.0
    %4370 = vst [vmem:[#allocation3 + $0x30] sm:$0xff] 0.0
    %4371 = vst [vmem:[#allocation3 + $0x38] sm:$0xff] 0.0
    %4372 = vst [vmem:[#allocation3 + $0x40] sm:$0xff] 0.0
    %4373 = vst [vmem:[#allocation3 + $0x48] sm:$0xff] 0.0
    %4374 = vst [vmem:[#allocation3 + $0x50] sm:$0xff] 0.0
    %4375 = vst [vmem:[#allocation3 + $0x58] sm:$0xff] 0.0
    %4376 = vst [vmem:[#allocation3 + $0x60] sm:$0xff] 0.0
    %4377 = vst [vmem:[#allocation3 + $0x68] sm:$0xff] 0.0
    %4378 = vst [vmem:[#allocation3 + $0x70] sm:$0xff] 0.0
    %4379 = vst [vmem:[#allocation3 + $0x78] sm:$0xff] 0.0
    %4380 = vst [vmem:[#allocation3] sm:$0xff] %v4360
    %4381 = vst [vmem:[#allocation3 + $0x8] sm:$0xff] %v4361
    %4382 = vst [vmem:[#allocation3 + $0x10] sm:$0xff] %v4362
    %4383 = vst [vmem:[#allocation3 + $0x18] sm:$0xff] %v4363
    %v4384 = vld [vmem:[#allocation10] sm:$0xff]
    %v4385 = vld [vmem:[#allocation10 + $0x8] sm:$0xff]
    %v4386 = vld [vmem:[#allocation10 + $0x10] sm:$0xff]
    %v4387 = vld [vmem:[#allocation10 + $0x18] sm:$0xff]
    %v4388 = vld [vmem:[#allocation10 + $0x20] sm:$0xff]
    %v4389 = vld [vmem:[#allocation10 + $0x28] sm:$0xff]
    %v4390 = vld [vmem:[#allocation10 + $0x30] sm:$0xff]
    %v4391 = vld [vmem:[#allocation10 + $0x38] sm:$0xff]
    %v4392 = vld [vmem:[#allocation3] sm:$0xff]
    %v4393 = vld [vmem:[#allocation3 + $0x8] sm:$0xff]
    %v4394 = vld [vmem:[#allocation3 + $0x10] sm:$0xff]
    %v4395 = vld [vmem:[#allocation3 + $0x18] sm:$0xff]
    %v4396 = vld [vmem:[#allocation3 + $0x20] sm:$0xff]
    %v4397 = vld [vmem:[#allocation3 + $0x28] sm:$0xff]
    %v4398 = vld [vmem:[#allocation3 + $0x30] sm:$0xff]
    %v4399 = vld [vmem:[#allocation3 + $0x38] sm:$0xff]
    %v4400 = vld [vmem:[#allocation3 + $0x40] sm:$0xff]
    %v4401 = vld [vmem:[#allocation3 + $0x48] sm:$0xff]
    %v4402 = vld [vmem:[#allocation3 + $0x50] sm:$0xff]
    %v4403 = vld [vmem:[#allocation3 + $0x58] sm:$0xff]
    %v4404 = vld [vmem:[#allocation3 + $0x60] sm:$0xff]
    %v4405 = vld [vmem:[#allocation3 + $0x68] sm:$0xff]
    %v4406 = vld [vmem:[#allocation3 + $0x70] sm:$0xff]
    %v4407 = vld [vmem:[#allocation3 + $0x78] sm:$0xff]
    %4408 = vmatprep.subr.mxu0 0.0
    %4409 = vmatpush1.msra.mxu0 %v4407
    %4410 = vmatprep.subr.mxu0 0.0
    %4411 = vmatpush1.msra.mxu0 %v4406
    %4412 = vmatprep.subr.mxu0 0.0
    %4413 = vmatpush1.msra.mxu0 %v4405
    %4414 = vmatprep.subr.mxu0 0.0
    %4415 = vmatpush1.msra.mxu0 %v4404
    %4416 = vmatprep.subr.mxu0 0.0
    %4417 = vmatpush1.msra.mxu0 %v4403
    %4418 = vmatprep.subr.mxu0 0.0
    %4419 = vmatpush1.msra.mxu0 %v4402
    %4420 = vmatprep.subr.mxu0 0.0
    %4421 = vmatpush1.msra.mxu0 %v4401
    %4422 = vmatprep.subr.mxu0 0.0
    %4423 = vmatpush1.msra.mxu0 %v4400
    %4424 = vmatprep.subr.mxu0 0.0
    %4425 = vmatpush1.msra.mxu0 %v4399
    %4426 = vmatprep.subr.mxu0 0.0
    %4427 = vmatpush1.msra.mxu0 %v4398
    %4428 = vmatprep.subr.mxu0 0.0
    %4429 = vmatpush1.msra.mxu0 %v4397
    %4430 = vmatprep.subr.mxu0 0.0
    %4431 = vmatpush1.msra.mxu0 %v4396
    %4432 = vmatprep.subr.mxu0 0.0
    %4433 = vmatpush1.msra.mxu0 %v4395
    %4434 = vmatprep.subr.mxu0 0.0
    %4435 = vmatpush1.msra.mxu0 %v4394
    %4436 = vmatprep.subr.mxu0 0.0
    %4437 = vmatpush1.msra.mxu0 %v4393
    %4438 = vmatprep.subr.mxu0 0.0
    %4439 = vmatpush1.msra.mxu0 %v4392
    %4440 = vmatprep.subr.mxu0 0.0
    %4441 = vmatpush2.msra.mxu0 0.0
    %4442 = vmatprep.subr.mxu0 0.0
    %4443 = vmatpush2.msra.mxu0 0.0
    %4444 = vmatprep.subr.mxu0 0.0
    %4445 = vmatpush2.msra.mxu0 0.0
    %4446 = vmatprep.subr.mxu0 0.0
    %4447 = vmatpush2.msra.mxu0 0.0
    %4448 = vmatprep.subr.mxu0 0.0
    %4449 = vmatpush2.msra.mxu0 0.0
    %4450 = vmatprep.subr.mxu0 0.0
    %4451 = vmatpush2.msra.mxu0 0.0
    %4452 = vmatprep.subr.mxu0 0.0
    %4453 = vmatpush2.msra.mxu0 0.0
    %4454 = vmatprep.subr.mxu0 0.0
    %4455 = vmatpush2.msra.mxu0 0.0
    %4456 = vmatprep.subr.mxu0 0.0
    %4457 = vmatpush2.msra.mxu0 0.0
    %4458 = vmatprep.subr.mxu0 0.0
    %4459 = vmatpush2.msra.mxu0 0.0
    %4460 = vmatprep.subr.mxu0 0.0
    %4461 = vmatpush2.msra.mxu0 0.0
    %4462 = vmatprep.subr.mxu0 0.0
    %4463 = vmatpush2.msra.mxu0 0.0
    %4464 = vmatprep.subr.mxu0 0.0
    %4465 = vmatpush2.msra.mxu0 0.0
    %4466 = vmatprep.subr.mxu0 0.0
    %4467 = vmatpush2.msra.mxu0 0.0
    %4468 = vmatprep.subr.mxu0 0.0
    %4469 = vmatpush2.msra.mxu0 0.0
    %4470 = vmatprep.subr.mxu0 0.0
    %4471 = vmatpush2.msra.mxu0 0.0
    %4472 = vmatprep.mubr.f32.mxu0 0.0
    %4473 = vmatmul.mubr.f32.gmra.mxu0 %v4384
    %v4474 = vpop.f32.mrf.mxu0
    %v4475 = vadd.f32 0.0, %v4474
    %v4476 = vpop.f32.mrf.mxu0
    %4477 = vmatprep.mubr.f32.mxu0 0.0
    %4478 = vmatmul.mubr.f32.gmra.mxu0 %v4385
    %v4479 = vpop.f32.mrf.mxu0
    %v4480 = vadd.f32 0.0, %v4479
    %v4481 = vpop.f32.mrf.mxu0
    %4482 = vmatprep.mubr.f32.mxu0 0.0
    %4483 = vmatmul.mubr.f32.gmra.mxu0 %v4386
    %v4484 = vpop.f32.mrf.mxu0
    %v4485 = vadd.f32 0.0, %v4484
    %v4486 = vpop.f32.mrf.mxu0
    %4487 = vmatprep.mubr.f32.mxu0 0.0
    %4488 = vmatmul.mubr.f32.gmra.mxu0 %v4387
    %v4489 = vpop.f32.mrf.mxu0
    %v4490 = vadd.f32 0.0, %v4489
    %v4491 = vpop.f32.mrf.mxu0
    %4492 = vmatprep.mubr.f32.mxu0 0.0
    %4493 = vmatmul.mubr.f32.gmra.mxu0 %v4388
    %v4494 = vpop.f32.mrf.mxu0
    %v4495 = vadd.f32 0.0, %v4494
    %v4496 = vpop.f32.mrf.mxu0
    %4497 = vmatprep.mubr.f32.mxu0 0.0
    %4498 = vmatmul.mubr.f32.gmra.mxu0 %v4389
    %v4499 = vpop.f32.mrf.mxu0
    %v4500 = vadd.f32 0.0, %v4499
    %v4501 = vpop.f32.mrf.mxu0
    %4502 = vmatprep.mubr.f32.mxu0 0.0
    %4503 = vmatmul.mubr.f32.gmra.mxu0 %v4390
    %v4504 = vpop.f32.mrf.mxu0
    %v4505 = vadd.f32 0.0, %v4504
    %v4506 = vpop.f32.mrf.mxu0
    %4507 = vmatprep.mubr.f32.mxu0 0.0
    %4508 = vmatmul.mubr.f32.gmra.mxu0 %v4391
    %v4509 = vpop.f32.mrf.mxu0
    %v4510 = vadd.f32 0.0, %v4509
    %v4511 = vpop.f32.mrf.mxu0
    %4512 = vdwg.mxu0
    %v4513 = vpack.c.bf16 %v4480, %v4475
    %v4514 = vpack.c.bf16 %v4490, %v4485
    %v4515 = vpack.c.bf16 %v4500, %v4495
    %v4516 = vpack.c.bf16 %v4510, %v4505
    %v4517 = vld [vmem:[#allocation12] sm:$0xf]
    %v4518 = vld [vmem:[#allocation12 + $0x4] sm:$0xf]
    %v4519 = vld [vmem:[#allocation12 + $0x8] sm:$0xf]
    %v4520 = vld [vmem:[#allocation12 + $0xc] sm:$0xf]
    %v4521 = vld [vmem:[#allocation12 + $0x10] sm:$0xf]
    %v4522 = vld [vmem:[#allocation12 + $0x14] sm:$0xf]
    %v4523 = vld [vmem:[#allocation12 + $0x18] sm:$0xf]
    %v4524 = vld [vmem:[#allocation12 + $0x1c] sm:$0xf]
    %v4525 = vld [vmem:[#allocation12 + $0x20] sm:$0xf]
    %v4526 = vld [vmem:[#allocation12 + $0x24] sm:$0xf]
    %v4527 = vld [vmem:[#allocation12 + $0x28] sm:$0xf]
    %v4528 = vld [vmem:[#allocation12 + $0x2c] sm:$0xf]
    %v4529 = vld [vmem:[#allocation12 + $0x30] sm:$0xf]
    %v4530 = vld [vmem:[#allocation12 + $0x34] sm:$0xf]
    %v4531 = vld [vmem:[#allocation12 + $0x38] sm:$0xf]
    %v4532 = vld [vmem:[#allocation12 + $0x3c] sm:$0xf]
    %v4533 = vld [vmem:[%s7] sm:$0x1]
    %v4535 = vlaneseq
    %v4536 = vshrl.u32 %v4535, 7
    %v4537 = vsub.s32 0, %v4536
    %v4538 = vrot.slane %v4533, %v4537
    %v4556 = vunpack.c.l.b16 %v4517
    %v4557 = vunpack.c.l.b16 %v4518
    %v4558 = vunpack.c.l.b16 %v4519
    %v4559 = vunpack.c.l.b16 %v4520
    %v4560 = vunpack.c.l.b16 %v4521
    %v4561 = vunpack.c.l.b16 %v4522
    %v4562 = vunpack.c.l.b16 %v4523
    %v4563 = vunpack.c.l.b16 %v4524
    %v4564 = vunpack.c.l.b16 %v4525
    %v4565 = vunpack.c.l.b16 %v4526
    %v4566 = vunpack.c.l.b16 %v4527
    %v4567 = vunpack.c.l.b16 %v4528
    %v4568 = vunpack.c.l.b16 %v4529
    %v4569 = vunpack.c.l.b16 %v4530
    %v4570 = vunpack.c.l.b16 %v4531
    %v4571 = vunpack.c.l.b16 %v4532
    %v4572 = vpack.c.b16 %v4557, %v4556
    %v4573 = vpack.c.b16 %v4559, %v4558
    %v4574 = vpack.c.b16 %v4561, %v4560
    %v4575 = vpack.c.b16 %v4563, %v4562
    %v4576 = vpack.c.b16 %v4565, %v4564
    %v4577 = vpack.c.b16 %v4567, %v4566
    %v4578 = vpack.c.b16 %v4569, %v4568
    %v4579 = vpack.c.b16 %v4571, %v4570
    %4588 = vmatprep.subr.bf16.mxu0 0
    %4589 = vmatpush1.bf16.msra.mxu0 %v4579
    %4590 = vmatprep.subr.bf16.mxu0 0
    %4591 = vmatpush1.bf16.msra.mxu0 %v4578
    %4592 = vmatprep.subr.bf16.mxu0 0
    %4593 = vmatpush1.bf16.msra.mxu0 %v4577
    %4594 = vmatprep.subr.bf16.mxu0 0
    %4595 = vmatpush1.bf16.msra.mxu0 %v4576
    %4596 = vmatprep.subr.bf16.mxu0 0
    %4597 = vmatpush1.bf16.msra.mxu0 %v4575
    %4598 = vmatprep.subr.bf16.mxu0 0
    %4599 = vmatpush1.bf16.msra.mxu0 %v4574
    %4600 = vmatprep.subr.bf16.mxu0 0
    %4601 = vmatpush1.bf16.msra.mxu0 %v4573
    %4602 = vmatprep.subr.bf16.mxu0 0
    %4603 = vmatpush1.bf16.msra.mxu0 %v4572
    %4604 = vmatprep.subr.bf16.mxu0 0
    %4605 = vmatpush2.bf16.msra.mxu0 0
    %4606 = vmatprep.subr.bf16.mxu0 0
    %4607 = vmatpush2.bf16.msra.mxu0 0
    %4608 = vmatprep.subr.bf16.mxu0 0
    %4609 = vmatpush2.bf16.msra.mxu0 0
    %4610 = vmatprep.subr.bf16.mxu0 0
    %4611 = vmatpush2.bf16.msra.mxu0 0
    %4612 = vmatprep.subr.bf16.mxu0 0
    %4613 = vmatpush2.bf16.msra.mxu0 0
    %4614 = vmatprep.subr.bf16.mxu0 0
    %4615 = vmatpush2.bf16.msra.mxu0 0
    %4616 = vmatprep.subr.bf16.mxu0 0
    %4617 = vmatpush2.bf16.msra.mxu0 0
    %4618 = vmatprep.subr.bf16.mxu0 0
    %4619 = vmatpush2.bf16.msra.mxu0 0
    %4620 = vmatprep.mubr.bf16.mxu0 0
    %4621 = vmatmul.mubr.bf16.gmra.mxu0 %v4513
    %v4622 = vpop.f32.mrf.mxu0
    %v4623 = vadd.f32 %v4538, %v4622
    %v4624 = vpop.f32.mrf.mxu0
    %v4625 = vpop.f32.mrf.mxu0
    %v4626 = vadd.f32 %v4538, %v4625
    %v4627 = vpop.f32.mrf.mxu0
    %4628 = vmatprep.mubr.bf16.mxu0 0
    %4629 = vmatmul.mubr.bf16.gmra.mxu0 %v4514
    %v4630 = vpop.f32.mrf.mxu0
    %v4631 = vadd.f32 %v4538, %v4630
    %v4632 = vpop.f32.mrf.mxu0
    %v4633 = vpop.f32.mrf.mxu0
    %v4634 = vadd.f32 %v4538, %v4633
    %v4635 = vpop.f32.mrf.mxu0
    %4636 = vmatprep.mubr.bf16.mxu0 0
    %4637 = vmatmul.mubr.bf16.gmra.mxu0 %v4515
    %v4638 = vpop.f32.mrf.mxu0
    %v4639 = vadd.f32 %v4538, %v4638
    %v4640 = vpop.f32.mrf.mxu0
    %v4641 = vpop.f32.mrf.mxu0
    %v4642 = vadd.f32 %v4538, %v4641
    %v4643 = vpop.f32.mrf.mxu0
    %4644 = vmatprep.mubr.bf16.mxu0 0
    %4645 = vmatmul.mubr.bf16.gmra.mxu0 %v4516
    %v4646 = vpop.f32.mrf.mxu0
    %v4647 = vadd.f32 %v4538, %v4646
    %v4648 = vpop.f32.mrf.mxu0
    %v4649 = vpop.f32.mrf.mxu0
    %v4650 = vadd.f32 %v4538, %v4649
    %v4651 = vpop.f32.mrf.mxu0
    %4652 = vdwg.mxu0
    %v4653 = vadd.f32 %v4623, %v4626
    %v4654 = vadd.f32 %v4653, %v4631
    %v4655 = vadd.f32 %v4654, %v4634
    %v4656 = vadd.f32 %v4655, %v4639
    %v4657 = vadd.f32 %v4656, %v4642
    %v4658 = vadd.f32 %v4657, %v4647
    %v4659 = vadd.f32 %v4658, %v4650
    %v4660 = vrot.slane %v4659, 4
    %v4661 = vadd.f32 %v4659, %v4660
    %v4662 = vrot.slane %v4661, 2
    %v4663 = vadd.f32 %v4661, %v4662
    %v4664 = vrot.slane %v4663, 1
    %v4665 = vadd.f32 %v4663, %v4664
    %v4666 = vrcp.pop 64.0
    %v4667 = vmul.f32 %v4665, %v4666
    %v4668 = vsub.f32 %v4623, %v4667
    %v4669 = vsub.f32 %v4626, %v4667
    %v4670 = vsub.f32 %v4631, %v4667
    %v4671 = vsub.f32 %v4634, %v4667
    %v4672 = vsub.f32 %v4639, %v4667
    %v4673 = vsub.f32 %v4642, %v4667
    %v4674 = vsub.f32 %v4647, %v4667
    %v4675 = vsub.f32 %v4650, %v4667
    %v4676 = vmul.f32 %v4668, %v4668
    %v4677 = vmul.f32 %v4669, %v4669
    %v4678 = vmul.f32 %v4670, %v4670
    %v4679 = vmul.f32 %v4671, %v4671
    %v4680 = vmul.f32 %v4672, %v4672
    %v4681 = vmul.f32 %v4673, %v4673
    %v4682 = vmul.f32 %v4674, %v4674
    %v4683 = vmul.f32 %v4675, %v4675
    %v4684 = vadd.f32 %v4676, %v4677
    %v4685 = vadd.f32 %v4684, %v4678
    %v4686 = vadd.f32 %v4685, %v4679
    %v4687 = vadd.f32 %v4686, %v4680
    %v4688 = vadd.f32 %v4687, %v4681
    %v4689 = vadd.f32 %v4688, %v4682
    %v4690 = vadd.f32 %v4689, %v4683
    %v4691 = vrot.slane %v4690, 4
    %v4692 = vadd.f32 %v4690, %v4691
    %v4693 = vrot.slane %v4692, 2
    %v4694 = vadd.f32 %v4692, %v4693
    %v4695 = vrot.slane %v4694, 1
    %v4696 = vadd.f32 %v4694, %v4695
    %v4697 = vmul.f32 %v4696, %v4666
    %v4698 = vld [vmem:[%s8] sm:$0x1]
    %v4699 = vadd.f32 %v4697, 1e-05
    %v4700 = vrsqrt.pop %v4699
    %v4701 = vmul.f32 %v4698, %v4700
    %v4702 = vld [vmem:[%s9] sm:$0x1]
    %v4703 = vmul.f32 %v4667, %v4701
    %v4704 = vsub.f32 %v4702, %v4703
    %v4706 = vlaneseq
    %v4707 = vshrl.u32 %v4706, 7
    %v4708 = vsub.s32 0, %v4707
    %v4709 = vrot.slane %v4701, %v4708
    %v4711 = vmul.f32 %v4623, %v4709
    %v4712 = vmul.f32 %v4626, %v4709
    %v4713 = vmul.f32 %v4631, %v4709
    %v4714 = vmul.f32 %v4634, %v4709
    %v4715 = vmul.f32 %v4639, %v4709
    %v4716 = vmul.f32 %v4642, %v4709
    %v4717 = vmul.f32 %v4647, %v4709
    %v4718 = vmul.f32 %v4650, %v4709
    %v4720 = vlaneseq
    %v4721 = vshrl.u32 %v4720, 7
    %v4722 = vsub.s32 0, %v4721
    %v4723 = vrot.slane %v4704, %v4722
    %v4725 = vadd.f32 %v4711, %v4723
    %v4726 = vadd.f32 %v4712, %v4723
    %v4727 = vadd.f32 %v4713, %v4723
    %v4728 = vadd.f32 %v4714, %v4723
    %v4729 = vadd.f32 %v4715, %v4723
    %v4730 = vadd.f32 %v4716, %v4723
    %v4731 = vadd.f32 %v4717, %v4723
    %v4732 = vadd.f32 %v4718, %v4723
    %vm4733 = vcmp.gt.f32.partialorder %v4725, 0.0
    %vm4734 = vcmp.gt.f32.partialorder %v4726, 0.0
    %vm4735 = vcmp.gt.f32.partialorder %v4727, 0.0
    %vm4736 = vcmp.gt.f32.partialorder %v4728, 0.0
    %vm4737 = vcmp.gt.f32.partialorder %v4729, 0.0
    %vm4738 = vcmp.gt.f32.partialorder %v4730, 0.0
    %vm4739 = vcmp.gt.f32.partialorder %v4731, 0.0
    %vm4740 = vcmp.gt.f32.partialorder %v4732, 0.0
    %v4741 = vmul.f32 %v4725, 0.2
    %v4742 = vmul.f32 %v4726, 0.2
    %v4743 = vmul.f32 %v4727, 0.2
    %v4744 = vmul.f32 %v4728, 0.2
    %v4745 = vmul.f32 %v4729, 0.2
    %v4746 = vmul.f32 %v4730, 0.2
    %v4747 = vmul.f32 %v4731, 0.2
    %v4748 = vmul.f32 %v4732, 0.2
    %v4749 = vsel %vm4733, %v4725, %v4741
    %v4750 = vsel %vm4734, %v4726, %v4742
    %v4751 = vsel %vm4735, %v4727, %v4743
    %v4752 = vsel %vm4736, %v4728, %v4744
    %v4753 = vsel %vm4737, %v4729, %v4745
    %v4754 = vsel %vm4738, %v4730, %v4746
    %v4755 = vsel %vm4739, %v4731, %v4747
    %v4756 = vsel %vm4740, %v4732, %v4748
    %4757 = vst [vmem:[#allocation16] sm:$0xff] %v4749
    %4758 = vst [vmem:[#allocation16 + $0x8] sm:$0xff] %v4750
    %4759 = vst [vmem:[#allocation16 + $0x10] sm:$0xff] %v4751
    %4760 = vst [vmem:[#allocation16 + $0x18] sm:$0xff] %v4752
    %4761 = vst [vmem:[#allocation16 + $0x20] sm:$0xff] %v4753
    %4762 = vst [vmem:[#allocation16 + $0x28] sm:$0xff] %v4754
    %4763 = vst [vmem:[#allocation16 + $0x30] sm:$0xff] %v4755
    %4764 = vst [vmem:[#allocation16 + $0x38] sm:$0xff] %v4756
    %v4765 = vadd.f32 %v4749, %v4475
    %v4766 = vadd.f32 %v4750, %v4480
    %v4767 = vadd.f32 %v4751, %v4485
    %v4768 = vadd.f32 %v4752, %v4490
    %v4769 = vadd.f32 %v4753, %v4495
    %v4770 = vadd.f32 %v4754, %v4500
    %v4771 = vadd.f32 %v4755, %v4505
    %v4772 = vadd.f32 %v4756, %v4510
    %v4773 = vpack.c.bf16 %v4766, %v4765
    %v4774 = vpack.c.bf16 %v4768, %v4767
    %v4775 = vpack.c.bf16 %v4770, %v4769
    %v4776 = vpack.c.bf16 %v4772, %v4771
    %v4777 = vld [vmem:[#allocation13] sm:$0xf]
    %v4778 = vld [vmem:[#allocation13 + $0x4] sm:$0xf]
    %v4779 = vld [vmem:[#allocation13 + $0x8] sm:$0xf]
    %v4780 = vld [vmem:[#allocation13 + $0xc] sm:$0xf]
    %v4781 = vld [vmem:[#allocation13 + $0x10] sm:$0xf]
    %v4782 = vld [vmem:[#allocation13 + $0x14] sm:$0xf]
    %v4783 = vld [vmem:[#allocation13 + $0x18] sm:$0xf]
    %v4784 = vld [vmem:[#allocation13 + $0x1c] sm:$0xf]
    %v4785 = vld [vmem:[#allocation13 + $0x20] sm:$0xf]
    %v4786 = vld [vmem:[#allocation13 + $0x24] sm:$0xf]
    %v4787 = vld [vmem:[#allocation13 + $0x28] sm:$0xf]
    %v4788 = vld [vmem:[#allocation13 + $0x2c] sm:$0xf]
    %v4789 = vld [vmem:[#allocation13 + $0x30] sm:$0xf]
    %v4790 = vld [vmem:[#allocation13 + $0x34] sm:$0xf]
    %v4791 = vld [vmem:[#allocation13 + $0x38] sm:$0xf]
    %v4792 = vld [vmem:[#allocation13 + $0x3c] sm:$0xf]
    %v4793 = vld [vmem:[%s11] sm:$0x1]
    %v4795 = vlaneseq
    %v4796 = vshrl.u32 %v4795, 7
    %v4797 = vsub.s32 0, %v4796
    %v4798 = vrot.slane %v4793, %v4797
    %v4816 = vunpack.c.l.b16 %v4777
    %v4817 = vunpack.c.l.b16 %v4778
    %v4818 = vunpack.c.l.b16 %v4779
    %v4819 = vunpack.c.l.b16 %v4780
    %v4820 = vunpack.c.l.b16 %v4781
    %v4821 = vunpack.c.l.b16 %v4782
    %v4822 = vunpack.c.l.b16 %v4783
    %v4823 = vunpack.c.l.b16 %v4784
    %v4824 = vunpack.c.l.b16 %v4785
    %v4825 = vunpack.c.l.b16 %v4786
    %v4826 = vunpack.c.l.b16 %v4787
    %v4827 = vunpack.c.l.b16 %v4788
    %v4828 = vunpack.c.l.b16 %v4789
    %v4829 = vunpack.c.l.b16 %v4790
    %v4830 = vunpack.c.l.b16 %v4791
    %v4831 = vunpack.c.l.b16 %v4792
    %v4832 = vpack.c.b16 %v4817, %v4816
    %v4833 = vpack.c.b16 %v4819, %v4818
    %v4834 = vpack.c.b16 %v4821, %v4820
    %v4835 = vpack.c.b16 %v4823, %v4822
    %v4836 = vpack.c.b16 %v4825, %v4824
    %v4837 = vpack.c.b16 %v4827, %v4826
    %v4838 = vpack.c.b16 %v4829, %v4828
    %v4839 = vpack.c.b16 %v4831, %v4830
    %4848 = vmatprep.subr.bf16.mxu0 0
    %4849 = vmatpush1.bf16.msra.mxu0 %v4839
    %4850 = vmatprep.subr.bf16.mxu0 0
    %4851 = vmatpush1.bf16.msra.mxu0 %v4838
    %4852 = vmatprep.subr.bf16.mxu0 0
    %4853 = vmatpush1.bf16.msra.mxu0 %v4837
    %4854 = vmatprep.subr.bf16.mxu0 0
    %4855 = vmatpush1.bf16.msra.mxu0 %v4836
    %4856 = vmatprep.subr.bf16.mxu0 0
    %4857 = vmatpush1.bf16.msra.mxu0 %v4835
    %4858 = vmatprep.subr.bf16.mxu0 0
    %4859 = vmatpush1.bf16.msra.mxu0 %v4834
    %4860 = vmatprep.subr.bf16.mxu0 0
    %4861 = vmatpush1.bf16.msra.mxu0 %v4833
    %4862 = vmatprep.subr.bf16.mxu0 0
    %4863 = vmatpush1.bf16.msra.mxu0 %v4832
    %4864 = vmatprep.subr.bf16.mxu0 0
    %4865 = vmatpush2.bf16.msra.mxu0 0
    %4866 = vmatprep.subr.bf16.mxu0 0
    %4867 = vmatpush2.bf16.msra.mxu0 0
    %4868 = vmatprep.subr.bf16.mxu0 0
    %4869 = vmatpush2.bf16.msra.mxu0 0
    %4870 = vmatprep.subr.bf16.mxu0 0
    %4871 = vmatpush2.bf16.msra.mxu0 0
    %4872 = vmatprep.subr.bf16.mxu0 0
    %4873 = vmatpush2.bf16.msra.mxu0 0
    %4874 = vmatprep.subr.bf16.mxu0 0
    %4875 = vmatpush2.bf16.msra.mxu0 0
    %4876 = vmatprep.subr.bf16.mxu0 0
    %4877 = vmatpush2.bf16.msra.mxu0 0
    %4878 = vmatprep.subr.bf16.mxu0 0
    %4879 = vmatpush2.bf16.msra.mxu0 0
    %4880 = vmatprep.mubr.bf16.mxu0 0
    %4881 = vmatmul.mubr.bf16.gmra.mxu0 %v4773
    %v4882 = vpop.f32.mrf.mxu0
    %v4883 = vadd.f32 %v4798, %v4882
    %v4884 = vpop.f32.mrf.mxu0
    %v4885 = vpop.f32.mrf.mxu0
    %v4886 = vadd.f32 %v4798, %v4885
    %v4887 = vpop.f32.mrf.mxu0
    %4888 = vmatprep.mubr.bf16.mxu0 0
    %4889 = vmatmul.mubr.bf16.gmra.mxu0 %v4774
    %v4890 = vpop.f32.mrf.mxu0
    %v4891 = vadd.f32 %v4798, %v4890
    %v4892 = vpop.f32.mrf.mxu0
    %v4893 = vpop.f32.mrf.mxu0
    %v4894 = vadd.f32 %v4798, %v4893
    %v4895 = vpop.f32.mrf.mxu0
    %4896 = vmatprep.mubr.bf16.mxu0 0
    %4897 = vmatmul.mubr.bf16.gmra.mxu0 %v4775
    %v4898 = vpop.f32.mrf.mxu0
    %v4899 = vadd.f32 %v4798, %v4898
    %v4900 = vpop.f32.mrf.mxu0
    %v4901 = vpop.f32.mrf.mxu0
    %v4902 = vadd.f32 %v4798, %v4901
    %v4903 = vpop.f32.mrf.mxu0
    %4904 = vmatprep.mubr.bf16.mxu0 0
    %4905 = vmatmul.mubr.bf16.gmra.mxu0 %v4776
    %v4906 = vpop.f32.mrf.mxu0
    %v4907 = vadd.f32 %v4798, %v4906
    %v4908 = vpop.f32.mrf.mxu0
    %v4909 = vpop.f32.mrf.mxu0
    %v4910 = vadd.f32 %v4798, %v4909
    %v4911 = vpop.f32.mrf.mxu0
    %4912 = vdwg.mxu0
    %4913 = vst [vmem:[#allocation15] sm:$0xff] %v4883
    %4914 = vst [vmem:[#allocation15 + $0x8] sm:$0xff] %v4886
    %4915 = vst [vmem:[#allocation15 + $0x10] sm:$0xff] %v4891
    %4916 = vst [vmem:[#allocation15 + $0x18] sm:$0xff] %v4894
    %4917 = vst [vmem:[#allocation15 + $0x20] sm:$0xff] %v4899
    %4918 = vst [vmem:[#allocation15 + $0x28] sm:$0xff] %v4902
    %4919 = vst [vmem:[#allocation15 + $0x30] sm:$0xff] %v4907
    %4920 = vst [vmem:[#allocation15 + $0x38] sm:$0xff] %v4910
    // Predicated region
    $region74: #{tpu_custom_call.1} parent=1 // pred_check
      _
    $region75: #{tpu_custom_call.1} parent=1 // pred_check_branch
      %4922 = sbr.rel (0) target = $region77
    $region76: #{tpu_custom_call.1} parent=1 // pred_region
      %s4924 = ssub.s32 1024, 1024
      %4925 = vsyncadd [#allocation6], %s4924
      %s4926 = sshll.u32 [#allocation15], 4
      %s4927 = int_to_ptr.vmem [resolvable:$true] %s4926
      %4932 = dma.vmem_to_hbm [thread:$0]  %s4927, 1024, %s12, [#allocation6], 128, 128, 8
    $region77: #{tpu_custom_call.1} parent=1 // pred_fallthru
      _
    // Predicated region
    $region78: #{tpu_custom_call.1} parent=1 // pred_check
      _
    $region79: #{tpu_custom_call.1} parent=1 // pred_check_branch
      %4934 = sbr.rel (0) target = $region81
    $region80: #{tpu_custom_call.1} parent=1 // pred_region
      %s4936 = ssub.s32 1024, 1024
      %4937 = vsyncadd [#allocation17], %s4936
      %s4938 = sshll.u32 [#allocation16], 4
      %s4939 = int_to_ptr.vmem [resolvable:$true] %s4938
      %4944 = dma.vmem_to_hbm [thread:$0]  %s4939, 1024, %s13, [#allocation17], 128, 128, 8
    $region81: #{tpu_custom_call.1} parent=1 // pred_fallthru
      _
    // Predicated region
    $region82: #{tpu_custom_call.1} parent=1 // pred_check
      _
    $region83: #{tpu_custom_call.1} parent=1 // pred_check_branch
      %4946 = sbr.rel (0) target = $region85
    $region84: #{tpu_custom_call.1} parent=1 // pred_region
      %4947 = dma.done [#allocation6], 1024
    $region85: #{tpu_custom_call.1} parent=1 // pred_fallthru
      _
    // Predicated region
    $region86: #{tpu_custom_call.1} parent=1 // pred_check
      _
    $region87: #{tpu_custom_call.1} parent=1 // pred_check_branch
      %4949 = sbr.rel (0) target = $region89
    $region88: #{tpu_custom_call.1} parent=1 // pred_region
      %4950 = dma.done [#allocation17], 1024
    $region89: #{tpu_custom_call.1} parent=1 // pred_fallthru
      _
    %4951 = vsyncpa [#allocation5], 1
    %4952 = vsyncpa [#allocation8], 1
    %4953 = vsyncpa [#allocation11], 1
    %4954 = vsyncpa [#allocation14], 1
    %4955 = vsyncpa [#allocation6], 1
    %4956 = vsyncpa [#allocation17], 1

</llo_original>
